<compile_context>
chip_gen: v6e
topology: v6e:2x2x1
jax: 0.10.0
libtpu: 0.0.40
codegen_flags: <defaults>
</compile_context>

<pallas_src>
import functools
from typing import NamedTuple

import jax
import jax.numpy as jnp
from jax.experimental import pallas as pl
from jax.experimental.pallas import tpu as pltpu


class ModelConfig(NamedTuple):
    fft_conv1d_kernel: tuple = (3, 1)
    fft_conv1d_padding: tuple = (1, 0)


_EPS = 1e-5


# -----------------------------------------------------------------------------
# Hardware-aware knobs.
# -----------------------------------------------------------------------------
def _device_kind():
    try:
        return jax.devices()[0].device_kind.lower()
    except Exception:
        return ""


def _softmax_in_bf16():
    # bf16 EUP/VPU exist on v6e/v7x; keep elementwise math in f32 on v5e/older.
    kind = _device_kind()
    return any(tag in kind for tag in ("v6", "v7", "7x"))


def _vmem_limit_bytes():
    # ~3/4 of the per-core VMEM: ~96 MiB on v5e/v6e, ~48 MiB on v7x.
    try:
        cap = pltpu.get_tpu_info().vmem_capacity_bytes
        return int(cap * 3 // 4)
    except Exception:
        return 64 * 1024 * 1024


def _layer_norm(x, g, b):
    mu = jnp.mean(x, axis=-1, keepdims=True)
    var = jnp.mean((x - mu) ** 2, axis=-1, keepdims=True)
    return (x - mu) * jax.lax.rsqrt(var + _EPS) * g + b


def _pick_tile(L, target):
    """Largest tile <= target dividing L; prefer multiples of 128, then 8."""
    if L <= target:
        return L
    for align in (128, 8):
        t = (target // align) * align
        while t >= align:
            if L % t == 0:
                return t
            t -= align
    # TODO(synk): pad L in the wrapper (with key masking) instead of tq=L.
    return L


def _pallas_call_with_fallback(build):
    """build(single_buffer: bool) -> result.

    Tries single-buffered (pl.Buffered(1)) constant-operand specs first; if the
    installed jax rejects them, falls back to default double buffering so the
    kernel always runs.
    """
    try:
        return jax.block_until_ready(build(True))
    except Exception:
        return build(False)


# -----------------------------------------------------------------------------
# Multi-head self-attention kernel.
# Grid: (batch, query-tile), both axes "parallel". K/V arrive pre-projected,
# head-major, bf16 via BlockSpec (projection hoisted to the wrapper).
# -----------------------------------------------------------------------------
def _mha_kernel(x_ref, mask_ref, k_ref, v_ref, g_ref, beta_ref,
                wq_ref, bq_ref, wfc_ref, bfc_ref, out_ref, *attn_refs,
                n_head, d_k, d_v, tq, softmax_bf16):
    attn_ref = attn_refs[0] if attn_refs else None
    bf = jnp.bfloat16
    L = k_ref.shape[2]

    x = x_ref[0]                                   # (tq, D) f32, pre-LN residual
    g = g_ref[...]
    beta = beta_ref[...]
    xn = _layer_norm(x, g, beta)                   # LayerNorm on query path only

    inv_temp = 1.0 / (d_k ** 0.5)
    q = (jnp.dot(xn.astype(bf), wq_ref[...],
                 preferred_element_type=jnp.float32) + bq_ref[...]) * inv_temp
    qh = jnp.swapaxes(q.reshape(tq, n_head, d_k), 0, 1).astype(bf)   # (H, tq, dk)

    kh = k_ref[0]                                  # (H, L, dk) bf16 head-major
    vh = v_ref[0]                                  # (H, L, dv) bf16 head-major

    s = jnp.einsum('hqd,hkd->hqk', qh, kh,
                   preferred_element_type=jnp.float32)               # (H, tq, L)
    m = jnp.max(s, axis=-1, keepdims=True)
    if softmax_bf16:
        # v6e/v7x: bf16 exp on the EUP; denominator accumulated in f32.
        e = jnp.exp((s - m).astype(bf))
        denom = jnp.sum(e, axis=-1, keepdims=True, dtype=jnp.float32)
        probs_bf = e * pl.reciprocal(denom, approx=True).astype(bf)
    else:
        # v5e: no bf16 VPU/EUP -> keep elementwise math in f32.
        e = jnp.exp(s - m)
        probs = e * pl.reciprocal(jnp.sum(e, axis=-1, keepdims=True), approx=True)
        probs_bf = probs.astype(bf)

    if attn_ref is not None:
        # Single bf16 tensor reused for the HBM store and the attn@v matmul.
        attn_ref[...] = probs_bf.reshape(n_head, 1, tq, L)

    o = jnp.einsum('hqk,hkd->hqd', probs_bf, vh,
                   preferred_element_type=jnp.float32)                # (H, tq, dv)
    o = jnp.swapaxes(o, 0, 1).reshape(tq, n_head * d_v)
    o = jnp.dot(o.astype(bf), wfc_ref[...],
                preferred_element_type=jnp.float32) + bfc_ref[...]

    y = _layer_norm(o + x, g, beta)                # residual + post-LN (same params)
    out_ref[0] = y * mask_ref[0]                   # fused non_pad_mask


def mha_pallas(x, mask, p, n_head, d_k, d_v, *, return_attn=True):
    B, L, D = x.shape
    bf = jnp.bfloat16
    target = 128 if "v5" in _device_kind() else 256
    tq = _pick_tile(L, target)
    n_q = L // tq

    # K/V projection hoisted out of the kernel (plain XLA GEMM, bf16 operands,
    # f32 accumulation), laid out head-major in bf16 for direct streaming.
    wkv = jnp.concatenate([p['wk'], p['wv']], axis=1).astype(bf)
    bkv = jnp.concatenate([p['bk'], p['bv']], axis=1)
    kv = jnp.dot(x.astype(bf), wkv, preferred_element_type=jnp.float32) + bkv
    k = kv[..., :n_head * d_k].reshape(B, L, n_head, d_k)
    v = kv[..., n_head * d_k:].reshape(B, L, n_head, d_v)
    k = jnp.transpose(k, (0, 2, 1, 3)).astype(bf)   # (B, H, L, dk)
    v = jnp.transpose(v, (0, 2, 1, 3)).astype(bf)   # (B, H, L, dv)

    wq = p['wq'].astype(bf)
    wfc = p['wfc'].astype(bf)

    kernel = functools.partial(_mha_kernel, n_head=n_head, d_k=d_k, d_v=d_v,
                               tq=tq, softmax_bf16=_softmax_in_bf16())

    tiled_args = (x, mask, k, v)
    const_args = (p['attn_ln_g'], p['attn_ln_b'], wq, p['bq'], wfc, p['bfc'])

    def build(single_buffer):
        def const_spec(arr):
            nd = arr.ndim
            if single_buffer:
                return pl.BlockSpec(arr.shape, lambda *_: (0,) * nd,
                                    pipeline_mode=pl.Buffered(1))
            return pl.BlockSpec(arr.shape, lambda *_: (0,) * nd)

        in_specs = [pl.BlockSpec((1, tq, D), lambda b, qi: (b, qi, 0)),
                    pl.BlockSpec((1, tq, 1), lambda b, qi: (b, qi, 0)),
                    pl.BlockSpec((1, n_head, L, d_k), lambda b, qi: (b, 0, 0, 0)),
                    pl.BlockSpec((1, n_head, L, d_v), lambda b, qi: (b, 0, 0, 0))]
        in_specs += [const_spec(a) for a in const_args]

        out_shape = jax.ShapeDtypeStruct((B, L, D), jnp.float32)
        out_spec = pl.BlockSpec((1, tq, D), lambda b, qi: (b, qi, 0))
        if return_attn:
            # Head-major bf16 attention probs: halves the O(L^2) writeback and
            # makes the (n_head*B, L, L) view a free reshape.
            out_shape = (out_shape,
                         jax.ShapeDtypeStruct((n_head, B, L, L), jnp.bfloat16))
            out_spec = (out_spec,
                        pl.BlockSpec((n_head, 1, tq, L),
                                     lambda b, qi: (0, b, qi, 0)))

        return pl.pallas_call(
            kernel,
            grid=(B, n_q),
            in_specs=in_specs,
            out_specs=out_spec,
            out_shape=out_shape,
            compiler_params=pltpu.CompilerParams(
                dimension_semantics=("parallel", "parallel"),
                vmem_limit_bytes=_vmem_limit_bytes()),
        )(*tiled_args, *const_args)

    result = _pallas_call_with_fallback(build)
    if return_attn:
        out, attn = result
        return out, attn.reshape(n_head * B, L, L)
    return result, None


# -----------------------------------------------------------------------------
# Position-wise feed-forward (Conv1d -> ReLU -> Conv1d) kernel.
# Grid: (batch,). LN'd input is staged once in a bf16 zero-padded scratch;
# the conv stack is evaluated per time chunk so the (L, d_inner) hidden never
# materializes at full length.
# -----------------------------------------------------------------------------
def _ffn_kernel(x_ref, mask_ref, g_ref, beta_ref,
                w1_ref, b1_ref, w2_ref, b2_ref, out_ref, xpad_ref,
                *, k1, p1, k2, p2, tc, pad):
    bf = jnp.bfloat16
    L, D = x_ref.shape[1], x_ref.shape[2]
    halo = p1 + p2
    H = w1_ref.shape[-1]

    x = x_ref[0]                                   # (L, D) f32, residual
    g = g_ref[...]
    beta = beta_ref[...]
    b1 = b1_ref[...]
    b2 = b2_ref[...]

    # Stage LayerNorm'd input once, zero-padded, in bf16 (halves scratch VMEM
    # and tap load traffic; taps are consumed in bf16 by the MXU anyway).
    xn = _layer_norm(x, g, beta).astype(bf)
    if pad > 0:
        xpad_ref[pl.ds(0, pad), :] = jnp.zeros((pad, D), bf)
        xpad_ref[pl.ds(pad + L, pad), :] = jnp.zeros((pad, D), bf)
    xpad_ref[pl.ds(pad, L), :] = xn

    n_chunks = L // tc
    for ci in range(n_chunks):                     # static, small trip count
        c0 = ci * tc
        hrows = tc + 2 * p2
        # Conv1 taps for h rows covering global [c0 - p2, c0 + tc + p2).
        h = jnp.zeros((hrows, H), jnp.float32) + b1
        for j in range(k1):
            tap = xpad_ref[pl.ds(c0 + j + pad - halo, hrows), :]
            h = h + jnp.dot(tap, w1_ref[j], preferred_element_type=jnp.float32)
        if p2 > 0:
            # h rows outside [0, L) are conv2's zero padding, not conv1(0-pad).
            ridx = jax.lax.broadcasted_iota(jnp.int32, (hrows, 1), 0) + (c0 - p2)
            h = jnp.where((ridx >= 0) & (ridx < L), h, 0.0)
        h = jnp.maximum(h, 0.0).astype(bf)         # ReLU, bf16 MXU operand
        o = jnp.zeros((tc, D), jnp.float32) + b2
        for j in range(k2):
            o = o + jnp.dot(h[j:j + tc, :], w2_ref[j],
                            preferred_element_type=jnp.float32)
        # Residual + LayerNorm (same FFN LN params) + fused non-pad mask.
        y = _layer_norm(o + x[c0:c0 + tc, :], g, beta)
        out_ref[0, pl.ds(c0, tc), :] = y * mask_ref[0, pl.ds(c0, tc), :]


def ffn_pallas(x, mask, p, cfg):
    B, L, D = x.shape
    k1, k2 = cfg.fft_conv1d_kernel
    p1, p2 = cfg.fft_conv1d_padding
    assert k1 == 2 * p1 + 1 and k2 == 2 * p2 + 1, "conv must preserve length"
    bf = jnp.bfloat16

    halo = p1 + p2
    pad = ((halo + 7) // 8) * 8 if halo > 0 else 0   # aligned scratch offset
    tc = _pick_tile(L, 256)

    w1 = p['w1'].astype(bf)
    w2 = p['w2'].astype(bf)

    kernel = functools.partial(_ffn_kernel, k1=k1, p1=p1, k2=k2, p2=p2,
                               tc=tc, pad=pad)

    tiled_args = (x, mask)
    const_args = (p['ffn_ln_g'], p['ffn_ln_b'], w1, p['b1'], w2, p['b2'])

    def build(single_buffer):
        def const_spec(arr):
            nd = arr.ndim
            if single_buffer:
                return pl.BlockSpec(arr.shape, lambda *_: (0,) * nd,
                                    pipeline_mode=pl.Buffered(1))
            return pl.BlockSpec(arr.shape, lambda *_: (0,) * nd)

        in_specs = [pl.BlockSpec((1, L, D), lambda b: (b, 0, 0)),
                    pl.BlockSpec((1, L, 1), lambda b: (b, 0, 0))]
        in_specs += [const_spec(a) for a in const_args]

        return pl.pallas_call(
            kernel,
            grid=(B,),
            in_specs=in_specs,
            out_specs=pl.BlockSpec((1, L, D), lambda b: (b, 0, 0)),
            out_shape=jax.ShapeDtypeStruct((B, L, D), jnp.float32),
            scratch_shapes=[pltpu.VMEM((L + 2 * pad, D), bf)],
            compiler_params=pltpu.CompilerParams(
                dimension_semantics=("parallel",),
                vmem_limit_bytes=_vmem_limit_bytes()),
        )(*tiled_args, *const_args)

    return _pallas_call_with_fallback(build)


# -----------------------------------------------------------------------------
# FFTBlock forward (wrapper glue). Mask multiplies are fused into the kernels.
# -----------------------------------------------------------------------------
def fft_block_forward(x, p, n_head, d_k, d_v, cfg,
                      non_pad_mask=None, slf_attn_mask=None, return_attn=True):
    del slf_attn_mask  # unused by the reference PyTorch attention
    B, L, _ = x.shape
    if non_pad_mask is None:
        mask = jnp.ones((B, L, 1), jnp.float32)
    else:
        mask = non_pad_mask.astype(jnp.float32)
    out, attn = mha_pallas(x, mask, p, n_head, d_k, d_v, return_attn=return_attn)
    out = ffn_pallas(out, mask, p, cfg)
    return out, attn


# -----------------------------------------------------------------------------
# Deterministic parameter initialization (shapes follow the PyTorch __init__).
# -----------------------------------------------------------------------------
def init_params(key, d_model, d_inner, n_head, d_k, d_v, cfg):
    keys = jax.random.split(key, 12)
    std_qk = (2.0 / (d_model + d_k)) ** 0.5
    std_v = (2.0 / (d_model + d_v)) ** 0.5
    std_fc = (2.0 / (n_head * d_v + d_model)) ** 0.5
    k1, k2 = cfg.fft_conv1d_kernel

    def n(key, shape, s):
        return (s * jax.random.normal(key, shape)).astype(jnp.float32)

    p = dict(
        attn_ln_g=jnp.ones((1, d_model), jnp.float32),
        attn_ln_b=jnp.zeros((1, d_model), jnp.float32),
        # Linear weights stored as (in, out) so kernels do x @ W.
        wq=n(keys[0], (d_model, n_head * d_k), std_qk),
        bq=n(keys[1], (1, n_head * d_k), 0.02),
        wk=n(keys[2], (d_model, n_head * d_k), std_qk),
        bk=n(keys[3], (1, n_head * d_k), 0.02),
        wv=n(keys[4], (d_model, n_head * d_v), std_v),
        bv=n(keys[5], (1, n_head * d_v), 0.02),
        wfc=n(keys[6], (n_head * d_v, d_model), std_fc),
        bfc=n(keys[7], (1, d_model), 0.02),
        ffn_ln_g=jnp.ones((1, d_model), jnp.float32),
        ffn_ln_b=jnp.zeros((1, d_model), jnp.float32),
        # Conv1d weights: PyTorch (C_out, C_in, K) stored as (K, C_in, C_out).
        w1=n(keys[8], (k1, d_model, d_inner), 0.1),
        b1=n(keys[9], (1, d_inner), 0.02),
        w2=n(keys[10], (k2, d_inner, d_model), 0.1),
        b2=n(keys[11], (1, d_model), 0.02),
    )
    return p


# -----------------------------------------------------------------------------
# Plain-JAX reference (same bf16-operand / f32-accumulate matmul recipe) for a
# self-consistency check of the Pallas plumbing.
# -----------------------------------------------------------------------------
def reference_fftblock(x, p, n_head, d_k, d_v, cfg, non_pad_mask=None):
    bf = jnp.bfloat16
    B, L, D = x.shape

    def mm(a, w):
        return jnp.dot(a.astype(bf), w.astype(bf),
                       preferred_element_type=jnp.float32)

    def ln(z, g, b):
        mu = z.mean(-1, keepdims=True)
        var = ((z - mu) ** 2).mean(-1, keepdims=True)
        return (z - mu) * jax.lax.rsqrt(var + _EPS) * g + b

    inv_temp = 1.0 / (d_k ** 0.5)
    residual = x
    xn = ln(x, p['attn_ln_g'], p['attn_ln_b'])
    q = (mm(xn, p['wq']) + p['bq']) * inv_temp
    k = mm(x, p['wk']) + p['bk']
    v = mm(x, p['wv']) + p['bv']
    q = q.reshape(B, L, n_head, d_k).transpose(2, 0, 1, 3).reshape(-1, L, d_k)
    k = k.reshape(B, L, n_head, d_k).transpose(2, 0, 1, 3).reshape(-1, L, d_k)
    v = v.reshape(B, L, n_head, d_v).transpose(2, 0, 1, 3).reshape(-1, L, d_v)
    scores = jnp.einsum('nqd,nkd->nqk', q.astype(bf), k.astype(bf),
                        preferred_element_type=jnp.float32)
    attn = jax.nn.softmax(scores, axis=-1)
    out = jnp.einsum('nqk,nkd->nqd', attn.astype(bf), v.astype(bf),
                     preferred_element_type=jnp.float32)
    out = out.reshape(n_head, B, L, d_v).transpose(1, 2, 0, 3).reshape(B, L, -1)
    out = mm(out, p['wfc']) + p['bfc']
    out = ln(out + residual, p['attn_ln_g'], p['attn_ln_b'])
    if non_pad_mask is not None:
        out = out * non_pad_mask

    res = out
    z = ln(out, p['ffn_ln_g'], p['ffn_ln_b'])
    k1, k2 = cfg.fft_conv1d_kernel
    p1, p2 = cfg.fft_conv1d_padding
    H = p['w1'].shape[-1]
    zp = jnp.pad(z, ((0, 0), (p1, p1), (0, 0)))
    h = jnp.zeros((B, L, H), jnp.float32) + p['b1']
    for j in range(k1):
        h = h + jnp.einsum('blc,cd->bld', zp[:, j:j + L, :].astype(bf),
                           p['w1'][j].astype(bf),
                           preferred_element_type=jnp.float32)
    h = jnp.maximum(h, 0.0)
    hp = jnp.pad(h, ((0, 0), (p2, p2), (0, 0)))
    o = jnp.zeros((B, L, D), jnp.float32) + p['b2']
    for j in range(k2):
        o = o + jnp.einsum('blc,cd->bld', hp[:, j:j + L, :].astype(bf),
                           p['w2'][j].astype(bf),
                           preferred_element_type=jnp.float32)
    out2 = ln(o + res, p['ffn_ln_g'], p['ffn_ln_b'])
    if non_pad_mask is not None:
        out2 = out2 * non_pad_mask
    return out2, attn


if __name__ == "__main__":
    d_model, d_inner, n_head, d_k, d_v = 32, 64, 2, 16, 16
    B, L = 2, 8
    cfg = ModelConfig(fft_conv1d_kernel=(3, 1), fft_conv1d_padding=(1, 0))

    key = jax.random.PRNGKey(0)
    kx, kp, km = jax.random.split(key, 3)
    x = jax.random.normal(kx, (B, L, d_model), jnp.float32)
    params = init_params(kp, d_model, d_inner, n_head, d_k, d_v, cfg)
    non_pad_mask = (jax.random.uniform(km, (B, L, 1)) > 0.2).astype(jnp.float32)

    enc_out, enc_attn = fft_block_forward(
        x, params, n_head, d_k, d_v, cfg,
        non_pad_mask=non_pad_mask, slf_attn_mask=None)
    jax.block_until_ready((enc_out, enc_attn))

    ref_out, ref_attn = reference_fftblock(
        x, params, n_head, d_k, d_v, cfg, non_pad_mask=non_pad_mask)

    assert enc_out.shape == (B, L, d_model)
    assert enc_attn.shape == (n_head * B, L, L)
    # bf16 matmuls, bf16-stored attention probs and approx softmax reciprocal
    # => loose-ish tolerances; structural/layout bugs produce O(0.1+) diffs.
    assert jnp.allclose(enc_out, ref_out, atol=4e-2, rtol=4e-2), \
        float(jnp.max(jnp.abs(enc_out - ref_out)))
    assert jnp.allclose(enc_attn.astype(jnp.float32), ref_attn,
                        atol=3e-2, rtol=3e-2), \
        float(jnp.max(jnp.abs(enc_attn.astype(jnp.float32) - ref_attn)))

    print("KERNEL_OK")
</pallas_src>

<mosaic_0001>
module attributes {stable_mosaic.version = 11 : i64} {
  func.func @_mha_kernel(%arg0: i32, %arg1: i32, %arg2: memref<1x8x32xf32, #tpu.memory_space<vmem>>, %arg3: memref<1x8x1xf32, #tpu.memory_space<vmem>>, %arg4: memref<1x2x8x16xbf16, #tpu.memory_space<vmem>>, %arg5: memref<1x2x8x16xbf16, #tpu.memory_space<vmem>>, %arg6: memref<1x32xf32, #tpu.memory_space<vmem>>, %arg7: memref<1x32xf32, #tpu.memory_space<vmem>>, %arg8: memref<32x32xbf16, #tpu.memory_space<vmem>>, %arg9: memref<1x32xf32, #tpu.memory_space<vmem>>, %arg10: memref<32x32xbf16, #tpu.memory_space<vmem>>, %arg11: memref<1x32xf32, #tpu.memory_space<vmem>>, %arg12: memref<1x8x32xf32, #tpu.memory_space<vmem>>, %arg13: memref<2x1x8x8xbf16, #tpu.memory_space<vmem>>) attributes {dimension_semantics = [#tpu.dimension_semantics<parallel>, #tpu.dimension_semantics<parallel>], iteration_bounds = array<i64: 2, 1>, scalar_prefetch = 0 : i64, scratch_operands = 0 : i64, tpu.core_type = #tpu.core_type<tc>, window_params = [{transform_indices = @transform_0, window_bounds = array<i64: 1, 8, 32>}, {transform_indices = @transform_1, window_bounds = array<i64: 1, 8, 1>}, {transform_indices = @transform_2, window_bounds = array<i64: 1, 2, 8, 16>}, {transform_indices = @transform_3, window_bounds = array<i64: 1, 2, 8, 16>}, {pipeline_mode = #tpu.pipeline_mode<synchronous>, transform_indices = @transform_4, window_bounds = array<i64: 1, 32>}, {pipeline_mode = #tpu.pipeline_mode<synchronous>, transform_indices = @transform_5, window_bounds = array<i64: 1, 32>}, {pipeline_mode = #tpu.pipeline_mode<synchronous>, transform_indices = @transform_6, window_bounds = array<i64: 32, 32>}, {pipeline_mode = #tpu.pipeline_mode<synchronous>, transform_indices = @transform_7, window_bounds = array<i64: 1, 32>}, {pipeline_mode = #tpu.pipeline_mode<synchronous>, transform_indices = @transform_8, window_bounds = array<i64: 32, 32>}, {pipeline_mode = #tpu.pipeline_mode<synchronous>, transform_indices = @transform_9, window_bounds = array<i64: 1, 32>}, {transform_indices = @transform_10, window_bounds = array<i64: 1, 8, 32>}, {transform_indices = @transform_11, window_bounds = array<i64: 2, 1, 8, 8>}]} {
    %c0 = arith.constant 0 : index
    %c0_0 = arith.constant 0 : index
    %c0_1 = arith.constant 0 : index
    %0 = vector.load %arg2[%c0, %c0_0, %c0_1] : memref<1x8x32xf32, #tpu.memory_space<vmem>>, vector<1x8x32xf32>
    %1 = vector.shape_cast %0 : vector<1x8x32xf32> to vector<8x32xf32>
    %c0_2 = arith.constant 0 : index
    %c0_3 = arith.constant 0 : index
    %2 = vector.load %arg6[%c0_2, %c0_3] : memref<1x32xf32, #tpu.memory_space<vmem>>, vector<1x32xf32>
    %c0_4 = arith.constant 0 : index
    %c0_5 = arith.constant 0 : index
    %3 = vector.load %arg7[%c0_4, %c0_5] : memref<1x32xf32, #tpu.memory_space<vmem>>, vector<1x32xf32>
    %cst = arith.constant dense<0.000000e+00> : vector<8xf32>
    %4 = vector.multi_reduction <add>, %1, %cst [1] : vector<8x32xf32> to vector<8xf32>
    %5 = vector.shape_cast %4 : vector<8xf32> to vector<8x1xf32>
    %cst_6 = arith.constant 3.200000e+01 : f32
    %6 = vector.broadcast %cst_6 : f32 to vector<8x1xf32>
    %7 = arith.divf %5, %6 : vector<8x1xf32>
    %8 = vector.broadcast %7 : vector<8x1xf32> to vector<8x32xf32>
    %9 = arith.subf %1, %8 : vector<8x32xf32>
    %10 = arith.mulf %9, %9 : vector<8x32xf32>
    %cst_7 = arith.constant dense<0.000000e+00> : vector<8xf32>
    %11 = vector.multi_reduction <add>, %10, %cst_7 [1] : vector<8x32xf32> to vector<8xf32>
    %12 = vector.shape_cast %11 : vector<8xf32> to vector<8x1xf32>
    %cst_8 = arith.constant 3.200000e+01 : f32
    %13 = vector.broadcast %cst_8 : f32 to vector<8x1xf32>
    %14 = arith.divf %12, %13 : vector<8x1xf32>
    %15 = vector.broadcast %7 : vector<8x1xf32> to vector<8x32xf32>
    %16 = arith.subf %1, %15 : vector<8x32xf32>
    %cst_9 = arith.constant 9.99999974E-6 : f32
    %17 = vector.broadcast %cst_9 : f32 to vector<8x1xf32>
    %18 = arith.addf %14, %17 : vector<8x1xf32>
    %19 = math.rsqrt %18 : vector<8x1xf32>
    %20 = vector.broadcast %19 : vector<8x1xf32> to vector<8x32xf32>
    %21 = arith.mulf %16, %20 : vector<8x32xf32>
    %22 = vector.broadcast %2 : vector<1x32xf32> to vector<8x32xf32>
    %23 = arith.mulf %21, %22 : vector<8x32xf32>
    %24 = vector.broadcast %3 : vector<1x32xf32> to vector<8x32xf32>
    %25 = arith.addf %23, %24 : vector<8x32xf32>
    %26 = arith.truncf %25 : vector<8x32xf32> to vector<8x32xbf16>
    %c0_10 = arith.constant 0 : index
    %c0_11 = arith.constant 0 : index
    %27 = vector.load %arg8[%c0_10, %c0_11] : memref<32x32xbf16, #tpu.memory_space<vmem>>, vector<32x32xbf16>
    %cst_12 = arith.constant dense<0.000000e+00> : vector<8x32xf32>
    %28 = tpu.matmul %26, %27, %cst_12 {dimension_numbers = #tpu.dot_dimension_numbers<[1], [0], [0], [1], [0, 0, 1, 1], [], []>} : vector<8x32xbf16>, vector<32x32xbf16>, vector<8x32xf32> -> vector<8x32xf32>
    %c0_13 = arith.constant 0 : index
    %c0_14 = arith.constant 0 : index
    %29 = vector.load %arg9[%c0_13, %c0_14] : memref<1x32xf32, #tpu.memory_space<vmem>>, vector<1x32xf32>
    %30 = vector.broadcast %29 : vector<1x32xf32> to vector<8x32xf32>
    %31 = arith.addf %28, %30 : vector<8x32xf32>
    %cst_15 = arith.constant 2.500000e-01 : f32
    %32 = vector.broadcast %cst_15 : f32 to vector<8x32xf32>
    %33 = arith.mulf %31, %32 : vector<8x32xf32>
    %34 = vector.shape_cast %33 : vector<8x32xf32> to vector<8x2x16xf32>
    %35 = tpu.transpose %34, [1, 0, 2] : vector<8x2x16xf32> -> vector<2x8x16xf32>
    %36 = arith.truncf %35 : vector<2x8x16xf32> to vector<2x8x16xbf16>
    %c0_16 = arith.constant 0 : index
    %c0_17 = arith.constant 0 : index
    %c0_18 = arith.constant 0 : index
    %c0_19 = arith.constant 0 : index
    %37 = vector.load %arg4[%c0_16, %c0_17, %c0_18, %c0_19] : memref<1x2x8x16xbf16, #tpu.memory_space<vmem>>, vector<1x2x8x16xbf16>
    %38 = vector.shape_cast %37 : vector<1x2x8x16xbf16> to vector<2x8x16xbf16>
    %c0_20 = arith.constant 0 : index
    %c0_21 = arith.constant 0 : index
    %c0_22 = arith.constant 0 : index
    %c0_23 = arith.constant 0 : index
    %39 = vector.load %arg5[%c0_20, %c0_21, %c0_22, %c0_23] : memref<1x2x8x16xbf16, #tpu.memory_space<vmem>>, vector<1x2x8x16xbf16>
    %40 = vector.shape_cast %39 : vector<1x2x8x16xbf16> to vector<2x8x16xbf16>
    "tpu.trace_start"() <{level = 10 : i32, message = "hqd,hkd->hqk"}> : () -> ()
    %cst_24 = arith.constant dense<0.000000e+00> : vector<2x8x8xf32>
    %41 = tpu.matmul %36, %38, %cst_24 {dimension_numbers = #tpu.dot_dimension_numbers<[2], [2], [1], [1], [0, 0, 0, 1, 1, 1], [0], [0]>} : vector<2x8x16xbf16>, vector<2x8x16xbf16>, vector<2x8x8xf32> -> vector<2x8x8xf32>
    "tpu.trace_stop"() : () -> ()
    %cst_25 = arith.constant dense<0xFF800000> : vector<2x8xf32>
    %42 = vector.multi_reduction <maximumf>, %41, %cst_25 [2] : vector<2x8x8xf32> to vector<2x8xf32>
    %43 = vector.shape_cast %42 : vector<2x8xf32> to vector<2x8x1xf32>
    %44 = vector.broadcast %43 : vector<2x8x1xf32> to vector<2x8x8xf32>
    %45 = arith.subf %41, %44 : vector<2x8x8xf32>
    %46 = math.exp %45 : vector<2x8x8xf32>
    %cst_26 = arith.constant dense<0.000000e+00> : vector<2x8xf32>
    %47 = vector.multi_reduction <add>, %46, %cst_26 [2] : vector<2x8x8xf32> to vector<2x8xf32>
    %48 = vector.shape_cast %47 : vector<2x8xf32> to vector<2x8x1xf32>
    %49 = tpu.reciprocal %48 {approx = true} : vector<2x8x1xf32> -> vector<2x8x1xf32>
    %50 = vector.broadcast %49 : vector<2x8x1xf32> to vector<2x8x8xf32>
    %51 = arith.mulf %46, %50 : vector<2x8x8xf32>
    %52 = arith.truncf %51 : vector<2x8x8xf32> to vector<2x8x8xbf16>
    %53 = vector.shape_cast %52 : vector<2x8x8xbf16> to vector<2x1x8x8xbf16>
    %c0_27 = arith.constant 0 : index
    %c0_28 = arith.constant 0 : index
    %c0_29 = arith.constant 0 : index
    %c0_30 = arith.constant 0 : index
    %54 = vector.load %arg13[%c0_27, %c0_28, %c0_29, %c0_30] : memref<2x1x8x8xbf16, #tpu.memory_space<vmem>>, vector<2x1x8x8xbf16>
    tpu.vector_store %arg13[%c0_27, %c0_28, %c0_29, %c0_30], %53 {strides = array<i32>} : memref<2x1x8x8xbf16, #tpu.memory_space<vmem>>, vector<2x1x8x8xbf16>,
    "tpu.trace_start"() <{level = 10 : i32, message = "hqk,hkd->hqd"}> : () -> ()
    %cst_31 = arith.constant dense<0.000000e+00> : vector<2x8x16xf32>
    %55 = tpu.matmul %52, %40, %cst_31 {dimension_numbers = #tpu.dot_dimension_numbers<[2], [1], [1], [2], [0, 0, 0, 1, 1, 2], [0], [0]>} : vector<2x8x8xbf16>, vector<2x8x16xbf16>, vector<2x8x16xf32> -> vector<2x8x16xf32>
    "tpu.trace_stop"() : () -> ()
    %56 = tpu.transpose %55, [1, 0, 2] : vector<2x8x16xf32> -> vector<8x2x16xf32>
    %57 = vector.shape_cast %56 : vector<8x2x16xf32> to vector<8x32xf32>
    %58 = arith.truncf %57 : vector<8x32xf32> to vector<8x32xbf16>
    %c0_32 = arith.constant 0 : index
    %c0_33 = arith.constant 0 : index
    %59 = vector.load %arg10[%c0_32, %c0_33] : memref<32x32xbf16, #tpu.memory_space<vmem>>, vector<32x32xbf16>
    %cst_34 = arith.constant dense<0.000000e+00> : vector<8x32xf32>
    %60 = tpu.matmul %58, %59, %cst_34 {dimension_numbers = #tpu.dot_dimension_numbers<[1], [0], [0], [1], [0, 0, 1, 1], [], []>} : vector<8x32xbf16>, vector<32x32xbf16>, vector<8x32xf32> -> vector<8x32xf32>
    %c0_35 = arith.constant 0 : index
    %c0_36 = arith.constant 0 : index
    %61 = vector.load %arg11[%c0_35, %c0_36] : memref<1x32xf32, #tpu.memory_space<vmem>>, vector<1x32xf32>
    %62 = vector.broadcast %61 : vector<1x32xf32> to vector<8x32xf32>
    %63 = arith.addf %60, %62 : vector<8x32xf32>
    %64 = arith.addf %63, %1 : vector<8x32xf32>
    %cst_37 = arith.constant dense<0.000000e+00> : vector<8xf32>
    %65 = vector.multi_reduction <add>, %64, %cst_37 [1] : vector<8x32xf32> to vector<8xf32>
    %66 = vector.shape_cast %65 : vector<8xf32> to vector<8x1xf32>
    %cst_38 = arith.constant 3.200000e+01 : f32
    %67 = vector.broadcast %cst_38 : f32 to vector<8x1xf32>
    %68 = arith.divf %66, %67 : vector<8x1xf32>
    %69 = vector.broadcast %68 : vector<8x1xf32> to vector<8x32xf32>
    %70 = arith.subf %64, %69 : vector<8x32xf32>
    %71 = arith.mulf %70, %70 : vector<8x32xf32>
    %cst_39 = arith.constant dense<0.000000e+00> : vector<8xf32>
    %72 = vector.multi_reduction <add>, %71, %cst_39 [1] : vector<8x32xf32> to vector<8xf32>
    %73 = vector.shape_cast %72 : vector<8xf32> to vector<8x1xf32>
    %cst_40 = arith.constant 3.200000e+01 : f32
    %74 = vector.broadcast %cst_40 : f32 to vector<8x1xf32>
    %75 = arith.divf %73, %74 : vector<8x1xf32>
    %76 = vector.broadcast %68 : vector<8x1xf32> to vector<8x32xf32>
    %77 = arith.subf %64, %76 : vector<8x32xf32>
    %cst_41 = arith.constant 9.99999974E-6 : f32
    %78 = vector.broadcast %cst_41 : f32 to vector<8x1xf32>
    %79 = arith.addf %75, %78 : vector<8x1xf32>
    %80 = math.rsqrt %79 : vector<8x1xf32>
    %81 = vector.broadcast %80 : vector<8x1xf32> to vector<8x32xf32>
    %82 = arith.mulf %77, %81 : vector<8x32xf32>
    %83 = vector.broadcast %2 : vector<1x32xf32> to vector<8x32xf32>
    %84 = arith.mulf %82, %83 : vector<8x32xf32>
    %85 = vector.broadcast %3 : vector<1x32xf32> to vector<8x32xf32>
    %86 = arith.addf %84, %85 : vector<8x32xf32>
    %c0_42 = arith.constant 0 : index
    %c0_43 = arith.constant 0 : index
    %c0_44 = arith.constant 0 : index
    %87 = vector.load %arg3[%c0_42, %c0_43, %c0_44] : memref<1x8x1xf32, #tpu.memory_space<vmem>>, vector<1x8x1xf32>
    %88 = vector.shape_cast %87 : vector<1x8x1xf32> to vector<8x1xf32>
    %89 = vector.broadcast %88 : vector<8x1xf32> to vector<8x32xf32>
    %90 = arith.mulf %86, %89 : vector<8x32xf32>
    %c0_45 = arith.constant 0 : index
    %c0_46 = arith.constant 0 : index
    %c0_47 = arith.constant 0 : index
    %91 = vector.load %arg12[%c0_45, %c0_46, %c0_47] : memref<1x8x32xf32, #tpu.memory_space<vmem>>, vector<1x8x32xf32>
    %92 = vector.shape_cast %91 : vector<1x8x32xf32> to vector<8x32xf32>
    %93 = vector.shape_cast %90 : vector<8x32xf32> to vector<1x8x32xf32>
    tpu.vector_store %arg12[%c0_45, %c0_46, %c0_47], %93 {strides = array<i32>} : memref<1x8x32xf32, #tpu.memory_space<vmem>>, vector<1x8x32xf32>,
    return
  }
  func.func @transform_0(%arg0: i32, %arg1: i32) -> (i32, i32, i32) {
    %c0_i32 = arith.constant 0 : i32
    %c0_i32_0 = arith.constant 0 : i32
    return %arg0, %arg1, %c0_i32 : i32, i32, i32
  }
  func.func @transform_1(%arg0: i32, %arg1: i32) -> (i32, i32, i32) {
    %c0_i32 = arith.constant 0 : i32
    %c0_i32_0 = arith.constant 0 : i32
    return %arg0, %arg1, %c0_i32 : i32, i32, i32
  }
  func.func @transform_2(%arg0: i32, %arg1: i32) -> (i32, i32, i32, i32) {
    %c0_i32 = arith.constant 0 : i32
    %c0_i32_0 = arith.constant 0 : i32
    %c0_i32_1 = arith.constant 0 : i32
    %c0_i32_2 = arith.constant 0 : i32
    return %arg0, %c0_i32, %c0_i32_0, %c0_i32_1 : i32, i32, i32, i32
  }
  func.func @transform_3(%arg0: i32, %arg1: i32) -> (i32, i32, i32, i32) {
    %c0_i32 = arith.constant 0 : i32
    %c0_i32_0 = arith.constant 0 : i32
    %c0_i32_1 = arith.constant 0 : i32
    %c0_i32_2 = arith.constant 0 : i32
    return %arg0, %c0_i32, %c0_i32_0, %c0_i32_1 : i32, i32, i32, i32
  }
  func.func @transform_4(%arg0: i32, %arg1: i32) -> (i32, i32) {
    %c0_i32 = arith.constant 0 : i32
    %c0_i32_0 = arith.constant 0 : i32
    %c0_i32_1 = arith.constant 0 : i32
    return %c0_i32, %c0_i32_0 : i32, i32
  }
  func.func @transform_5(%arg0: i32, %arg1: i32) -> (i32, i32) {
    %c0_i32 = arith.constant 0 : i32
    %c0_i32_0 = arith.constant 0 : i32
    %c0_i32_1 = arith.constant 0 : i32
    return %c0_i32, %c0_i32_0 : i32, i32
  }
  func.func @transform_6(%arg0: i32, %arg1: i32) -> (i32, i32) {
    %c0_i32 = arith.constant 0 : i32
    %c0_i32_0 = arith.constant 0 : i32
    %c0_i32_1 = arith.constant 0 : i32
    return %c0_i32, %c0_i32_0 : i32, i32
  }
  func.func @transform_7(%arg0: i32, %arg1: i32) -> (i32, i32) {
    %c0_i32 = arith.constant 0 : i32
    %c0_i32_0 = arith.constant 0 : i32
    %c0_i32_1 = arith.constant 0 : i32
    return %c0_i32, %c0_i32_0 : i32, i32
  }
  func.func @transform_8(%arg0: i32, %arg1: i32) -> (i32, i32) {
    %c0_i32 = arith.constant 0 : i32
    %c0_i32_0 = arith.constant 0 : i32
    %c0_i32_1 = arith.constant 0 : i32
    return %c0_i32, %c0_i32_0 : i32, i32
  }
  func.func @transform_9(%arg0: i32, %arg1: i32) -> (i32, i32) {
    %c0_i32 = arith.constant 0 : i32
    %c0_i32_0 = arith.constant 0 : i32
    %c0_i32_1 = arith.constant 0 : i32
    return %c0_i32, %c0_i32_0 : i32, i32
  }
  func.func @transform_10(%arg0: i32, %arg1: i32) -> (i32, i32, i32) {
    %c0_i32 = arith.constant 0 : i32
    %c0_i32_0 = arith.constant 0 : i32
    return %arg0, %arg1, %c0_i32 : i32, i32, i32
  }
  func.func @transform_11(%arg0: i32, %arg1: i32) -> (i32, i32, i32, i32) {
    %c0_i32 = arith.constant 0 : i32
    %c0_i32_0 = arith.constant 0 : i32
    %c0_i32_1 = arith.constant 0 : i32
    return %c0_i32, %arg0, %arg1, %c0_i32_0 : i32, i32, i32, i32
  }
}

module attributes {stable_mosaic.version = 11 : i64} {
  func.func @_mha_kernel(%arg0: i32, %arg1: i32, %arg2: memref<1x8x32xf32, #tpu.memory_space<vmem>>, %arg3: memref<1x8x1xf32, #tpu.memory_space<vmem>>, %arg4: memref<1x2x8x16xbf16, #tpu.memory_space<vmem>>, %arg5: memref<1x2x8x16xbf16, #tpu.memory_space<vmem>>, %arg6: memref<1x32xf32, #tpu.memory_space<vmem>>, %arg7: memref<1x32xf32, #tpu.memory_space<vmem>>, %arg8: memref<32x32xbf16, #tpu.memory_space<vmem>>, %arg9: memref<1x32xf32, #tpu.memory_space<vmem>>, %arg10: memref<32x32xbf16, #tpu.memory_space<vmem>>, %arg11: memref<1x32xf32, #tpu.memory_space<vmem>>, %arg12: memref<1x8x32xf32, #tpu.memory_space<vmem>>, %arg13: memref<2x1x8x8xbf16, #tpu.memory_space<vmem>>) attributes {dimension_semantics = [#tpu.dimension_semantics<parallel>, #tpu.dimension_semantics<parallel>], iteration_bounds = array<i64: 2, 1>, scalar_prefetch = 0 : i64, scratch_operands = 0 : i64, tpu.core_type = #tpu.core_type<tc>, window_params = [{transform_indices = @transform_0, window_bounds = array<i64: 1, 8, 32>}, {transform_indices = @transform_1, window_bounds = array<i64: 1, 8, 1>}, {transform_indices = @transform_2, window_bounds = array<i64: 1, 2, 8, 16>}, {transform_indices = @transform_3, window_bounds = array<i64: 1, 2, 8, 16>}, {pipeline_mode = #tpu.pipeline_mode<synchronous>, transform_indices = @transform_4, window_bounds = array<i64: 1, 32>}, {pipeline_mode = #tpu.pipeline_mode<synchronous>, transform_indices = @transform_5, window_bounds = array<i64: 1, 32>}, {pipeline_mode = #tpu.pipeline_mode<synchronous>, transform_indices = @transform_6, window_bounds = array<i64: 32, 32>}, {pipeline_mode = #tpu.pipeline_mode<synchronous>, transform_indices = @transform_7, window_bounds = array<i64: 1, 32>}, {pipeline_mode = #tpu.pipeline_mode<synchronous>, transform_indices = @transform_8, window_bounds = array<i64: 32, 32>}, {pipeline_mode = #tpu.pipeline_mode<synchronous>, transform_indices = @transform_9, window_bounds = array<i64: 1, 32>}, {transform_indices = @transform_10, window_bounds = array<i64: 1, 8, 32>}, {transform_indices = @transform_11, window_bounds = array<i64: 2, 1, 8, 8>}]} {
    %c0 = arith.constant 0 : index
    %c0_0 = arith.constant 0 : index
    %c0_1 = arith.constant 0 : index
    %0 = vector.load %arg2[%c0, %c0_0, %c0_1] : memref<1x8x32xf32, #tpu.memory_space<vmem>>, vector<1x8x32xf32>
    %1 = vector.shape_cast %0 : vector<1x8x32xf32> to vector<8x32xf32>
    %c0_2 = arith.constant 0 : index
    %c0_3 = arith.constant 0 : index
    %2 = vector.load %arg6[%c0_2, %c0_3] : memref<1x32xf32, #tpu.memory_space<vmem>>, vector<1x32xf32>
    %c0_4 = arith.constant 0 : index
    %c0_5 = arith.constant 0 : index
    %3 = vector.load %arg7[%c0_4, %c0_5] : memref<1x32xf32, #tpu.memory_space<vmem>>, vector<1x32xf32>
    %cst = arith.constant dense<0.000000e+00> : vector<8xf32>
    %4 = vector.multi_reduction <add>, %1, %cst [1] : vector<8x32xf32> to vector<8xf32>
    %5 = vector.shape_cast %4 : vector<8xf32> to vector<8x1xf32>
    %cst_6 = arith.constant 3.200000e+01 : f32
    %6 = vector.broadcast %cst_6 : f32 to vector<8x1xf32>
    %7 = arith.divf %5, %6 : vector<8x1xf32>
    %8 = vector.broadcast %7 : vector<8x1xf32> to vector<8x32xf32>
    %9 = arith.subf %1, %8 : vector<8x32xf32>
    %10 = arith.mulf %9, %9 : vector<8x32xf32>
    %cst_7 = arith.constant dense<0.000000e+00> : vector<8xf32>
    %11 = vector.multi_reduction <add>, %10, %cst_7 [1] : vector<8x32xf32> to vector<8xf32>
    %12 = vector.shape_cast %11 : vector<8xf32> to vector<8x1xf32>
    %cst_8 = arith.constant 3.200000e+01 : f32
    %13 = vector.broadcast %cst_8 : f32 to vector<8x1xf32>
    %14 = arith.divf %12, %13 : vector<8x1xf32>
    %15 = vector.broadcast %7 : vector<8x1xf32> to vector<8x32xf32>
    %16 = arith.subf %1, %15 : vector<8x32xf32>
    %cst_9 = arith.constant 9.99999974E-6 : f32
    %17 = vector.broadcast %cst_9 : f32 to vector<8x1xf32>
    %18 = arith.addf %14, %17 : vector<8x1xf32>
    %19 = math.rsqrt %18 : vector<8x1xf32>
    %20 = vector.broadcast %19 : vector<8x1xf32> to vector<8x32xf32>
    %21 = arith.mulf %16, %20 : vector<8x32xf32>
    %22 = vector.broadcast %2 : vector<1x32xf32> to vector<8x32xf32>
    %23 = arith.mulf %21, %22 : vector<8x32xf32>
    %24 = vector.broadcast %3 : vector<1x32xf32> to vector<8x32xf32>
    %25 = arith.addf %23, %24 : vector<8x32xf32>
    %26 = arith.truncf %25 : vector<8x32xf32> to vector<8x32xbf16>
    %c0_10 = arith.constant 0 : index
    %c0_11 = arith.constant 0 : index
    %27 = vector.load %arg8[%c0_10, %c0_11] : memref<32x32xbf16, #tpu.memory_space<vmem>>, vector<32x32xbf16>
    %cst_12 = arith.constant dense<0.000000e+00> : vector<8x32xf32>
    %28 = tpu.matmul %26, %27, %cst_12 {dimension_numbers = #tpu.dot_dimension_numbers<[1], [0], [0], [1], [0, 0, 1, 1], [], []>} : vector<8x32xbf16>, vector<32x32xbf16>, vector<8x32xf32> -> vector<8x32xf32>
    %c0_13 = arith.constant 0 : index
    %c0_14 = arith.constant 0 : index
    %29 = vector.load %arg9[%c0_13, %c0_14] : memref<1x32xf32, #tpu.memory_space<vmem>>, vector<1x32xf32>
    %30 = vector.broadcast %29 : vector<1x32xf32> to vector<8x32xf32>
    %31 = arith.addf %28, %30 : vector<8x32xf32>
    %cst_15 = arith.constant 2.500000e-01 : f32
    %32 = vector.broadcast %cst_15 : f32 to vector<8x32xf32>
    %33 = arith.mulf %31, %32 : vector<8x32xf32>
    %34 = vector.shape_cast %33 : vector<8x32xf32> to vector<8x2x16xf32>
    %35 = tpu.transpose %34, [1, 0, 2] : vector<8x2x16xf32> -> vector<2x8x16xf32>
    %36 = arith.truncf %35 : vector<2x8x16xf32> to vector<2x8x16xbf16>
    %c0_16 = arith.constant 0 : index
    %c0_17 = arith.constant 0 : index
    %c0_18 = arith.constant 0 : index
    %c0_19 = arith.constant 0 : index
    %37 = vector.load %arg4[%c0_16, %c0_17, %c0_18, %c0_19] : memref<1x2x8x16xbf16, #tpu.memory_space<vmem>>, vector<1x2x8x16xbf16>
    %38 = vector.shape_cast %37 : vector<1x2x8x16xbf16> to vector<2x8x16xbf16>
    %c0_20 = arith.constant 0 : index
    %c0_21 = arith.constant 0 : index
    %c0_22 = arith.constant 0 : index
    %c0_23 = arith.constant 0 : index
    %39 = vector.load %arg5[%c0_20, %c0_21, %c0_22, %c0_23] : memref<1x2x8x16xbf16, #tpu.memory_space<vmem>>, vector<1x2x8x16xbf16>
    %40 = vector.shape_cast %39 : vector<1x2x8x16xbf16> to vector<2x8x16xbf16>
    "tpu.trace_start"() <{level = 10 : i32, message = "hqd,hkd->hqk"}> : () -> ()
    %cst_24 = arith.constant dense<0.000000e+00> : vector<2x8x8xf32>
    %41 = tpu.matmul %36, %38, %cst_24 {dimension_numbers = #tpu.dot_dimension_numbers<[2], [2], [1], [1], [0, 0, 0, 1, 1, 1], [0], [0]>} : vector<2x8x16xbf16>, vector<2x8x16xbf16>, vector<2x8x8xf32> -> vector<2x8x8xf32>
    "tpu.trace_stop"() : () -> ()
    %cst_25 = arith.constant dense<0xFF800000> : vector<2x8xf32>
    %42 = vector.multi_reduction <maximumf>, %41, %cst_25 [2] : vector<2x8x8xf32> to vector<2x8xf32>
    %43 = vector.shape_cast %42 : vector<2x8xf32> to vector<2x8x1xf32>
    %44 = vector.broadcast %43 : vector<2x8x1xf32> to vector<2x8x8xf32>
    %45 = arith.subf %41, %44 : vector<2x8x8xf32>
    %46 = math.exp %45 : vector<2x8x8xf32>
    %cst_26 = arith.constant dense<0.000000e+00> : vector<2x8xf32>
    %47 = vector.multi_reduction <add>, %46, %cst_26 [2] : vector<2x8x8xf32> to vector<2x8xf32>
    %48 = vector.shape_cast %47 : vector<2x8xf32> to vector<2x8x1xf32>
    %49 = tpu.reciprocal %48 {approx = true} : vector<2x8x1xf32> -> vector<2x8x1xf32>
    %50 = vector.broadcast %49 : vector<2x8x1xf32> to vector<2x8x8xf32>
    %51 = arith.mulf %46, %50 : vector<2x8x8xf32>
    %52 = arith.truncf %51 : vector<2x8x8xf32> to vector<2x8x8xbf16>
    %53 = vector.shape_cast %52 : vector<2x8x8xbf16> to vector<2x1x8x8xbf16>
    %c0_27 = arith.constant 0 : index
    %c0_28 = arith.constant 0 : index
    %c0_29 = arith.constant 0 : index
    %c0_30 = arith.constant 0 : index
    %54 = vector.load %arg13[%c0_27, %c0_28, %c0_29, %c0_30] : memref<2x1x8x8xbf16, #tpu.memory_space<vmem>>, vector<2x1x8x8xbf16>
    tpu.vector_store %arg13[%c0_27, %c0_28, %c0_29, %c0_30], %53 {strides = array<i32>} : memref<2x1x8x8xbf16, #tpu.memory_space<vmem>>, vector<2x1x8x8xbf16>,
    "tpu.trace_start"() <{level = 10 : i32, message = "hqk,hkd->hqd"}> : () -> ()
    %cst_31 = arith.constant dense<0.000000e+00> : vector<2x8x16xf32>
    %55 = tpu.matmul %52, %40, %cst_31 {dimension_numbers = #tpu.dot_dimension_numbers<[2], [1], [1], [2], [0, 0, 0, 1, 1, 2], [0], [0]>} : vector<2x8x8xbf16>, vector<2x8x16xbf16>, vector<2x8x16xf32> -> vector<2x8x16xf32>
    "tpu.trace_stop"() : () -> ()
    %56 = tpu.transpose %55, [1, 0, 2] : vector<2x8x16xf32> -> vector<8x2x16xf32>
    %57 = vector.shape_cast %56 : vector<8x2x16xf32> to vector<8x32xf32>
    %58 = arith.truncf %57 : vector<8x32xf32> to vector<8x32xbf16>
    %c0_32 = arith.constant 0 : index
    %c0_33 = arith.constant 0 : index
    %59 = vector.load %arg10[%c0_32, %c0_33] : memref<32x32xbf16, #tpu.memory_space<vmem>>, vector<32x32xbf16>
    %cst_34 = arith.constant dense<0.000000e+00> : vector<8x32xf32>
    %60 = tpu.matmul %58, %59, %cst_34 {dimension_numbers = #tpu.dot_dimension_numbers<[1], [0], [0], [1], [0, 0, 1, 1], [], []>} : vector<8x32xbf16>, vector<32x32xbf16>, vector<8x32xf32> -> vector<8x32xf32>
    %c0_35 = arith.constant 0 : index
    %c0_36 = arith.constant 0 : index
    %61 = vector.load %arg11[%c0_35, %c0_36] : memref<1x32xf32, #tpu.memory_space<vmem>>, vector<1x32xf32>
    %62 = vector.broadcast %61 : vector<1x32xf32> to vector<8x32xf32>
    %63 = arith.addf %60, %62 : vector<8x32xf32>
    %64 = arith.addf %63, %1 : vector<8x32xf32>
    %cst_37 = arith.constant dense<0.000000e+00> : vector<8xf32>
    %65 = vector.multi_reduction <add>, %64, %cst_37 [1] : vector<8x32xf32> to vector<8xf32>
    %66 = vector.shape_cast %65 : vector<8xf32> to vector<8x1xf32>
    %cst_38 = arith.constant 3.200000e+01 : f32
    %67 = vector.broadcast %cst_38 : f32 to vector<8x1xf32>
    %68 = arith.divf %66, %67 : vector<8x1xf32>
    %69 = vector.broadcast %68 : vector<8x1xf32> to vector<8x32xf32>
    %70 = arith.subf %64, %69 : vector<8x32xf32>
    %71 = arith.mulf %70, %70 : vector<8x32xf32>
    %cst_39 = arith.constant dense<0.000000e+00> : vector<8xf32>
    %72 = vector.multi_reduction <add>, %71, %cst_39 [1] : vector<8x32xf32> to vector<8xf32>
    %73 = vector.shape_cast %72 : vector<8xf32> to vector<8x1xf32>
    %cst_40 = arith.constant 3.200000e+01 : f32
    %74 = vector.broadcast %cst_40 : f32 to vector<8x1xf32>
    %75 = arith.divf %73, %74 : vector<8x1xf32>
    %76 = vector.broadcast %68 : vector<8x1xf32> to vector<8x32xf32>
    %77 = arith.subf %64, %76 : vector<8x32xf32>
    %cst_41 = arith.constant 9.99999974E-6 : f32
    %78 = vector.broadcast %cst_41 : f32 to vector<8x1xf32>
    %79 = arith.addf %75, %78 : vector<8x1xf32>
    %80 = math.rsqrt %79 : vector<8x1xf32>
    %81 = vector.broadcast %80 : vector<8x1xf32> to vector<8x32xf32>
    %82 = arith.mulf %77, %81 : vector<8x32xf32>
    %83 = vector.broadcast %2 : vector<1x32xf32> to vector<8x32xf32>
    %84 = arith.mulf %82, %83 : vector<8x32xf32>
    %85 = vector.broadcast %3 : vector<1x32xf32> to vector<8x32xf32>
    %86 = arith.addf %84, %85 : vector<8x32xf32>
    %c0_42 = arith.constant 0 : index
    %c0_43 = arith.constant 0 : index
    %c0_44 = arith.constant 0 : index
    %87 = vector.load %arg3[%c0_42, %c0_43, %c0_44] : memref<1x8x1xf32, #tpu.memory_space<vmem>>, vector<1x8x1xf32>
    %88 = vector.shape_cast %87 : vector<1x8x1xf32> to vector<8x1xf32>
    %89 = vector.broadcast %88 : vector<8x1xf32> to vector<8x32xf32>
    %90 = arith.mulf %86, %89 : vector<8x32xf32>
    %c0_45 = arith.constant 0 : index
    %c0_46 = arith.constant 0 : index
    %c0_47 = arith.constant 0 : index
    %91 = vector.load %arg12[%c0_45, %c0_46, %c0_47] : memref<1x8x32xf32, #tpu.memory_space<vmem>>, vector<1x8x32xf32>
    %92 = vector.shape_cast %91 : vector<1x8x32xf32> to vector<8x32xf32>
    %93 = vector.shape_cast %90 : vector<8x32xf32> to vector<1x8x32xf32>
    tpu.vector_store %arg12[%c0_45, %c0_46, %c0_47], %93 {strides = array<i32>} : memref<1x8x32xf32, #tpu.memory_space<vmem>>, vector<1x8x32xf32>,
    return
  }
  func.func @transform_0(%arg0: i32, %arg1: i32) -> (i32, i32, i32) {
    %c0_i32 = arith.constant 0 : i32
    %c0_i32_0 = arith.constant 0 : i32
    return %arg0, %arg1, %c0_i32 : i32, i32, i32
  }
  func.func @transform_1(%arg0: i32, %arg1: i32) -> (i32, i32, i32) {
    %c0_i32 = arith.constant 0 : i32
    %c0_i32_0 = arith.constant 0 : i32
    return %arg0, %arg1, %c0_i32 : i32, i32, i32
  }
  func.func @transform_2(%arg0: i32, %arg1: i32) -> (i32, i32, i32, i32) {
    %c0_i32 = arith.constant 0 : i32
    %c0_i32_0 = arith.constant 0 : i32
    %c0_i32_1 = arith.constant 0 : i32
    %c0_i32_2 = arith.constant 0 : i32
    return %arg0, %c0_i32, %c0_i32_0, %c0_i32_1 : i32, i32, i32, i32
  }
  func.func @transform_3(%arg0: i32, %arg1: i32) -> (i32, i32, i32, i32) {
    %c0_i32 = arith.constant 0 : i32
    %c0_i32_0 = arith.constant 0 : i32
    %c0_i32_1 = arith.constant 0 : i32
    %c0_i32_2 = arith.constant 0 : i32
    return %arg0, %c0_i32, %c0_i32_0, %c0_i32_1 : i32, i32, i32, i32
  }
  func.func @transform_4(%arg0: i32, %arg1: i32) -> (i32, i32) {
    %c0_i32 = arith.constant 0 : i32
    %c0_i32_0 = arith.constant 0 : i32
    %c0_i32_1 = arith.constant 0 : i32
    return %c0_i32, %c0_i32_0 : i32, i32
  }
  func.func @transform_5(%arg0: i32, %arg1: i32) -> (i32, i32) {
    %c0_i32 = arith.constant 0 : i32
    %c0_i32_0 = arith.constant 0 : i32
    %c0_i32_1 = arith.constant 0 : i32
    return %c0_i32, %c0_i32_0 : i32, i32
  }
  func.func @transform_6(%arg0: i32, %arg1: i32) -> (i32, i32) {
    %c0_i32 = arith.constant 0 : i32
    %c0_i32_0 = arith.constant 0 : i32
    %c0_i32_1 = arith.constant 0 : i32
    return %c0_i32, %c0_i32_0 : i32, i32
  }
  func.func @transform_7(%arg0: i32, %arg1: i32) -> (i32, i32) {
    %c0_i32 = arith.constant 0 : i32
    %c0_i32_0 = arith.constant 0 : i32
    %c0_i32_1 = arith.constant 0 : i32
    return %c0_i32, %c0_i32_0 : i32, i32
  }
  func.func @transform_8(%arg0: i32, %arg1: i32) -> (i32, i32) {
    %c0_i32 = arith.constant 0 : i32
    %c0_i32_0 = arith.constant 0 : i32
    %c0_i32_1 = arith.constant 0 : i32
    return %c0_i32, %c0_i32_0 : i32, i32
  }
  func.func @transform_9(%arg0: i32, %arg1: i32) -> (i32, i32) {
    %c0_i32 = arith.constant 0 : i32
    %c0_i32_0 = arith.constant 0 : i32
    %c0_i32_1 = arith.constant 0 : i32
    return %c0_i32, %c0_i32_0 : i32, i32
  }
  func.func @transform_10(%arg0: i32, %arg1: i32) -> (i32, i32, i32) {
    %c0_i32 = arith.constant 0 : i32
    %c0_i32_0 = arith.constant 0 : i32
    return %arg0, %arg1, %c0_i32 : i32, i32, i32
  }
  func.func @transform_11(%arg0: i32, %arg1: i32) -> (i32, i32, i32, i32) {
    %c0_i32 = arith.constant 0 : i32
    %c0_i32_0 = arith.constant 0 : i32
    %c0_i32_1 = arith.constant 0 : i32
    return %c0_i32, %arg0, %arg1, %c0_i32_0 : i32, i32, i32, i32
  }
}

</mosaic_0001>

<llo_original>
// kernel: tpu_custom_call.1
$region0: #{tpu_custom_call.1}
  #allocation0 [shape = 'u32[]', space=smem, size = 0x4, offset = 0x4, fixed_abs, tag = 'smem constant byte address 0x4 - core index']
  #allocation1 [shape = 'u32[144,128]{1,0:T(1,128)}', space=vmem, size = 0x12000, scoped, tag = 'internal scratch']
  %s0 = inlined_call_operand.vmem [shape: f32[2,8,32], index: 0, kind: input, shape index: {}]
  %s1 = inlined_call_operand.vmem [shape: f32[2,8,1], index: 1, kind: input, shape index: {}]
  %s2 = inlined_call_operand.hbm [shape: bf16[2,2,8,16], index: 2, kind: input, shape index: {}]
  %s3 = inlined_call_operand.hbm [shape: bf16[2,2,8,16], index: 3, kind: input, shape index: {}]
  %s4 = inlined_call_operand.hbm [shape: f32[1,32], index: 4, kind: input, shape index: {}]
  %s5 = inlined_call_operand.hbm [shape: f32[1,32], index: 5, kind: input, shape index: {}]
  %s6 = inlined_call_operand.hbm [shape: bf16[32,32], index: 6, kind: input, shape index: {}]
  %s7 = inlined_call_operand.hbm [shape: f32[1,32], index: 7, kind: input, shape index: {}]
  %s8 = inlined_call_operand.vmem [shape: bf16[32,32], index: 8, kind: input, shape index: {}]
  %s9 = inlined_call_operand.vmem [shape: f32[1,32], index: 9, kind: input, shape index: {}]
  %s10 = inlined_call_operand.hbm [shape: f32[2,8,32], index: 10, kind: output, shape index: {0}]
  %s11 = inlined_call_operand.hbm [shape: bf16[2,2,8,8], index: 11, kind: output, shape index: {1}]
  %12 = xla_tuple %s10, %s11
  %s13 = sld [smem:[#allocation0]]
  $region105: #{tpu_custom_call.1} parent=0
    _
  %s15 = ssub.s32 1, %s13
  %s16 = scalar_select 0, %s15, %s13
  $region1: #{tpu_custom_call.1} parent=0
    #allocation2 [shape = 'u8[8192]{0}', space=vmem, size = 0x2000, scoped, tag = 'input window, operand 2']
    #allocation3 [shape = 's32[2]{0}', space=sflag, size = 0x8, scoped, tag = 'scoped memory for tpu_custom_call.1']
    #allocation4 [shape = 's32[2]{0}', space=sflag, size = 0x8, scoped, tag = 'scoped memory for tpu_custom_call.1']
    #allocation5 [shape = 'u8[8192]{0}', space=vmem, size = 0x2000, scoped, tag = 'input window, operand 3']
    #allocation6 [shape = 's32[2]{0}', space=sflag, size = 0x8, scoped, tag = 'scoped memory for tpu_custom_call.1']
    #allocation7 [shape = 'u8[512]{0}', space=vmem, size = 0x400, scoped, tag = 'input window, operand 4, single buffered']
    #allocation8 [shape = 'u8[512]{0}', space=vmem, size = 0x400, scoped, tag = 'input window, operand 5, single buffered']
    #allocation9 [shape = 's32[1]{0}', space=sflag, size = 0x4, scoped, tag = 'scoped memory for tpu_custom_call.1']
    #allocation10 [shape = 'u8[8192]{0}', space=vmem, size = 0x2000, scoped, tag = 'input window, operand 6, single buffered']
    #allocation11 [shape = 'u8[512]{0}', space=vmem, size = 0x400, scoped, tag = 'input window, operand 7, single buffered']
    #allocation12 [shape = 's32[1]{0}', space=sflag, size = 0x4, scoped, tag = 'scoped memory for tpu_custom_call.1']
    #allocation13 [shape = 'u8[8192]{0}', space=vmem, size = 0x2000, scoped, tag = 'output window, operand 0']
    #allocation14 [shape = 'u8[8192]{0}', space=vmem, size = 0x2000, scoped, tag = 'output window, operand 1']
    #allocation15 [shape = 's32[2]{0}', space=sflag, size = 0x8, scoped, tag = 'scoped memory for tpu_custom_call.1']
    %17 = vsyncpa [#allocation3], 0
    %s18 = scalar_lea.sflag [#allocation3], 1
    %19 = vsyncpa %s18, 0
    %20 = vsyncpa [#allocation6], 0
    %s21 = scalar_lea.sflag [#allocation6], 1
    %22 = vsyncpa %s21, 0
    %23 = vsyncpa [#allocation9], 0
    %24 = vsyncpa [#allocation12], 0
    %25 = vsyncpa [#allocation4], 0
    %s26 = scalar_lea.sflag [#allocation4], 1
    %27 = vsyncpa %s26, 0
    %28 = vsyncpa [#allocation15], 0
    %s29 = scalar_lea.sflag [#allocation15], 1
    %30 = vsyncpa %s29, 0
    loop: start=0, step=1, limit=4
    $region2: #{tpu_custom_call.1} parent=1 // loop_pre_header
      _
    $region3: #{tpu_custom_call.1} parent=1 // loop_header
      %s32 = sphi 0, %s36
      %p33 = scmp.ge.s32.totalorder %s32, 4
      %s39 = sphi 0, %s51
      %s40 = sphi 0, %s47
      %s41 = sphi 0, %s39
      %s42 = sphi 0, %s40
      %s43 = sphi 0, %s41
      %s44 = sphi 0, %s42
      %s56 = sphi 0, %s58
      %s59 = sphi 0, %s56
      %s60 = sphi 0, %s59
      %s76 = sphi 0, %s60
      %s84 = sphi 0, %s86
      %s87 = sphi 0, %s84
      %s88 = sphi 0, %s87
      %s104 = sphi 0, %s88
      %s110 = sphi 0, %s112
      %s113 = sphi 0, %s110
      %s114 = sphi 0, %s113
      %s130 = sphi 0, %s114
      %s136 = sphi 0, %s138
      %s139 = sphi 0, %s136
      %s140 = sphi 0, %s139
      %s156 = sphi 0, %s140
      %s160 = sphi 0, %s160
      %s162 = sphi 0, %s160
      %s163 = sphi 0, %s162
      %s177 = sphi 0, %s163
      %s181 = sphi 0, %s181
      %s183 = sphi 0, %s181
      %s184 = sphi 0, %s183
      %s198 = sphi 0, %s184
      %s202 = sphi 0, %s202
      %s204 = sphi 0, %s202
      %s205 = sphi 0, %s204
      %s219 = sphi 0, %s205
      %s223 = sphi 0, %s223
      %s225 = sphi 0, %s223
      %s226 = sphi 0, %s225
      %s240 = sphi 0, %s226
      %s244 = sphi 0, %s244
      %s246 = sphi 0, %s244
      %s247 = sphi 0, %s246
      %s261 = sphi 0, %s247
      %s265 = sphi 0, %s265
      %s267 = sphi 0, %s265
      %s268 = sphi 0, %s267
      %s282 = sphi 0, %s268
      %s290 = sphi 0, %s292
      %s293 = sphi 0, %s290
      %s294 = sphi 0, %s293
      %s310 = sphi 0, %s294
      %s318 = sphi 0, %s320
      %s321 = sphi 0, %s318
      %s322 = sphi 0, %s321
      %s338 = sphi 0, %s322
    $region4: #{tpu_custom_call.1} parent=1 // loop_header_branch
      %35 = sbr.rel (%p33) target = $region8
    $region5: #{tpu_custom_call.1} parent=1 // loop_body
      %s37 = ssub.s32 %s32, 1
      %s38 = ssub.s32 %s32, 2
      %s45 = sadd.s32 1, %s40
      %p46 = scmp.ge.s32.totalorder %s45, 1
      %s47 = scalar_select %p46, 0, %s45
      %s48 = sadd.s32 1, %s39
      %s49 = scalar_select %p46, %s48, %s39
      %p50 = scmp.ge.s32.totalorder %s49, 2
      %s51 = scalar_select %p50, 0, %s49
      %s52 = ssub.s32 %s39, %s51
      %s53 = ssub.s32 %s40, %s47
      %s54 = sor.u32 %s52, %s53
      %p55 = scmp.eq.s32.totalorder %s54, 0
      %s57 = sadd.s32 %s56, 1
      %s58 = scalar_select %p55, %s56, %s57
      %p61 = pneg %p55
      %p62 = scmp.eq.s32.totalorder %s32, 1
      %p63 = por %p61, %p62
      %p64 = scmp.ne.s32.totalorder %s56, %s59
      %p65 = scmp.eq.s32.totalorder %s32, 0
      %p66 = por %p64, %p65
      %p67 = scmp.ne.s32.totalorder %s56, %s59
      %p68 = scmp.eq.s32.totalorder %s37, 1
      %p69 = por %p67, %p68
      %p70 = scmp.ne.s32.totalorder %s59, %s60
      %p71 = scmp.eq.s32.totalorder %s37, 0
      %p72 = por %p70, %p71
      %p73 = scmp.ne.s32.totalorder %s59, %s60
      %p74 = scmp.eq.s32.totalorder %s38, 1
      %p75 = por %p73, %p74
      %p77 = scmp.ne.s32.totalorder %s60, %s76
      %p78 = scmp.eq.s32.totalorder %s38, 0
      %p79 = por %p77, %p78
      %s80 = ssub.s32 %s39, %s51
      %s81 = ssub.s32 %s40, %s47
      %s82 = sor.u32 %s80, %s81
      %p83 = scmp.eq.s32.totalorder %s82, 0
      %s85 = sadd.s32 %s84, 1
      %s86 = scalar_select %p83, %s84, %s85
      %p89 = pneg %p83
      %p90 = scmp.eq.s32.totalorder %s32, 1
      %p91 = por %p89, %p90
      %p92 = scmp.ne.s32.totalorder %s84, %s87
      %p93 = scmp.eq.s32.totalorder %s32, 0
      %p94 = por %p92, %p93
      %p95 = scmp.ne.s32.totalorder %s84, %s87
      %p96 = scmp.eq.s32.totalorder %s37, 1
      %p97 = por %p95, %p96
      %p98 = scmp.ne.s32.totalorder %s87, %s88
      %p99 = scmp.eq.s32.totalorder %s37, 0
      %p100 = por %p98, %p99
      %p101 = scmp.ne.s32.totalorder %s87, %s88
      %p102 = scmp.eq.s32.totalorder %s38, 1
      %p103 = por %p101, %p102
      %p105 = scmp.ne.s32.totalorder %s88, %s104
      %p106 = scmp.eq.s32.totalorder %s38, 0
      %p107 = por %p105, %p106
      %s108 = ssub.s32 %s39, %s51
      %p109 = scmp.eq.s32.totalorder %s108, 0
      %s111 = sadd.s32 %s110, 1
      %s112 = scalar_select %p109, %s110, %s111
      %p115 = pneg %p109
      %p116 = scmp.eq.s32.totalorder %s32, 1
      %p117 = por %p115, %p116
      %p118 = scmp.ne.s32.totalorder %s110, %s113
      %p119 = scmp.eq.s32.totalorder %s32, 0
      %p120 = por %p118, %p119
      %p121 = scmp.ne.s32.totalorder %s110, %s113
      %p122 = scmp.eq.s32.totalorder %s37, 1
      %p123 = por %p121, %p122
      %p124 = scmp.ne.s32.totalorder %s113, %s114
      %p125 = scmp.eq.s32.totalorder %s37, 0
      %p126 = por %p124, %p125
      %p127 = scmp.ne.s32.totalorder %s113, %s114
      %p128 = scmp.eq.s32.totalorder %s38, 1
      %p129 = por %p127, %p128
      %p131 = scmp.ne.s32.totalorder %s114, %s130
      %p132 = scmp.eq.s32.totalorder %s38, 0
      %p133 = por %p131, %p132
      %s134 = ssub.s32 %s39, %s51
      %p135 = scmp.eq.s32.totalorder %s134, 0
      %s137 = sadd.s32 %s136, 1
      %s138 = scalar_select %p135, %s136, %s137
      %p141 = pneg %p135
      %p142 = scmp.eq.s32.totalorder %s32, 1
      %p143 = por %p141, %p142
      %p144 = scmp.ne.s32.totalorder %s136, %s139
      %p145 = scmp.eq.s32.totalorder %s32, 0
      %p146 = por %p144, %p145
      %p147 = scmp.ne.s32.totalorder %s136, %s139
      %p148 = scmp.eq.s32.totalorder %s37, 1
      %p149 = por %p147, %p148
      %p150 = scmp.ne.s32.totalorder %s139, %s140
      %p151 = scmp.eq.s32.totalorder %s37, 0
      %p152 = por %p150, %p151
      %p153 = scmp.ne.s32.totalorder %s139, %s140
      %p154 = scmp.eq.s32.totalorder %s38, 1
      %p155 = por %p153, %p154
      %p157 = scmp.ne.s32.totalorder %s140, %s156
      %p158 = scmp.eq.s32.totalorder %s38, 0
      %p159 = por %p157, %p158
      %s161 = sadd.s32 %s160, 1
      %p164 = scmp.eq.s32.totalorder %s32, 1
      %p165 = scmp.ne.s32.totalorder %s160, %s162
      %p166 = scmp.eq.s32.totalorder %s32, 0
      %p167 = por %p165, %p166
      %p168 = scmp.ne.s32.totalorder %s160, %s162
      %p169 = scmp.eq.s32.totalorder %s37, 1
      %p170 = por %p168, %p169
      %p171 = scmp.ne.s32.totalorder %s162, %s163
      %p172 = scmp.eq.s32.totalorder %s37, 0
      %p173 = por %p171, %p172
      %p174 = scmp.ne.s32.totalorder %s162, %s163
      %p175 = scmp.eq.s32.totalorder %s38, 1
      %p176 = por %p174, %p175
      %p178 = scmp.ne.s32.totalorder %s163, %s177
      %p179 = scmp.eq.s32.totalorder %s38, 0
      %p180 = por %p178, %p179
      %s182 = sadd.s32 %s181, 1
      %p185 = scmp.eq.s32.totalorder %s32, 1
      %p186 = scmp.ne.s32.totalorder %s181, %s183
      %p187 = scmp.eq.s32.totalorder %s32, 0
      %p188 = por %p186, %p187
      %p189 = scmp.ne.s32.totalorder %s181, %s183
      %p190 = scmp.eq.s32.totalorder %s37, 1
      %p191 = por %p189, %p190
      %p192 = scmp.ne.s32.totalorder %s183, %s184
      %p193 = scmp.eq.s32.totalorder %s37, 0
      %p194 = por %p192, %p193
      %p195 = scmp.ne.s32.totalorder %s183, %s184
      %p196 = scmp.eq.s32.totalorder %s38, 1
      %p197 = por %p195, %p196
      %p199 = scmp.ne.s32.totalorder %s184, %s198
      %p200 = scmp.eq.s32.totalorder %s38, 0
      %p201 = por %p199, %p200
      %s203 = sadd.s32 %s202, 1
      %p206 = scmp.eq.s32.totalorder %s32, 1
      %p207 = scmp.ne.s32.totalorder %s202, %s204
      %p208 = scmp.eq.s32.totalorder %s32, 0
      %p209 = por %p207, %p208
      %p210 = scmp.ne.s32.totalorder %s202, %s204
      %p211 = scmp.eq.s32.totalorder %s37, 1
      %p212 = por %p210, %p211
      %p213 = scmp.ne.s32.totalorder %s204, %s205
      %p214 = scmp.eq.s32.totalorder %s37, 0
      %p215 = por %p213, %p214
      %p216 = scmp.ne.s32.totalorder %s204, %s205
      %p217 = scmp.eq.s32.totalorder %s38, 1
      %p218 = por %p216, %p217
      %p220 = scmp.ne.s32.totalorder %s205, %s219
      %p221 = scmp.eq.s32.totalorder %s38, 0
      %p222 = por %p220, %p221
      %s224 = sadd.s32 %s223, 1
      %p227 = scmp.eq.s32.totalorder %s32, 1
      %p228 = scmp.ne.s32.totalorder %s223, %s225
      %p229 = scmp.eq.s32.totalorder %s32, 0
      %p230 = por %p228, %p229
      %p231 = scmp.ne.s32.totalorder %s223, %s225
      %p232 = scmp.eq.s32.totalorder %s37, 1
      %p233 = por %p231, %p232
      %p234 = scmp.ne.s32.totalorder %s225, %s226
      %p235 = scmp.eq.s32.totalorder %s37, 0
      %p236 = por %p234, %p235
      %p237 = scmp.ne.s32.totalorder %s225, %s226
      %p238 = scmp.eq.s32.totalorder %s38, 1
      %p239 = por %p237, %p238
      %p241 = scmp.ne.s32.totalorder %s226, %s240
      %p242 = scmp.eq.s32.totalorder %s38, 0
      %p243 = por %p241, %p242
      %s245 = sadd.s32 %s244, 1
      %p248 = scmp.eq.s32.totalorder %s32, 1
      %p249 = scmp.ne.s32.totalorder %s244, %s246
      %p250 = scmp.eq.s32.totalorder %s32, 0
      %p251 = por %p249, %p250
      %p252 = scmp.ne.s32.totalorder %s244, %s246
      %p253 = scmp.eq.s32.totalorder %s37, 1
      %p254 = por %p252, %p253
      %p255 = scmp.ne.s32.totalorder %s246, %s247
      %p256 = scmp.eq.s32.totalorder %s37, 0
      %p257 = por %p255, %p256
      %p258 = scmp.ne.s32.totalorder %s246, %s247
      %p259 = scmp.eq.s32.totalorder %s38, 1
      %p260 = por %p258, %p259
      %p262 = scmp.ne.s32.totalorder %s247, %s261
      %p263 = scmp.eq.s32.totalorder %s38, 0
      %p264 = por %p262, %p263
      %s266 = sadd.s32 %s265, 1
      %p269 = scmp.eq.s32.totalorder %s32, 1
      %p270 = scmp.ne.s32.totalorder %s265, %s267
      %p271 = scmp.eq.s32.totalorder %s32, 0
      %p272 = por %p270, %p271
      %p273 = scmp.ne.s32.totalorder %s265, %s267
      %p274 = scmp.eq.s32.totalorder %s37, 1
      %p275 = por %p273, %p274
      %p276 = scmp.ne.s32.totalorder %s267, %s268
      %p277 = scmp.eq.s32.totalorder %s37, 0
      %p278 = por %p276, %p277
      %p279 = scmp.ne.s32.totalorder %s267, %s268
      %p280 = scmp.eq.s32.totalorder %s38, 1
      %p281 = por %p279, %p280
      %p283 = scmp.ne.s32.totalorder %s268, %s282
      %p284 = scmp.eq.s32.totalorder %s38, 0
      %p285 = por %p283, %p284
      %s286 = ssub.s32 %s39, %s51
      %s287 = ssub.s32 %s40, %s47
      %s288 = sor.u32 %s286, %s287
      %p289 = scmp.eq.s32.totalorder %s288, 0
      %s291 = sadd.s32 %s290, 1
      %s292 = scalar_select %p289, %s290, %s291
      %p295 = pneg %p289
      %p296 = scmp.eq.s32.totalorder %s32, 1
      %p297 = por %p295, %p296
      %p298 = scmp.ne.s32.totalorder %s290, %s293
      %p299 = scmp.eq.s32.totalorder %s32, 0
      %p300 = por %p298, %p299
      %p301 = scmp.ne.s32.totalorder %s290, %s293
      %p302 = scmp.eq.s32.totalorder %s37, 1
      %p303 = por %p301, %p302
      %p304 = scmp.ne.s32.totalorder %s293, %s294
      %p305 = scmp.eq.s32.totalorder %s37, 0
      %p306 = por %p304, %p305
      %p307 = scmp.ne.s32.totalorder %s293, %s294
      %p308 = scmp.eq.s32.totalorder %s38, 1
      %p309 = por %p307, %p308
      %p311 = scmp.ne.s32.totalorder %s294, %s310
      %p312 = scmp.eq.s32.totalorder %s38, 0
      %p313 = por %p311, %p312
      %s314 = ssub.s32 %s39, %s51
      %s315 = ssub.s32 %s40, %s47
      %s316 = sor.u32 %s314, %s315
      %p317 = scmp.eq.s32.totalorder %s316, 0
      %s319 = sadd.s32 %s318, 1
      %s320 = scalar_select %p317, %s318, %s319
      %p323 = pneg %p317
      %p324 = scmp.eq.s32.totalorder %s32, 1
      %p325 = por %p323, %p324
      %p326 = scmp.ne.s32.totalorder %s318, %s321
      %p327 = scmp.eq.s32.totalorder %s32, 0
      %p328 = por %p326, %p327
      %p329 = scmp.ne.s32.totalorder %s318, %s321
      %p330 = scmp.eq.s32.totalorder %s37, 1
      %p331 = por %p329, %p330
      %p332 = scmp.ne.s32.totalorder %s321, %s322
      %p333 = scmp.eq.s32.totalorder %s37, 0
      %p334 = por %p332, %p333
      %p335 = scmp.ne.s32.totalorder %s321, %s322
      %p336 = scmp.eq.s32.totalorder %s38, 1
      %p337 = por %p335, %p336
      %p339 = scmp.ne.s32.totalorder %s322, %s338
      %p340 = scmp.eq.s32.totalorder %s38, 0
      %p341 = por %p339, %p340
      %p342 = scmp.le.s32.totalorder 1, %s32
      %p343 = scmp.lt.s32.totalorder %s32, 3
      %p344 = pnand %p342, %p343
      %p345 = pneg %p344
      // Predicated region
      $region9: #{tpu_custom_call.1} parent=5 // pred_check
        _
      $region10: #{tpu_custom_call.1} parent=5 // pred_check_branch
        %347 = sbr.rel (%p344) target = $region12
      $region11: #{tpu_custom_call.1} parent=5 // pred_region
        %s348 = ssub.s32 %s32, 1
        // Predicated region
        $region13: #{tpu_custom_call.1} parent=11 // pred_check
          %p349 = pneg %p173
        $region14: #{tpu_custom_call.1} parent=11 // pred_check_branch
          %351 = sbr.rel (%p349) target = $region16
        $region15: #{tpu_custom_call.1} parent=11 // pred_region
          %s353 = ssub.s32 16, 16
          %354 = vsyncadd [#allocation6], %s353
          %s356 = sshll.u32 [#allocation7], 4
          %s357 = int_to_ptr.vmem [resolvable:$true] %s356
          %359 = dma.hbm_to_vmem [thread:$0]  %s4, 16, %s357, [#allocation6]
        $region16: #{tpu_custom_call.1} parent=11 // pred_fallthru
          _
        // Predicated region
        $region17: #{tpu_custom_call.1} parent=11 // pred_check
          %p360 = pneg %p194
        $region18: #{tpu_custom_call.1} parent=11 // pred_check_branch
          %362 = sbr.rel (%p360) target = $region20
        $region19: #{tpu_custom_call.1} parent=11 // pred_region
          %s364 = ssub.s32 16, 16
          %365 = vsyncadd [#allocation9], %s364
          %s367 = sshll.u32 [#allocation8], 4
          %s368 = int_to_ptr.vmem [resolvable:$true] %s367
          %370 = dma.hbm_to_vmem [thread:$0]  %s5, 16, %s368, [#allocation9]
        $region20: #{tpu_custom_call.1} parent=11 // pred_fallthru
          _
        // Predicated region
        $region21: #{tpu_custom_call.1} parent=11 // pred_check
          %p371 = pneg %p215
        $region22: #{tpu_custom_call.1} parent=11 // pred_check_branch
          %373 = sbr.rel (%p371) target = $region24
        $region23: #{tpu_custom_call.1} parent=11 // pred_region
          %s375 = ssub.s32 256, 256
          %376 = vsyncadd [#allocation9], %s375
          %s377 = sshll.u32 [#allocation10], 4
          %s378 = int_to_ptr.vmem [resolvable:$true] %s377
          %383 = dma.hbm_to_vmem [thread:$0]  %s6, 256, %s378, [#allocation9], 64, 64, 4
        $region24: #{tpu_custom_call.1} parent=11 // pred_fallthru
          _
        // Predicated region
        $region25: #{tpu_custom_call.1} parent=11 // pred_check
          %p384 = pneg %p236
        $region26: #{tpu_custom_call.1} parent=11 // pred_check_branch
          %386 = sbr.rel (%p384) target = $region28
        $region27: #{tpu_custom_call.1} parent=11 // pred_region
          %s388 = ssub.s32 16, 16
          %389 = vsyncadd [#allocation12], %s388
          %s391 = sshll.u32 [#allocation11], 4
          %s392 = int_to_ptr.vmem [resolvable:$true] %s391
          %394 = dma.hbm_to_vmem [thread:$0]  %s7, 16, %s392, [#allocation12]
        $region28: #{tpu_custom_call.1} parent=11 // pred_fallthru
          _
        // Predicated region
        $region29: #{tpu_custom_call.1} parent=11 // pred_check
          %p395 = pneg %p257
        $region30: #{tpu_custom_call.1} parent=11 // pred_check_branch
          %397 = sbr.rel (%p395) target = $region32
        $region31: #{tpu_custom_call.1} parent=11 // pred_region
          _
        $region32: #{tpu_custom_call.1} parent=11 // pred_fallthru
          _
        // Predicated region
        $region33: #{tpu_custom_call.1} parent=11 // pred_check
          %p398 = pneg %p278
        $region34: #{tpu_custom_call.1} parent=11 // pred_check_branch
          %400 = sbr.rel (%p398) target = $region36
        $region35: #{tpu_custom_call.1} parent=11 // pred_region
          _
        $region36: #{tpu_custom_call.1} parent=11 // pred_fallthru
          _
      $region12: #{tpu_custom_call.1} parent=5 // pred_fallthru
        _
      %p401 = scmp.lt.s32.totalorder %s32, 2
      // Predicated region
      $region37: #{tpu_custom_call.1} parent=5 // pred_check
        %p402 = pneg %p401
      $region38: #{tpu_custom_call.1} parent=5 // pred_check_branch
        %404 = sbr.rel (%p402) target = $region40
      $region39: #{tpu_custom_call.1} parent=5 // pred_region
        // Predicated region
        $region41: #{tpu_custom_call.1} parent=39 // pred_check
          %p405 = pneg %p66
        $region42: #{tpu_custom_call.1} parent=39 // pred_check_branch
          %407 = sbr.rel (%p405) target = $region44
        $region43: #{tpu_custom_call.1} parent=39 // pred_region
          %p408 = scmp.lt.s32.totalorder %s39, 1
          %s409 = scalar_select %p408, %s39, 1
          %p410 = scmp.lt.s32.totalorder %s40, 0
          %s411 = scalar_select %p410, %s40, 0
          %s412 = sadd.s32 %s411, %s409
          %s413 = smul.addr %s412, 8
          %s414 = scalar_lea.vmem %s0, %s413
        $region44: #{tpu_custom_call.1} parent=39 // pred_fallthru
          _
        // Predicated region
        $region45: #{tpu_custom_call.1} parent=39 // pred_check
          %p415 = pneg %p94
        $region46: #{tpu_custom_call.1} parent=39 // pred_check_branch
          %417 = sbr.rel (%p415) target = $region48
        $region47: #{tpu_custom_call.1} parent=39 // pred_region
          %p418 = scmp.lt.s32.totalorder %s39, 1
          %s419 = scalar_select %p418, %s39, 1
          %p420 = scmp.lt.s32.totalorder %s40, 0
          %s421 = scalar_select %p420, %s40, 0
          %s422 = sadd.s32 %s421, %s419
          %s423 = smul.addr %s422, 8
          %s424 = scalar_lea.vmem %s1, %s423
        $region48: #{tpu_custom_call.1} parent=39 // pred_fallthru
          _
        // Predicated region
        $region49: #{tpu_custom_call.1} parent=39 // pred_check
          %p425 = pneg %p120
        $region50: #{tpu_custom_call.1} parent=39 // pred_check_branch
          %427 = sbr.rel (%p425) target = $region52
        $region51: #{tpu_custom_call.1} parent=39 // pred_region
          %s428 = sand.u32 %s110, 1
          %s429 = scalar_lea.sflag [#allocation3], %s428
          %s430 = sand.u32 %s110, 1
          %s431 = smul.addr %s430, 8
          %s432 = scalar_lea.vmem [#allocation2], %s431
          %s434 = ssub.s32 128, 128
          %435 = vsyncadd %s429, %s434
          %s436 = smul.addr %s39, 2
          %s437 = smul.addr %s436, 64
          %s438 = scalar_lea.hbm %s2, %s437
          %s439 = sshll.u32 %s432, 4
          %s440 = int_to_ptr.vmem [resolvable:$true] %s439
          %445 = dma.hbm_to_vmem [thread:$0]  %s438, 128, %s440, %s429, 64, 64, 4
        $region52: #{tpu_custom_call.1} parent=39 // pred_fallthru
          _
        // Predicated region
        $region53: #{tpu_custom_call.1} parent=39 // pred_check
          %p446 = pneg %p146
        $region54: #{tpu_custom_call.1} parent=39 // pred_check_branch
          %448 = sbr.rel (%p446) target = $region56
        $region55: #{tpu_custom_call.1} parent=39 // pred_region
          %s449 = sand.u32 %s32, 1
          %s450 = scalar_lea.sflag [#allocation6], %s449
          %s451 = sand.u32 %s136, 1
          %s452 = smul.addr %s451, 8
          %s453 = scalar_lea.vmem [#allocation5], %s452
          %s455 = ssub.s32 128, 128
          %456 = vsyncadd %s450, %s455
          %s457 = smul.addr %s39, 2
          %s458 = smul.addr %s457, 64
          %s459 = scalar_lea.hbm %s3, %s458
          %s460 = sshll.u32 %s453, 4
          %s461 = int_to_ptr.vmem [resolvable:$true] %s460
          %466 = dma.hbm_to_vmem [thread:$0]  %s459, 128, %s461, %s450, 64, 64, 4
        $region56: #{tpu_custom_call.1} parent=39 // pred_fallthru
          _
      $region40: #{tpu_custom_call.1} parent=5 // pred_fallthru
        _
      %p467 = scmp.le.s32.totalorder 1, %s32
      %p468 = scmp.lt.s32.totalorder %s32, 3
      %p469 = pnand %p467, %p468
      %p470 = pneg %p469
      // Predicated region
      $region57: #{tpu_custom_call.1} parent=5 // pred_check
        _
      $region58: #{tpu_custom_call.1} parent=5 // pred_check_branch
        %472 = sbr.rel (%p469) target = $region60
      $region59: #{tpu_custom_call.1} parent=5 // pred_region
        %s473 = ssub.s32 %s32, 1
        %s474 = sand.u32 %s113, 1
        %s475 = scalar_lea.sflag [#allocation3], %s474
        %s476 = sand.u32 %s113, 1
        %s477 = smul.addr %s476, 8
        %s478 = scalar_lea.vmem [#allocation2], %s477
        // Predicated region
        $region61: #{tpu_custom_call.1} parent=59 // pred_check
          %p479 = pneg %p126
        $region62: #{tpu_custom_call.1} parent=59 // pred_check_branch
          %481 = sbr.rel (%p479) target = $region64
        $region63: #{tpu_custom_call.1} parent=59 // pred_region
          %482 = dma.done %s475, 128
        $region64: #{tpu_custom_call.1} parent=59 // pred_fallthru
          _
        %s483 = sand.u32 %s37, 1
        %s484 = scalar_lea.sflag [#allocation6], %s483
        %s485 = sand.u32 %s139, 1
        %s486 = smul.addr %s485, 8
        %s487 = scalar_lea.vmem [#allocation5], %s486
        // Predicated region
        $region65: #{tpu_custom_call.1} parent=59 // pred_check
          %p488 = pneg %p152
        $region66: #{tpu_custom_call.1} parent=59 // pred_check_branch
          %490 = sbr.rel (%p488) target = $region68
        $region67: #{tpu_custom_call.1} parent=59 // pred_region
          %491 = dma.done %s484, 128
        $region68: #{tpu_custom_call.1} parent=59 // pred_fallthru
          _
        // Predicated region
        $region69: #{tpu_custom_call.1} parent=59 // pred_check
          %p492 = pneg %p173
        $region70: #{tpu_custom_call.1} parent=59 // pred_check_branch
          %494 = sbr.rel (%p492) target = $region72
        $region71: #{tpu_custom_call.1} parent=59 // pred_region
          %495 = dma.done [#allocation6], 16
        $region72: #{tpu_custom_call.1} parent=59 // pred_fallthru
          _
        // Predicated region
        $region73: #{tpu_custom_call.1} parent=59 // pred_check
          %p496 = pneg %p194
        $region74: #{tpu_custom_call.1} parent=59 // pred_check_branch
          %498 = sbr.rel (%p496) target = $region76
        $region75: #{tpu_custom_call.1} parent=59 // pred_region
          %499 = dma.done [#allocation9], 16
        $region76: #{tpu_custom_call.1} parent=59 // pred_fallthru
          _
        // Predicated region
        $region77: #{tpu_custom_call.1} parent=59 // pred_check
          %p500 = pneg %p215
        $region78: #{tpu_custom_call.1} parent=59 // pred_check_branch
          %502 = sbr.rel (%p500) target = $region80
        $region79: #{tpu_custom_call.1} parent=59 // pred_region
          %503 = dma.done [#allocation9], 256
        $region80: #{tpu_custom_call.1} parent=59 // pred_fallthru
          _
        // Predicated region
        $region81: #{tpu_custom_call.1} parent=59 // pred_check
          %p504 = pneg %p236
        $region82: #{tpu_custom_call.1} parent=59 // pred_check_branch
          %506 = sbr.rel (%p504) target = $region84
        $region83: #{tpu_custom_call.1} parent=59 // pred_region
          %507 = dma.done [#allocation12], 16
        $region84: #{tpu_custom_call.1} parent=59 // pred_fallthru
          _
        %p508 = scmp.lt.s32.totalorder %s41, 1
        %s509 = scalar_select %p508, %s41, 1
        %p510 = scmp.lt.s32.totalorder %s42, 0
        %s511 = scalar_select %p510, %s42, 0
        %s512 = sadd.s32 %s511, %s509
        %s513 = smul.addr %s512, 8
        %s514 = scalar_lea.vmem %s0, %s513
        %p515 = pneg %p72
        %p516 = pneg %p69
        %p517 = scmp.lt.s32.totalorder %s41, 1
        %s518 = scalar_select %p517, %s41, 1
        %p519 = scmp.lt.s32.totalorder %s42, 0
        %s520 = scalar_select %p519, %s42, 0
        %s521 = sadd.s32 %s520, %s518
        %s522 = smul.addr %s521, 8
        %s523 = scalar_lea.vmem %s1, %s522
        %p524 = pneg %p100
        %p525 = pneg %p97
        %s526 = sand.u32 %s113, 1
        %s527 = scalar_lea.sflag [#allocation3], %s526
        %s528 = sand.u32 %s113, 1
        %s529 = smul.addr %s528, 8
        %s530 = scalar_lea.vmem [#allocation2], %s529
        %p531 = pneg %p126
        %p532 = pneg %p123
        %s533 = sand.u32 %s37, 1
        %s534 = scalar_lea.sflag [#allocation6], %s533
        %s535 = sand.u32 %s139, 1
        %s536 = smul.addr %s535, 8
        %s537 = scalar_lea.vmem [#allocation5], %s536
        %p538 = pneg %p152
        %p539 = pneg %p149
        %p540 = pneg %p173
        %p541 = pneg %p170
        %p542 = pneg %p194
        %p543 = pneg %p191
        %p544 = pneg %p215
        %p545 = pneg %p212
        %p546 = pneg %p236
        %p547 = pneg %p233
        %p548 = pneg %p257
        %p549 = pneg %p254
        %p550 = pneg %p278
        %p551 = pneg %p275
        %p552 = pneg %p306
        %p553 = pneg %p303
        %s554 = sand.u32 %s293, 1
        %s555 = scalar_lea.sflag [#allocation4], %s554
        %s556 = sand.u32 %s293, 1
        %s557 = smul.addr %s556, 8
        %s558 = scalar_lea.vmem [#allocation13], %s557
        %p559 = pneg %p334
        %p560 = pneg %p331
        %s561 = sand.u32 %s321, 1
        %s562 = scalar_lea.sflag [#allocation15], %s561
        %s563 = sand.u32 %s321, 1
        %s564 = smul.addr %s563, 8
        %s565 = scalar_lea.vmem [#allocation14], %s564
        %p566 = scmp.lt.s32.totalorder %s41, 1
        %s567 = scalar_select %p566, %s41, 1
        %p568 = scmp.lt.s32.totalorder %s42, 0
        %s569 = scalar_select %p568, %s42, 0
        %s570 = sadd.s32 %s569, %s567
        %s571 = smul.addr %s570, 8
        %s572 = scalar_lea.vmem %s0, %s571
        %p573 = scmp.lt.s32.totalorder %s41, 1
        %s574 = scalar_select %p573, %s41, 1
        %p575 = scmp.lt.s32.totalorder %s42, 0
        %s576 = scalar_select %p575, %s42, 0
        %s577 = sadd.s32 %s576, %s574
        %s578 = smul.addr %s577, 8
        %s579 = scalar_lea.vmem %s1, %s578
        %v581 = vld [vmem:[%s572] sm:$0xff]
        %v582 = vld [vmem:[#allocation7] sm:$0x1]
        %v583 = vld [vmem:[#allocation8] sm:$0x1]
        %vm584 = vcmask 261120
        %v585 = vsel %vm584, %v581, 0.0
        %586 = vadd.xlane.f32.xlu0 %v585
        %v587 = vpop.xlane.xlu0 %586
        %v588 = vrcp.pop 32.0
        %v589 = vmul.f32 %v587, %v588
        %v590 = vsub.f32 %v581, %v589
        %v591 = vmul.f32 %v590, %v590
        %v592 = vsel %vm584, %v591, 0.0
        %593 = vadd.xlane.f32.xlu0 %v592
        %v594 = vpop.xlane.xlu0 %593
        %v595 = vmul.f32 %v594, %v588
        %v596 = vadd.f32 %v595, 1e-05
        %v597 = vrsqrt.pop %v596
        %v598 = vmul.f32 %v590, %v597
        %v600 = vlaneseq
        %v601 = vshrl.u32 %v600, 7
        %v602 = vsub.s32 0, %v601
        %v603 = vrot.slane %v582, %v602
        %v605 = vmul.f32 %v598, %v603
        %v607 = vlaneseq
        %v608 = vshrl.u32 %v607, 7
        %v609 = vsub.s32 0, %v608
        %v610 = vrot.slane %v583, %v609
        %v612 = vadd.f32 %v605, %v610
        %v613 = vpack.c.bf16 %v612, %v612
        %v614 = vld [vmem:[#allocation10] sm:$0xf]
        %v615 = vld [vmem:[#allocation10 + $0x4] sm:$0xf]
        %v616 = vld [vmem:[#allocation10 + $0x8] sm:$0xf]
        %v617 = vld [vmem:[#allocation10 + $0xc] sm:$0xf]
        %v618 = vld [vmem:[#allocation11] sm:$0x1]
        %v620 = vlaneseq
        %v621 = vshrl.u32 %v620, 7
        %v622 = vsub.s32 0, %v621
        %v623 = vrot.slane %v618, %v622
        %v629 = vunpack.c.l.b16 %v614
        %v630 = vunpack.c.l.b16 %v615
        %v631 = vunpack.c.l.b16 %v616
        %v632 = vunpack.c.l.b16 %v617
        %v633 = vpack.c.b16 %v630, %v629
        %v634 = vpack.c.b16 %v632, %v631
        %v638 = vsel %vm584, %v613, 0
        %640 = vmatprep.subr.bf16.mxu0 0
        %641 = vmatpush1.bf16.msra.mxu0 0
        %642 = vmatprep.subr.bf16.mxu0 0
        %643 = vmatpush1.bf16.msra.mxu0 0
        %644 = vmatprep.subr.bf16.mxu0 0
        %645 = vmatpush1.bf16.msra.mxu0 0
        %646 = vmatprep.subr.bf16.mxu0 0
        %647 = vmatpush1.bf16.msra.mxu0 0
        %648 = vmatprep.subr.bf16.mxu0 0
        %649 = vmatpush1.bf16.msra.mxu0 0
        %650 = vmatprep.subr.bf16.mxu0 0
        %651 = vmatpush1.bf16.msra.mxu0 0
        %652 = vmatprep.subr.bf16.mxu0 0
        %653 = vmatpush1.bf16.msra.mxu0 %v634
        %654 = vmatprep.subr.bf16.mxu0 0
        %655 = vmatpush1.bf16.msra.mxu0 %v633
        %656 = vmatprep.subr.bf16.mxu0 0
        %657 = vmatpush2.bf16.msra.mxu0 0
        %658 = vmatprep.subr.bf16.mxu0 0
        %659 = vmatpush2.bf16.msra.mxu0 0
        %660 = vmatprep.subr.bf16.mxu0 0
        %661 = vmatpush2.bf16.msra.mxu0 0
        %662 = vmatprep.subr.bf16.mxu0 0
        %663 = vmatpush2.bf16.msra.mxu0 0
        %664 = vmatprep.subr.bf16.mxu0 0
        %665 = vmatpush2.bf16.msra.mxu0 0
        %666 = vmatprep.subr.bf16.mxu0 0
        %667 = vmatpush2.bf16.msra.mxu0 0
        %668 = vmatprep.subr.bf16.mxu0 0
        %669 = vmatpush2.bf16.msra.mxu0 0
        %670 = vmatprep.subr.bf16.mxu0 0
        %671 = vmatpush2.bf16.msra.mxu0 0
        %672 = vmatprep.mubr.bf16.mxu0 0
        %673 = vmatmul.mubr.bf16.gmra.mxu0 %v638
        %v674 = vpop.f32.mrf.mxu0
        %v675 = vadd.f32 %v623, %v674
        %v676 = vpop.f32.mrf.mxu0
        %v677 = vpop.f32.mrf.mxu0
        %v678 = vpop.f32.mrf.mxu0
        %679 = vdwg.mxu0
        %v680 = vmul.f32 %v675, 0.25
        %682 = vrot.lane.b32.xlu0 %v680, 112
        %v683 = vpop.permute.xlu0 %682
        %v685 = vcombine.high %v680, 0.0
        %v687 = vunpack.c.l.s4 1983009808
        %v688 = vunpack.c.0.s8 %v687
        %v689 = vlaneseq
        %v690 = vshrl.u32 %v689, 7
        %v691 = vsub.s32 %v688, %v690
        %v692 = vrot.slane %v680, %v691
        %v694 = vunpack.c.l.s4 1983009808
        %v695 = vunpack.c.0.s8 %v694
        %v696 = vlaneseq
        %v697 = vshrl.u32 %v696, 7
        %v698 = vsub.s32 %v695, %v697
        %v699 = vrot.slane %v685, %v698
        %v700 = vcombine.high %v683, 0.0
        %v702 = vunpack.c.l.s4 1983009808
        %v703 = vunpack.c.0.s8 %v702
        %v704 = vlaneseq
        %v705 = vshrl.u32 %v704, 7
        %v706 = vsub.s32 %v703, %v705
        %v707 = vrot.slane %v683, %v706
        %v709 = vunpack.c.l.s4 1983009808
        %v710 = vunpack.c.0.s8 %v709
        %v711 = vlaneseq
        %v712 = vshrl.u32 %v711, 7
        %v713 = vsub.s32 %v710, %v712
        %v714 = vrot.slane %v700, %v713
        %v715 = vcombine.low %v692, %v707
        %v716 = vcombine.high %v692, %v707
        %v718 = vunpack.c.l.s4 1934713408
        %v719 = vunpack.c.0.s8 %v718
        %v720 = vlaneseq
        %v721 = vshrl.u32 %v720, 7
        %v722 = vsub.s32 %v719, %v721
        %v723 = vrot.slane %v715, %v722
        %v725 = vunpack.c.l.s4 1934713408
        %v726 = vunpack.c.0.s8 %v725
        %v727 = vlaneseq
        %v728 = vshrl.u32 %v727, 7
        %v729 = vsub.s32 %v726, %v728
        %v730 = vrot.slane %v716, %v729
        %v731 = vcombine.low %v699, %v714
        %v732 = vcombine.high %v699, %v714
        %v734 = vunpack.c.l.s4 1934713408
        %v735 = vunpack.c.0.s8 %v734
        %v736 = vlaneseq
        %v737 = vshrl.u32 %v736, 7
        %v738 = vsub.s32 %v735, %v737
        %v739 = vrot.slane %v731, %v738
        %v741 = vunpack.c.l.s4 1934713408
        %v742 = vunpack.c.0.s8 %v741
        %v743 = vlaneseq
        %v744 = vshrl.u32 %v743, 7
        %v745 = vsub.s32 %v742, %v744
        %v746 = vrot.slane %v732, %v745
        %v747 = vcombine.high %v723, 0.0
        %v748 = vcombine.high %v730, 0.0
        %v749 = vcombine.high %v739, 0.0
        %v750 = vcombine.high %v746, 0.0
        %v751 = vcombine.low %v723, %v730
        %v753 = vunpack.c.l.s4 1983009808
        %v754 = vunpack.c.0.s8 %v753
        %v755 = vlaneseq
        %v756 = vshrl.u32 %v755, 7
        %v757 = vsub.s32 %v754, %v756
        %v758 = vrot.slane %v751, %v757
        %v759 = vcombine.low %v747, %v748
        %v761 = vunpack.c.l.s4 1983009808
        %v762 = vunpack.c.0.s8 %v761
        %v763 = vlaneseq
        %v764 = vshrl.u32 %v763, 7
        %v765 = vsub.s32 %v762, %v764
        %v766 = vrot.slane %v759, %v765
        %v767 = vcombine.low %v739, %v746
        %v769 = vunpack.c.l.s4 1983009808
        %v770 = vunpack.c.0.s8 %v769
        %v771 = vlaneseq
        %v772 = vshrl.u32 %v771, 7
        %v773 = vsub.s32 %v770, %v772
        %v774 = vrot.slane %v767, %v773
        %v775 = vcombine.low %v749, %v750
        %v777 = vunpack.c.l.s4 1983009808
        %v778 = vunpack.c.0.s8 %v777
        %v779 = vlaneseq
        %v780 = vshrl.u32 %v779, 7
        %v781 = vsub.s32 %v778, %v780
        %v782 = vrot.slane %v775, %v781
        %v783 = vcombine.low %v758, %v766
        %v785 = vunpack.c.l.s4 1934713408
        %v786 = vunpack.c.0.s8 %v785
        %v787 = vlaneseq
        %v788 = vshrl.u32 %v787, 7
        %v789 = vsub.s32 %v786, %v788
        %v790 = vrot.slane %v783, %v789
        %v791 = vcombine.low %v774, %v782
        %v793 = vunpack.c.l.s4 1934713408
        %v794 = vunpack.c.0.s8 %v793
        %v795 = vlaneseq
        %v796 = vshrl.u32 %v795, 7
        %v797 = vsub.s32 %v794, %v796
        %v798 = vrot.slane %v791, %v797
        %v799 = vcombine.low %v790, %v798
        %v800 = vcombine.high %v790, %v798
        %v801 = vpack.c.bf16 %v799, %v799
        %v802 = vpack.c.bf16 %v800, %v800
        %v803 = vld [vmem:[%s478] sm:$0xf]
        %v804 = vld [vmem:[%s478 + $0x4] sm:$0xf]
        %v805 = vld [vmem:[%s487] sm:$0xf]
        %v806 = vld [vmem:[%s487 + $0x4] sm:$0xf]
        %vm807 = vcmask 130048
        %v809 = vsel %vm807, %v801, 0
        %v812 = vsel %vm807, %v803, 0
        %814 = vmatprep.subr.bf16.mxu0 0
        %815 = vmatpush1.bf16.xpose.msra.mxu0 0
        %816 = vmatprep.subr.bf16.mxu0 0
        %817 = vmatpush1.bf16.xpose.msra.mxu0 0
        %818 = vmatprep.subr.bf16.mxu0 0
        %819 = vmatpush1.bf16.xpose.msra.mxu0 0
        %820 = vmatprep.subr.bf16.mxu0 0
        %821 = vmatpush1.bf16.xpose.msra.mxu0 0
        %822 = vmatprep.subr.bf16.mxu0 0
        %823 = vmatpush1.bf16.xpose.msra.mxu0 0
        %824 = vmatprep.subr.bf16.mxu0 0
        %825 = vmatpush1.bf16.xpose.msra.mxu0 0
        %826 = vmatprep.subr.bf16.mxu0 0
        %827 = vmatpush1.bf16.xpose.msra.mxu0 0
        %828 = vmatprep.subr.bf16.mxu0 0
        %829 = vmatpush1.bf16.xpose.msra.mxu0 %v812
        %830 = vmatprep.subr.bf16.mxu0 0
        %831 = vmatpush2.bf16.xpose.msra.mxu0 0
        %832 = vmatprep.subr.bf16.mxu0 0
        %833 = vmatpush2.bf16.xpose.msra.mxu0 0
        %834 = vmatprep.subr.bf16.mxu0 0
        %835 = vmatpush2.bf16.xpose.msra.mxu0 0
        %836 = vmatprep.subr.bf16.mxu0 0
        %837 = vmatpush2.bf16.xpose.msra.mxu0 0
        %838 = vmatprep.subr.bf16.mxu0 0
        %839 = vmatpush2.bf16.xpose.msra.mxu0 0
        %840 = vmatprep.subr.bf16.mxu0 0
        %841 = vmatpush2.bf16.xpose.msra.mxu0 0
        %842 = vmatprep.subr.bf16.mxu0 0
        %843 = vmatpush2.bf16.xpose.msra.mxu0 0
        %844 = vmatprep.subr.bf16.mxu0 0
        %845 = vmatpush2.bf16.xpose.msra.mxu0 0
        %846 = vmatprep.mubr.bf16.mxu0 0
        %847 = vmatmul.mubr.bf16.gmra.mxu0 %v809
        %v848 = vpop.f32.mrf.mxu0
        %v849 = vadd.f32 0.0, %v848
        %v850 = vpop.f32.mrf.mxu0
        %v851 = vpop.f32.mrf.mxu0
        %v852 = vpop.f32.mrf.mxu0
        %853 = vdwg.mxu0
        %v855 = vsel %vm807, %v802, 0
        %v858 = vsel %vm807, %v804, 0
        %860 = vmatprep.subr.bf16.mxu0 0
        %861 = vmatpush1.bf16.xpose.msra.mxu0 0
        %862 = vmatprep.subr.bf16.mxu0 0
        %863 = vmatpush1.bf16.xpose.msra.mxu0 0
        %864 = vmatprep.subr.bf16.mxu0 0
        %865 = vmatpush1.bf16.xpose.msra.mxu0 0
        %866 = vmatprep.subr.bf16.mxu0 0
        %867 = vmatpush1.bf16.xpose.msra.mxu0 0
        %868 = vmatprep.subr.bf16.mxu0 0
        %869 = vmatpush1.bf16.xpose.msra.mxu0 0
        %870 = vmatprep.subr.bf16.mxu0 0
        %871 = vmatpush1.bf16.xpose.msra.mxu0 0
        %872 = vmatprep.subr.bf16.mxu0 0
        %873 = vmatpush1.bf16.xpose.msra.mxu0 0
        %874 = vmatprep.subr.bf16.mxu0 0
        %875 = vmatpush1.bf16.xpose.msra.mxu0 %v858
        %876 = vmatprep.subr.bf16.mxu0 0
        %877 = vmatpush2.bf16.xpose.msra.mxu0 0
        %878 = vmatprep.subr.bf16.mxu0 0
        %879 = vmatpush2.bf16.xpose.msra.mxu0 0
        %880 = vmatprep.subr.bf16.mxu0 0
        %881 = vmatpush2.bf16.xpose.msra.mxu0 0
        %882 = vmatprep.subr.bf16.mxu0 0
        %883 = vmatpush2.bf16.xpose.msra.mxu0 0
        %884 = vmatprep.subr.bf16.mxu0 0
        %885 = vmatpush2.bf16.xpose.msra.mxu0 0
        %886 = vmatprep.subr.bf16.mxu0 0
        %887 = vmatpush2.bf16.xpose.msra.mxu0 0
        %888 = vmatprep.subr.bf16.mxu0 0
        %889 = vmatpush2.bf16.xpose.msra.mxu0 0
        %890 = vmatprep.subr.bf16.mxu0 0
        %891 = vmatpush2.bf16.xpose.msra.mxu0 0
        %892 = vmatprep.mubr.bf16.mxu0 0
        %893 = vmatmul.mubr.bf16.gmra.mxu0 %v855
        %v894 = vpop.f32.mrf.mxu0
        %v895 = vadd.f32 0.0, %v894
        %v896 = vpop.f32.mrf.mxu0
        %v897 = vpop.f32.mrf.mxu0
        %v898 = vpop.f32.mrf.mxu0
        %899 = vdwg.mxu0
        %vm900 = vcmask 64512
        %v901 = vsel %vm900, %v849, -inf
        %902 = vmax.xlane.f32.xlu0 %v901
        %v903 = vpop.xlane.xlu0 %902
        %v904 = vsel %vm900, %v895, -inf
        %905 = vmax.xlane.f32.xlu0 %v904
        %v906 = vpop.xlane.xlu0 %905
        %v907 = vsub.f32 %v849, %v903
        %v908 = vsub.f32 %v895, %v906
        %v909 = vmul.f32 %v907, 1.442695
        %v910 = vpow.pop %v909
        %v911 = vmul.f32 %v908, 1.442695
        %v912 = vpow.pop %v911
        %v913 = vsel %vm900, %v910, 0.0
        %914 = vadd.xlane.f32.xlu0 %v913
        %v915 = vpop.xlane.xlu0 %914
        %v916 = vsel %vm900, %v912, 0.0
        %917 = vadd.xlane.f32.xlu0 %v916
        %v918 = vpop.xlane.xlu0 %917
        %v919 = vrcp.pop %v915
        %v920 = vrcp.pop %v918
        %v921 = vmul.f32 %v910, %v919
        %v922 = vmul.f32 %v912, %v920
        %v923 = vpack.c.bf16 %v921, %v921
        %v924 = vpack.c.bf16 %v922, %v922
        %vm925 = vcmask 60416
        %926 = vst.msk [vmem:[%s565] sm:$0xf] %vm925, %v923
        %927 = vst.msk [vmem:[%s565 + $0x4] sm:$0xf] %vm925, %v924
        %v929 = vsel %vm900, %v923, 0
        %vm931 = vcmask 1043456
        %v933 = vsel %vm931, %v805, 0
        %935 = vmatprep.subr.bf16.mxu0 0
        %936 = vmatpush1.bf16.msra.mxu0 0
        %937 = vmatprep.subr.bf16.mxu0 0
        %938 = vmatpush1.bf16.msra.mxu0 0
        %939 = vmatprep.subr.bf16.mxu0 0
        %940 = vmatpush1.bf16.msra.mxu0 0
        %941 = vmatprep.subr.bf16.mxu0 0
        %942 = vmatpush1.bf16.msra.mxu0 0
        %943 = vmatprep.subr.bf16.mxu0 0
        %944 = vmatpush1.bf16.msra.mxu0 0
        %945 = vmatprep.subr.bf16.mxu0 0
        %946 = vmatpush1.bf16.msra.mxu0 0
        %947 = vmatprep.subr.bf16.mxu0 0
        %948 = vmatpush1.bf16.msra.mxu0 0
        %949 = vmatprep.subr.bf16.mxu0 0
        %950 = vmatpush1.bf16.msra.mxu0 %v933
        %951 = vmatprep.subr.bf16.mxu0 0
        %952 = vmatpush2.bf16.msra.mxu0 0
        %953 = vmatprep.subr.bf16.mxu0 0
        %954 = vmatpush2.bf16.msra.mxu0 0
        %955 = vmatprep.subr.bf16.mxu0 0
        %956 = vmatpush2.bf16.msra.mxu0 0
        %957 = vmatprep.subr.bf16.mxu0 0
        %958 = vmatpush2.bf16.msra.mxu0 0
        %959 = vmatprep.subr.bf16.mxu0 0
        %960 = vmatpush2.bf16.msra.mxu0 0
        %961 = vmatprep.subr.bf16.mxu0 0
        %962 = vmatpush2.bf16.msra.mxu0 0
        %963 = vmatprep.subr.bf16.mxu0 0
        %964 = vmatpush2.bf16.msra.mxu0 0
        %965 = vmatprep.subr.bf16.mxu0 0
        %966 = vmatpush2.bf16.msra.mxu0 0
        %967 = vmatprep.mubr.bf16.mxu0 0
        %968 = vmatmul.mubr.bf16.gmra.mxu0 %v929
        %v969 = vpop.f32.mrf.mxu0
        %v970 = vadd.f32 0.0, %v969
        %v971 = vpop.f32.mrf.mxu0
        %v972 = vpop.f32.mrf.mxu0
        %v973 = vpop.f32.mrf.mxu0
        %974 = vdwg.mxu0
        %v976 = vsel %vm900, %v924, 0
        %v979 = vsel %vm931, %v806, 0
        %981 = vmatprep.subr.bf16.mxu0 0
        %982 = vmatpush1.bf16.msra.mxu0 0
        %983 = vmatprep.subr.bf16.mxu0 0
        %984 = vmatpush1.bf16.msra.mxu0 0
        %985 = vmatprep.subr.bf16.mxu0 0
        %986 = vmatpush1.bf16.msra.mxu0 0
        %987 = vmatprep.subr.bf16.mxu0 0
        %988 = vmatpush1.bf16.msra.mxu0 0
        %989 = vmatprep.subr.bf16.mxu0 0
        %990 = vmatpush1.bf16.msra.mxu0 0
        %991 = vmatprep.subr.bf16.mxu0 0
        %992 = vmatpush1.bf16.msra.mxu0 0
        %993 = vmatprep.subr.bf16.mxu0 0
        %994 = vmatpush1.bf16.msra.mxu0 0
        %995 = vmatprep.subr.bf16.mxu0 0
        %996 = vmatpush1.bf16.msra.mxu0 %v979
        %997 = vmatprep.subr.bf16.mxu0 0
        %998 = vmatpush2.bf16.msra.mxu0 0
        %999 = vmatprep.subr.bf16.mxu0 0
        %1000 = vmatpush2.bf16.msra.mxu0 0
        %1001 = vmatprep.subr.bf16.mxu0 0
        %1002 = vmatpush2.bf16.msra.mxu0 0
        %1003 = vmatprep.subr.bf16.mxu0 0
        %1004 = vmatpush2.bf16.msra.mxu0 0
        %1005 = vmatprep.subr.bf16.mxu0 0
        %1006 = vmatpush2.bf16.msra.mxu0 0
        %1007 = vmatprep.subr.bf16.mxu0 0
        %1008 = vmatpush2.bf16.msra.mxu0 0
        %1009 = vmatprep.subr.bf16.mxu0 0
        %1010 = vmatpush2.bf16.msra.mxu0 0
        %1011 = vmatprep.subr.bf16.mxu0 0
        %1012 = vmatpush2.bf16.msra.mxu0 0
        %1013 = vmatprep.mubr.bf16.mxu0 0
        %1014 = vmatmul.mubr.bf16.gmra.mxu0 %v976
        %v1015 = vpop.f32.mrf.mxu0
        %v1016 = vadd.f32 0.0, %v1015
        %v1017 = vpop.f32.mrf.mxu0
        %v1018 = vpop.f32.mrf.mxu0
        %v1019 = vpop.f32.mrf.mxu0
        %1020 = vdwg.mxu0
        %v1021 = vcombine.high %v970, 0.0
        %v1023 = vunpack.c.l.s4 1983009808
        %v1024 = vunpack.c.0.s8 %v1023
        %v1025 = vlaneseq
        %v1026 = vshrl.u32 %v1025, 7
        %v1027 = vsub.s32 %v1024, %v1026
        %v1028 = vrot.slane %v970, %v1027
        %v1030 = vunpack.c.l.s4 1983009808
        %v1031 = vunpack.c.0.s8 %v1030
        %v1032 = vlaneseq
        %v1033 = vshrl.u32 %v1032, 7
        %v1034 = vsub.s32 %v1031, %v1033
        %v1035 = vrot.slane %v1021, %v1034
        %v1036 = vcombine.high %v1016, 0.0
        %v1038 = vunpack.c.l.s4 1983009808
        %v1039 = vunpack.c.0.s8 %v1038
        %v1040 = vlaneseq
        %v1041 = vshrl.u32 %v1040, 7
        %v1042 = vsub.s32 %v1039, %v1041
        %v1043 = vrot.slane %v1016, %v1042
        %v1045 = vunpack.c.l.s4 1983009808
        %v1046 = vunpack.c.0.s8 %v1045
        %v1047 = vlaneseq
        %v1048 = vshrl.u32 %v1047, 7
        %v1049 = vsub.s32 %v1046, %v1048
        %v1050 = vrot.slane %v1036, %v1049
        %v1051 = vcombine.low %v1028, %v1043
        %v1052 = vcombine.high %v1028, %v1043
        %v1054 = vunpack.c.l.s4 1934713408
        %v1055 = vunpack.c.0.s8 %v1054
        %v1056 = vlaneseq
        %v1057 = vshrl.u32 %v1056, 7
        %v1058 = vsub.s32 %v1055, %v1057
        %v1059 = vrot.slane %v1051, %v1058
        %v1061 = vunpack.c.l.s4 1934713408
        %v1062 = vunpack.c.0.s8 %v1061
        %v1063 = vlaneseq
        %v1064 = vshrl.u32 %v1063, 7
        %v1065 = vsub.s32 %v1062, %v1064
        %v1066 = vrot.slane %v1052, %v1065
        %v1067 = vcombine.low %v1035, %v1050
        %v1068 = vcombine.high %v1035, %v1050
        %v1070 = vunpack.c.l.s4 1934713408
        %v1071 = vunpack.c.0.s8 %v1070
        %v1072 = vlaneseq
        %v1073 = vshrl.u32 %v1072, 7
        %v1074 = vsub.s32 %v1071, %v1073
        %v1075 = vrot.slane %v1067, %v1074
        %v1077 = vunpack.c.l.s4 1934713408
        %v1078 = vunpack.c.0.s8 %v1077
        %v1079 = vlaneseq
        %v1080 = vshrl.u32 %v1079, 7
        %v1081 = vsub.s32 %v1078, %v1080
        %v1082 = vrot.slane %v1068, %v1081
        %v1083 = vcombine.high %v1059, 0.0
        %v1084 = vcombine.high %v1066, 0.0
        %v1085 = vcombine.high %v1075, 0.0
        %v1086 = vcombine.high %v1082, 0.0
        %v1087 = vcombine.low %v1059, %v1066
        %v1089 = vunpack.c.l.s4 1983009808
        %v1090 = vunpack.c.0.s8 %v1089
        %v1091 = vlaneseq
        %v1092 = vshrl.u32 %v1091, 7
        %v1093 = vsub.s32 %v1090, %v1092
        %v1094 = vrot.slane %v1087, %v1093
        %v1095 = vcombine.low %v1083, %v1084
        %v1097 = vunpack.c.l.s4 1983009808
        %v1098 = vunpack.c.0.s8 %v1097
        %v1099 = vlaneseq
        %v1100 = vshrl.u32 %v1099, 7
        %v1101 = vsub.s32 %v1098, %v1100
        %v1102 = vrot.slane %v1095, %v1101
        %v1103 = vcombine.low %v1075, %v1082
        %v1105 = vunpack.c.l.s4 1983009808
        %v1106 = vunpack.c.0.s8 %v1105
        %v1107 = vlaneseq
        %v1108 = vshrl.u32 %v1107, 7
        %v1109 = vsub.s32 %v1106, %v1108
        %v1110 = vrot.slane %v1103, %v1109
        %v1111 = vcombine.low %v1085, %v1086
        %v1113 = vunpack.c.l.s4 1983009808
        %v1114 = vunpack.c.0.s8 %v1113
        %v1115 = vlaneseq
        %v1116 = vshrl.u32 %v1115, 7
        %v1117 = vsub.s32 %v1114, %v1116
        %v1118 = vrot.slane %v1111, %v1117
        %v1119 = vcombine.low %v1094, %v1102
        %v1121 = vunpack.c.l.s4 1934713408
        %v1122 = vunpack.c.0.s8 %v1121
        %v1123 = vlaneseq
        %v1124 = vshrl.u32 %v1123, 7
        %v1125 = vsub.s32 %v1122, %v1124
        %v1126 = vrot.slane %v1119, %v1125
        %v1127 = vcombine.low %v1110, %v1118
        %v1129 = vunpack.c.l.s4 1934713408
        %v1130 = vunpack.c.0.s8 %v1129
        %v1131 = vlaneseq
        %v1132 = vshrl.u32 %v1131, 7
        %v1133 = vsub.s32 %v1130, %v1132
        %v1134 = vrot.slane %v1127, %v1133
        %v1135 = vcombine.low %v1126, %v1134
        %v1136 = vcombine.high %v1126, %v1134
        %1138 = vrot.lane.b32.xlu0 %v1136, 16
        %v1139 = vpop.permute.xlu0 %1138
        %v1141 = vsel %vm807, %v1135, %v1139
        %v1142 = vpack.c.bf16 %v1141, %v1141
        %v1143 = vld [vmem:[%s8] sm:$0xf]
        %v1144 = vld [vmem:[%s8 + $0x4] sm:$0xf]
        %v1145 = vld [vmem:[%s8 + $0x8] sm:$0xf]
        %v1146 = vld [vmem:[%s8 + $0xc] sm:$0xf]
        %v1147 = vld [vmem:[%s9] sm:$0x1]
        %v1149 = vlaneseq
        %v1150 = vshrl.u32 %v1149, 7
        %v1151 = vsub.s32 0, %v1150
        %v1152 = vrot.slane %v1147, %v1151
        %v1158 = vunpack.c.l.b16 %v1143
        %v1159 = vunpack.c.l.b16 %v1144
        %v1160 = vunpack.c.l.b16 %v1145
        %v1161 = vunpack.c.l.b16 %v1146
        %v1162 = vpack.c.b16 %v1159, %v1158
        %v1163 = vpack.c.b16 %v1161, %v1160
        %v1167 = vsel %vm584, %v1142, 0
        %1169 = vmatprep.subr.bf16.mxu0 0
        %1170 = vmatpush1.bf16.msra.mxu0 0
        %1171 = vmatprep.subr.bf16.mxu0 0
        %1172 = vmatpush1.bf16.msra.mxu0 0
        %1173 = vmatprep.subr.bf16.mxu0 0
        %1174 = vmatpush1.bf16.msra.mxu0 0
        %1175 = vmatprep.subr.bf16.mxu0 0
        %1176 = vmatpush1.bf16.msra.mxu0 0
        %1177 = vmatprep.subr.bf16.mxu0 0
        %1178 = vmatpush1.bf16.msra.mxu0 0
        %1179 = vmatprep.subr.bf16.mxu0 0
        %1180 = vmatpush1.bf16.msra.mxu0 0
        %1181 = vmatprep.subr.bf16.mxu0 0
        %1182 = vmatpush1.bf16.msra.mxu0 %v1163
        %1183 = vmatprep.subr.bf16.mxu0 0
        %1184 = vmatpush1.bf16.msra.mxu0 %v1162
        %1185 = vmatprep.subr.bf16.mxu0 0
        %1186 = vmatpush2.bf16.msra.mxu0 0
        %1187 = vmatprep.subr.bf16.mxu0 0
        %1188 = vmatpush2.bf16.msra.mxu0 0
        %1189 = vmatprep.subr.bf16.mxu0 0
        %1190 = vmatpush2.bf16.msra.mxu0 0
        %1191 = vmatprep.subr.bf16.mxu0 0
        %1192 = vmatpush2.bf16.msra.mxu0 0
        %1193 = vmatprep.subr.bf16.mxu0 0
        %1194 = vmatpush2.bf16.msra.mxu0 0
        %1195 = vmatprep.subr.bf16.mxu0 0
        %1196 = vmatpush2.bf16.msra.mxu0 0
        %1197 = vmatprep.subr.bf16.mxu0 0
        %1198 = vmatpush2.bf16.msra.mxu0 0
        %1199 = vmatprep.subr.bf16.mxu0 0
        %1200 = vmatpush2.bf16.msra.mxu0 0
        %1201 = vmatprep.mubr.bf16.mxu0 0
        %1202 = vmatmul.mubr.bf16.gmra.mxu0 %v1167
        %v1203 = vpop.f32.mrf.mxu0
        %v1204 = vadd.f32 %v1152, %v1203
        %v1205 = vpop.f32.mrf.mxu0
        %v1206 = vpop.f32.mrf.mxu0
        %v1207 = vpop.f32.mrf.mxu0
        %1208 = vdwg.mxu0
        %v1209 = vadd.f32 %v1204, %v581
        %v1210 = vsel %vm584, %v1209, 0.0
        %1211 = vadd.xlane.f32.xlu0 %v1210
        %v1212 = vpop.xlane.xlu0 %1211
        %v1213 = vmul.f32 %v1212, %v588
        %v1214 = vsub.f32 %v1209, %v1213
        %v1215 = vmul.f32 %v1214, %v1214
        %v1216 = vsel %vm584, %v1215, 0.0
        %1217 = vadd.xlane.f32.xlu0 %v1216
        %v1218 = vpop.xlane.xlu0 %1217
        %v1219 = vmul.f32 %v1218, %v588
        %v1220 = vadd.f32 %v1219, 1e-05
        %v1221 = vrsqrt.pop %v1220
        %v1222 = vmul.f32 %v1214, %v1221
        %v1223 = vmul.f32 %v1222, %v603
        %v1224 = vadd.f32 %v1223, %v610
        %v1225 = vld [vmem:[%s579] sm:$0xff]
        %1227 = vset.pattern.permute.xlu0 0
        %1228 = vperm.xlu0 %1227, %v1225
        %v1229 = vpop.permute.xlu0 %1228
        %v1231 = vmul.f32 %v1224, %v1229
        %1232 = vst.msk [vmem:[%s558] sm:$0xff] %vm584, %v1231
        %s1233 = sand.u32 %s293, 1
        %s1234 = scalar_lea.sflag [#allocation4], %s1233
        %s1235 = sand.u32 %s293, 1
        %s1236 = smul.addr %s1235, 8
        %s1237 = scalar_lea.vmem [#allocation13], %s1236
        %s1238 = sand.u32 %s321, 1
        %s1239 = scalar_lea.sflag [#allocation15], %s1238
        %s1240 = sand.u32 %s321, 1
        %s1241 = smul.addr %s1240, 8
        %s1242 = scalar_lea.vmem [#allocation14], %s1241
        // Predicated region
        $region85: #{tpu_custom_call.1} parent=59 // pred_check
          %p1243 = pneg %p303
        $region86: #{tpu_custom_call.1} parent=59 // pred_check_branch
          %1245 = sbr.rel (%p1243) target = $region88
        $region87: #{tpu_custom_call.1} parent=59 // pred_region
          %s1247 = ssub.s32 128, 128
          %1248 = vsyncadd %s1234, %s1247
          %s1249 = sadd.s32 %s42, %s41
          %s1250 = smul.addr %s1249, 128
          %s1251 = scalar_lea.hbm %s10, %s1250
          %s1253 = sshll.u32 %s1237, 4
          %s1254 = int_to_ptr.vmem [resolvable:$true] %s1253
          %1256 = dma.vmem_to_hbm [thread:$0]  %s1254, 128, %s1251, %s1234
        $region88: #{tpu_custom_call.1} parent=59 // pred_fallthru
          _
        // Predicated region
        $region89: #{tpu_custom_call.1} parent=59 // pred_check
          %p1257 = pneg %p331
        $region90: #{tpu_custom_call.1} parent=59 // pred_check_branch
          %1259 = sbr.rel (%p1257) target = $region92
        $region91: #{tpu_custom_call.1} parent=59 // pred_region
          %s1261 = ssub.s32 128, 128
          %1262 = vsyncadd %s1239, %s1261
          %s1263 = sadd.s32 %s42, %s41
          %s1264 = smul.addr %s1263, 64
          %s1265 = scalar_lea.hbm %s11, %s1264
          %s1266 = sshll.u32 %s1242, 4
          %s1267 = int_to_ptr.vmem [resolvable:$true] %s1266
          %1272 = dma.vmem_to_hbm [thread:$0]  %s1267, 128, %s1265, %s1239, 64, 128, 4
        $region92: #{tpu_custom_call.1} parent=59 // pred_fallthru
          _
      $region60: #{tpu_custom_call.1} parent=5 // pred_fallthru
        _
      %p1273 = scmp.le.s32.totalorder 2, %s32
      // Predicated region
      $region93: #{tpu_custom_call.1} parent=5 // pred_check
        %p1274 = pneg %p1273
      $region94: #{tpu_custom_call.1} parent=5 // pred_check_branch
        %1276 = sbr.rel (%p1274) target = $region96
      $region95: #{tpu_custom_call.1} parent=5 // pred_region
        %s1277 = ssub.s32 %s32, 2
        // Predicated region
        $region97: #{tpu_custom_call.1} parent=95 // pred_check
          %p1278 = pneg %p309
        $region98: #{tpu_custom_call.1} parent=95 // pred_check_branch
          %1280 = sbr.rel (%p1278) target = $region100
        $region99: #{tpu_custom_call.1} parent=95 // pred_region
          %s1281 = sand.u32 %s294, 1
          %s1282 = scalar_lea.sflag [#allocation4], %s1281
          %s1283 = sand.u32 %s294, 1
          %s1284 = smul.addr %s1283, 8
          %s1285 = scalar_lea.vmem [#allocation13], %s1284
          %1286 = dma.done %s1282, 128
        $region100: #{tpu_custom_call.1} parent=95 // pred_fallthru
          _
        // Predicated region
        $region101: #{tpu_custom_call.1} parent=95 // pred_check
          %p1287 = pneg %p337
        $region102: #{tpu_custom_call.1} parent=95 // pred_check_branch
          %1289 = sbr.rel (%p1287) target = $region104
        $region103: #{tpu_custom_call.1} parent=95 // pred_region
          %s1290 = sand.u32 %s322, 1
          %s1291 = scalar_lea.sflag [#allocation15], %s1290
          %s1292 = sand.u32 %s322, 1
          %s1293 = smul.addr %s1292, 8
          %s1294 = scalar_lea.vmem [#allocation14], %s1293
          %1295 = dma.done %s1291, 128
        $region104: #{tpu_custom_call.1} parent=95 // pred_fallthru
          _
      $region96: #{tpu_custom_call.1} parent=5 // pred_fallthru
        _
    $region6: #{tpu_custom_call.1} parent=1 // loop_footer
      %s36 = sadd.s32 1, %s32
    $region7: #{tpu_custom_call.1} parent=1 // loop_footer_branch
      %31 = sbr.rel target = $region3
    $region8: #{tpu_custom_call.1} parent=1 // loop_exit
      _
    %1296 = vsyncpa [#allocation3], 1
    %s1297 = scalar_lea.sflag [#allocation3], 1
    %1298 = vsyncpa %s1297, 1
    %1299 = vsyncpa [#allocation6], 1
    %s1300 = scalar_lea.sflag [#allocation6], 1
    %1301 = vsyncpa %s1300, 1
    %1302 = vsyncpa [#allocation9], 1
    %1303 = vsyncpa [#allocation12], 1
    %1304 = vsyncpa [#allocation4], 1
    %s1305 = scalar_lea.sflag [#allocation4], 1
    %1306 = vsyncpa %s1305, 1
    %1307 = vsyncpa [#allocation15], 1
    %s1308 = scalar_lea.sflag [#allocation15], 1
    %1309 = vsyncpa %s1308, 1

// kernel: tpu_custom_call.1
$region0: #{tpu_custom_call.1}
  #allocation0 [shape = 'u32[]', space=smem, size = 0x4, offset = 0x4, fixed_abs, tag = 'smem constant byte address 0x4 - core index']
  #allocation1 [shape = 'u32[144,128]{1,0:T(1,128)}', space=vmem, size = 0x12000, scoped, tag = 'internal scratch']
  %s0 = inlined_call_operand.vmem [shape: f32[2,8,32], index: 0, kind: input, shape index: {}]
  %s1 = inlined_call_operand.vmem [shape: f32[2,8,1], index: 1, kind: input, shape index: {}]
  %s2 = inlined_call_operand.hbm [shape: bf16[2,2,8,16], index: 2, kind: input, shape index: {}]
  %s3 = inlined_call_operand.hbm [shape: bf16[2,2,8,16], index: 3, kind: input, shape index: {}]
  %s4 = inlined_call_operand.hbm [shape: f32[1,32], index: 4, kind: input, shape index: {}]
  %s5 = inlined_call_operand.hbm [shape: f32[1,32], index: 5, kind: input, shape index: {}]
  %s6 = inlined_call_operand.hbm [shape: bf16[32,32], index: 6, kind: input, shape index: {}]
  %s7 = inlined_call_operand.hbm [shape: f32[1,32], index: 7, kind: input, shape index: {}]
  %s8 = inlined_call_operand.vmem [shape: bf16[32,32], index: 8, kind: input, shape index: {}]
  %s9 = inlined_call_operand.vmem [shape: f32[1,32], index: 9, kind: input, shape index: {}]
  %s10 = inlined_call_operand.hbm [shape: f32[2,8,32], index: 10, kind: output, shape index: {0}]
  %s11 = inlined_call_operand.hbm [shape: bf16[2,2,8,8], index: 11, kind: output, shape index: {1}]
  %12 = xla_tuple %s10, %s11
  %s13 = sld [smem:[#allocation0]]
  $region105: #{tpu_custom_call.1} parent=0
    _
  %s15 = ssub.s32 1, %s13
  %s16 = scalar_select 0, %s15, %s13
  $region1: #{tpu_custom_call.1} parent=0
    #allocation2 [shape = 'u8[8192]{0}', space=vmem, size = 0x2000, scoped, tag = 'input window, operand 2']
    #allocation3 [shape = 's32[2]{0}', space=sflag, size = 0x8, scoped, tag = 'scoped memory for tpu_custom_call.1']
    #allocation4 [shape = 's32[2]{0}', space=sflag, size = 0x8, scoped, tag = 'scoped memory for tpu_custom_call.1']
    #allocation5 [shape = 'u8[8192]{0}', space=vmem, size = 0x2000, scoped, tag = 'input window, operand 3']
    #allocation6 [shape = 's32[2]{0}', space=sflag, size = 0x8, scoped, tag = 'scoped memory for tpu_custom_call.1']
    #allocation7 [shape = 'u8[512]{0}', space=vmem, size = 0x400, scoped, tag = 'input window, operand 4, single buffered']
    #allocation8 [shape = 'u8[512]{0}', space=vmem, size = 0x400, scoped, tag = 'input window, operand 5, single buffered']
    #allocation9 [shape = 's32[1]{0}', space=sflag, size = 0x4, scoped, tag = 'scoped memory for tpu_custom_call.1']
    #allocation10 [shape = 'u8[8192]{0}', space=vmem, size = 0x2000, scoped, tag = 'input window, operand 6, single buffered']
    #allocation11 [shape = 'u8[512]{0}', space=vmem, size = 0x400, scoped, tag = 'input window, operand 7, single buffered']
    #allocation12 [shape = 's32[1]{0}', space=sflag, size = 0x4, scoped, tag = 'scoped memory for tpu_custom_call.1']
    #allocation13 [shape = 'u8[8192]{0}', space=vmem, size = 0x2000, scoped, tag = 'output window, operand 0']
    #allocation14 [shape = 'u8[8192]{0}', space=vmem, size = 0x2000, scoped, tag = 'output window, operand 1']
    #allocation15 [shape = 's32[2]{0}', space=sflag, size = 0x8, scoped, tag = 'scoped memory for tpu_custom_call.1']
    %17 = vsyncpa [#allocation3], 0
    %s18 = scalar_lea.sflag [#allocation3], 1
    %19 = vsyncpa %s18, 0
    %20 = vsyncpa [#allocation6], 0
    %s21 = scalar_lea.sflag [#allocation6], 1
    %22 = vsyncpa %s21, 0
    %23 = vsyncpa [#allocation9], 0
    %24 = vsyncpa [#allocation12], 0
    %25 = vsyncpa [#allocation4], 0
    %s26 = scalar_lea.sflag [#allocation4], 1
    %27 = vsyncpa %s26, 0
    %28 = vsyncpa [#allocation15], 0
    %s29 = scalar_lea.sflag [#allocation15], 1
    %30 = vsyncpa %s29, 0
    loop: start=0, step=1, limit=4
    $region2: #{tpu_custom_call.1} parent=1 // loop_pre_header
      _
    $region3: #{tpu_custom_call.1} parent=1 // loop_header
      %s32 = sphi 0, %s36
      %p33 = scmp.ge.s32.totalorder %s32, 4
      %s39 = sphi 0, %s51
      %s40 = sphi 0, %s47
      %s41 = sphi 0, %s39
      %s42 = sphi 0, %s40
      %s43 = sphi 0, %s41
      %s44 = sphi 0, %s42
      %s56 = sphi 0, %s58
      %s59 = sphi 0, %s56
      %s60 = sphi 0, %s59
      %s76 = sphi 0, %s60
      %s84 = sphi 0, %s86
      %s87 = sphi 0, %s84
      %s88 = sphi 0, %s87
      %s104 = sphi 0, %s88
      %s110 = sphi 0, %s112
      %s113 = sphi 0, %s110
      %s114 = sphi 0, %s113
      %s130 = sphi 0, %s114
      %s136 = sphi 0, %s138
      %s139 = sphi 0, %s136
      %s140 = sphi 0, %s139
      %s156 = sphi 0, %s140
      %s160 = sphi 0, %s160
      %s162 = sphi 0, %s160
      %s163 = sphi 0, %s162
      %s177 = sphi 0, %s163
      %s181 = sphi 0, %s181
      %s183 = sphi 0, %s181
      %s184 = sphi 0, %s183
      %s198 = sphi 0, %s184
      %s202 = sphi 0, %s202
      %s204 = sphi 0, %s202
      %s205 = sphi 0, %s204
      %s219 = sphi 0, %s205
      %s223 = sphi 0, %s223
      %s225 = sphi 0, %s223
      %s226 = sphi 0, %s225
      %s240 = sphi 0, %s226
      %s244 = sphi 0, %s244
      %s246 = sphi 0, %s244
      %s247 = sphi 0, %s246
      %s261 = sphi 0, %s247
      %s265 = sphi 0, %s265
      %s267 = sphi 0, %s265
      %s268 = sphi 0, %s267
      %s282 = sphi 0, %s268
      %s290 = sphi 0, %s292
      %s293 = sphi 0, %s290
      %s294 = sphi 0, %s293
      %s310 = sphi 0, %s294
      %s318 = sphi 0, %s320
      %s321 = sphi 0, %s318
      %s322 = sphi 0, %s321
      %s338 = sphi 0, %s322
    $region4: #{tpu_custom_call.1} parent=1 // loop_header_branch
      %35 = sbr.rel (%p33) target = $region8
    $region5: #{tpu_custom_call.1} parent=1 // loop_body
      %s37 = ssub.s32 %s32, 1
      %s38 = ssub.s32 %s32, 2
      %s45 = sadd.s32 1, %s40
      %p46 = scmp.ge.s32.totalorder %s45, 1
      %s47 = scalar_select %p46, 0, %s45
      %s48 = sadd.s32 1, %s39
      %s49 = scalar_select %p46, %s48, %s39
      %p50 = scmp.ge.s32.totalorder %s49, 2
      %s51 = scalar_select %p50, 0, %s49
      %s52 = ssub.s32 %s39, %s51
      %s53 = ssub.s32 %s40, %s47
      %s54 = sor.u32 %s52, %s53
      %p55 = scmp.eq.s32.totalorder %s54, 0
      %s57 = sadd.s32 %s56, 1
      %s58 = scalar_select %p55, %s56, %s57
      %p61 = pneg %p55
      %p62 = scmp.eq.s32.totalorder %s32, 1
      %p63 = por %p61, %p62
      %p64 = scmp.ne.s32.totalorder %s56, %s59
      %p65 = scmp.eq.s32.totalorder %s32, 0
      %p66 = por %p64, %p65
      %p67 = scmp.ne.s32.totalorder %s56, %s59
      %p68 = scmp.eq.s32.totalorder %s37, 1
      %p69 = por %p67, %p68
      %p70 = scmp.ne.s32.totalorder %s59, %s60
      %p71 = scmp.eq.s32.totalorder %s37, 0
      %p72 = por %p70, %p71
      %p73 = scmp.ne.s32.totalorder %s59, %s60
      %p74 = scmp.eq.s32.totalorder %s38, 1
      %p75 = por %p73, %p74
      %p77 = scmp.ne.s32.totalorder %s60, %s76
      %p78 = scmp.eq.s32.totalorder %s38, 0
      %p79 = por %p77, %p78
      %s80 = ssub.s32 %s39, %s51
      %s81 = ssub.s32 %s40, %s47
      %s82 = sor.u32 %s80, %s81
      %p83 = scmp.eq.s32.totalorder %s82, 0
      %s85 = sadd.s32 %s84, 1
      %s86 = scalar_select %p83, %s84, %s85
      %p89 = pneg %p83
      %p90 = scmp.eq.s32.totalorder %s32, 1
      %p91 = por %p89, %p90
      %p92 = scmp.ne.s32.totalorder %s84, %s87
      %p93 = scmp.eq.s32.totalorder %s32, 0
      %p94 = por %p92, %p93
      %p95 = scmp.ne.s32.totalorder %s84, %s87
      %p96 = scmp.eq.s32.totalorder %s37, 1
      %p97 = por %p95, %p96
      %p98 = scmp.ne.s32.totalorder %s87, %s88
      %p99 = scmp.eq.s32.totalorder %s37, 0
      %p100 = por %p98, %p99
      %p101 = scmp.ne.s32.totalorder %s87, %s88
      %p102 = scmp.eq.s32.totalorder %s38, 1
      %p103 = por %p101, %p102
      %p105 = scmp.ne.s32.totalorder %s88, %s104
      %p106 = scmp.eq.s32.totalorder %s38, 0
      %p107 = por %p105, %p106
      %s108 = ssub.s32 %s39, %s51
      %p109 = scmp.eq.s32.totalorder %s108, 0
      %s111 = sadd.s32 %s110, 1
      %s112 = scalar_select %p109, %s110, %s111
      %p115 = pneg %p109
      %p116 = scmp.eq.s32.totalorder %s32, 1
      %p117 = por %p115, %p116
      %p118 = scmp.ne.s32.totalorder %s110, %s113
      %p119 = scmp.eq.s32.totalorder %s32, 0
      %p120 = por %p118, %p119
      %p121 = scmp.ne.s32.totalorder %s110, %s113
      %p122 = scmp.eq.s32.totalorder %s37, 1
      %p123 = por %p121, %p122
      %p124 = scmp.ne.s32.totalorder %s113, %s114
      %p125 = scmp.eq.s32.totalorder %s37, 0
      %p126 = por %p124, %p125
      %p127 = scmp.ne.s32.totalorder %s113, %s114
      %p128 = scmp.eq.s32.totalorder %s38, 1
      %p129 = por %p127, %p128
      %p131 = scmp.ne.s32.totalorder %s114, %s130
      %p132 = scmp.eq.s32.totalorder %s38, 0
      %p133 = por %p131, %p132
      %s134 = ssub.s32 %s39, %s51
      %p135 = scmp.eq.s32.totalorder %s134, 0
      %s137 = sadd.s32 %s136, 1
      %s138 = scalar_select %p135, %s136, %s137
      %p141 = pneg %p135
      %p142 = scmp.eq.s32.totalorder %s32, 1
      %p143 = por %p141, %p142
      %p144 = scmp.ne.s32.totalorder %s136, %s139
      %p145 = scmp.eq.s32.totalorder %s32, 0
      %p146 = por %p144, %p145
      %p147 = scmp.ne.s32.totalorder %s136, %s139
      %p148 = scmp.eq.s32.totalorder %s37, 1
      %p149 = por %p147, %p148
      %p150 = scmp.ne.s32.totalorder %s139, %s140
      %p151 = scmp.eq.s32.totalorder %s37, 0
      %p152 = por %p150, %p151
      %p153 = scmp.ne.s32.totalorder %s139, %s140
      %p154 = scmp.eq.s32.totalorder %s38, 1
      %p155 = por %p153, %p154
      %p157 = scmp.ne.s32.totalorder %s140, %s156
      %p158 = scmp.eq.s32.totalorder %s38, 0
      %p159 = por %p157, %p158
      %s161 = sadd.s32 %s160, 1
      %p164 = scmp.eq.s32.totalorder %s32, 1
      %p165 = scmp.ne.s32.totalorder %s160, %s162
      %p166 = scmp.eq.s32.totalorder %s32, 0
      %p167 = por %p165, %p166
      %p168 = scmp.ne.s32.totalorder %s160, %s162
      %p169 = scmp.eq.s32.totalorder %s37, 1
      %p170 = por %p168, %p169
      %p171 = scmp.ne.s32.totalorder %s162, %s163
      %p172 = scmp.eq.s32.totalorder %s37, 0
      %p173 = por %p171, %p172
      %p174 = scmp.ne.s32.totalorder %s162, %s163
      %p175 = scmp.eq.s32.totalorder %s38, 1
      %p176 = por %p174, %p175
      %p178 = scmp.ne.s32.totalorder %s163, %s177
      %p179 = scmp.eq.s32.totalorder %s38, 0
      %p180 = por %p178, %p179
      %s182 = sadd.s32 %s181, 1
      %p185 = scmp.eq.s32.totalorder %s32, 1
      %p186 = scmp.ne.s32.totalorder %s181, %s183
      %p187 = scmp.eq.s32.totalorder %s32, 0
      %p188 = por %p186, %p187
      %p189 = scmp.ne.s32.totalorder %s181, %s183
      %p190 = scmp.eq.s32.totalorder %s37, 1
      %p191 = por %p189, %p190
      %p192 = scmp.ne.s32.totalorder %s183, %s184
      %p193 = scmp.eq.s32.totalorder %s37, 0
      %p194 = por %p192, %p193
      %p195 = scmp.ne.s32.totalorder %s183, %s184
      %p196 = scmp.eq.s32.totalorder %s38, 1
      %p197 = por %p195, %p196
      %p199 = scmp.ne.s32.totalorder %s184, %s198
      %p200 = scmp.eq.s32.totalorder %s38, 0
      %p201 = por %p199, %p200
      %s203 = sadd.s32 %s202, 1
      %p206 = scmp.eq.s32.totalorder %s32, 1
      %p207 = scmp.ne.s32.totalorder %s202, %s204
      %p208 = scmp.eq.s32.totalorder %s32, 0
      %p209 = por %p207, %p208
      %p210 = scmp.ne.s32.totalorder %s202, %s204
      %p211 = scmp.eq.s32.totalorder %s37, 1
      %p212 = por %p210, %p211
      %p213 = scmp.ne.s32.totalorder %s204, %s205
      %p214 = scmp.eq.s32.totalorder %s37, 0
      %p215 = por %p213, %p214
      %p216 = scmp.ne.s32.totalorder %s204, %s205
      %p217 = scmp.eq.s32.totalorder %s38, 1
      %p218 = por %p216, %p217
      %p220 = scmp.ne.s32.totalorder %s205, %s219
      %p221 = scmp.eq.s32.totalorder %s38, 0
      %p222 = por %p220, %p221
      %s224 = sadd.s32 %s223, 1
      %p227 = scmp.eq.s32.totalorder %s32, 1
      %p228 = scmp.ne.s32.totalorder %s223, %s225
      %p229 = scmp.eq.s32.totalorder %s32, 0
      %p230 = por %p228, %p229
      %p231 = scmp.ne.s32.totalorder %s223, %s225
      %p232 = scmp.eq.s32.totalorder %s37, 1
      %p233 = por %p231, %p232
      %p234 = scmp.ne.s32.totalorder %s225, %s226
      %p235 = scmp.eq.s32.totalorder %s37, 0
      %p236 = por %p234, %p235
      %p237 = scmp.ne.s32.totalorder %s225, %s226
      %p238 = scmp.eq.s32.totalorder %s38, 1
      %p239 = por %p237, %p238
      %p241 = scmp.ne.s32.totalorder %s226, %s240
      %p242 = scmp.eq.s32.totalorder %s38, 0
      %p243 = por %p241, %p242
      %s245 = sadd.s32 %s244, 1
      %p248 = scmp.eq.s32.totalorder %s32, 1
      %p249 = scmp.ne.s32.totalorder %s244, %s246
      %p250 = scmp.eq.s32.totalorder %s32, 0
      %p251 = por %p249, %p250
      %p252 = scmp.ne.s32.totalorder %s244, %s246
      %p253 = scmp.eq.s32.totalorder %s37, 1
      %p254 = por %p252, %p253
      %p255 = scmp.ne.s32.totalorder %s246, %s247
      %p256 = scmp.eq.s32.totalorder %s37, 0
      %p257 = por %p255, %p256
      %p258 = scmp.ne.s32.totalorder %s246, %s247
      %p259 = scmp.eq.s32.totalorder %s38, 1
      %p260 = por %p258, %p259
      %p262 = scmp.ne.s32.totalorder %s247, %s261
      %p263 = scmp.eq.s32.totalorder %s38, 0
      %p264 = por %p262, %p263
      %s266 = sadd.s32 %s265, 1
      %p269 = scmp.eq.s32.totalorder %s32, 1
      %p270 = scmp.ne.s32.totalorder %s265, %s267
      %p271 = scmp.eq.s32.totalorder %s32, 0
      %p272 = por %p270, %p271
      %p273 = scmp.ne.s32.totalorder %s265, %s267
      %p274 = scmp.eq.s32.totalorder %s37, 1
      %p275 = por %p273, %p274
      %p276 = scmp.ne.s32.totalorder %s267, %s268
      %p277 = scmp.eq.s32.totalorder %s37, 0
      %p278 = por %p276, %p277
      %p279 = scmp.ne.s32.totalorder %s267, %s268
      %p280 = scmp.eq.s32.totalorder %s38, 1
      %p281 = por %p279, %p280
      %p283 = scmp.ne.s32.totalorder %s268, %s282
      %p284 = scmp.eq.s32.totalorder %s38, 0
      %p285 = por %p283, %p284
      %s286 = ssub.s32 %s39, %s51
      %s287 = ssub.s32 %s40, %s47
      %s288 = sor.u32 %s286, %s287
      %p289 = scmp.eq.s32.totalorder %s288, 0
      %s291 = sadd.s32 %s290, 1
      %s292 = scalar_select %p289, %s290, %s291
      %p295 = pneg %p289
      %p296 = scmp.eq.s32.totalorder %s32, 1
      %p297 = por %p295, %p296
      %p298 = scmp.ne.s32.totalorder %s290, %s293
      %p299 = scmp.eq.s32.totalorder %s32, 0
      %p300 = por %p298, %p299
      %p301 = scmp.ne.s32.totalorder %s290, %s293
      %p302 = scmp.eq.s32.totalorder %s37, 1
      %p303 = por %p301, %p302
      %p304 = scmp.ne.s32.totalorder %s293, %s294
      %p305 = scmp.eq.s32.totalorder %s37, 0
      %p306 = por %p304, %p305
      %p307 = scmp.ne.s32.totalorder %s293, %s294
      %p308 = scmp.eq.s32.totalorder %s38, 1
      %p309 = por %p307, %p308
      %p311 = scmp.ne.s32.totalorder %s294, %s310
      %p312 = scmp.eq.s32.totalorder %s38, 0
      %p313 = por %p311, %p312
      %s314 = ssub.s32 %s39, %s51
      %s315 = ssub.s32 %s40, %s47
      %s316 = sor.u32 %s314, %s315
      %p317 = scmp.eq.s32.totalorder %s316, 0
      %s319 = sadd.s32 %s318, 1
      %s320 = scalar_select %p317, %s318, %s319
      %p323 = pneg %p317
      %p324 = scmp.eq.s32.totalorder %s32, 1
      %p325 = por %p323, %p324
      %p326 = scmp.ne.s32.totalorder %s318, %s321
      %p327 = scmp.eq.s32.totalorder %s32, 0
      %p328 = por %p326, %p327
      %p329 = scmp.ne.s32.totalorder %s318, %s321
      %p330 = scmp.eq.s32.totalorder %s37, 1
      %p331 = por %p329, %p330
      %p332 = scmp.ne.s32.totalorder %s321, %s322
      %p333 = scmp.eq.s32.totalorder %s37, 0
      %p334 = por %p332, %p333
      %p335 = scmp.ne.s32.totalorder %s321, %s322
      %p336 = scmp.eq.s32.totalorder %s38, 1
      %p337 = por %p335, %p336
      %p339 = scmp.ne.s32.totalorder %s322, %s338
      %p340 = scmp.eq.s32.totalorder %s38, 0
      %p341 = por %p339, %p340
      %p342 = scmp.le.s32.totalorder 1, %s32
      %p343 = scmp.lt.s32.totalorder %s32, 3
      %p344 = pnand %p342, %p343
      %p345 = pneg %p344
      // Predicated region
      $region9: #{tpu_custom_call.1} parent=5 // pred_check
        _
      $region10: #{tpu_custom_call.1} parent=5 // pred_check_branch
        %347 = sbr.rel (%p344) target = $region12
      $region11: #{tpu_custom_call.1} parent=5 // pred_region
        %s348 = ssub.s32 %s32, 1
        // Predicated region
        $region13: #{tpu_custom_call.1} parent=11 // pred_check
          %p349 = pneg %p173
        $region14: #{tpu_custom_call.1} parent=11 // pred_check_branch
          %351 = sbr.rel (%p349) target = $region16
        $region15: #{tpu_custom_call.1} parent=11 // pred_region
          %s353 = ssub.s32 16, 16
          %354 = vsyncadd [#allocation6], %s353
          %s356 = sshll.u32 [#allocation7], 4
          %s357 = int_to_ptr.vmem [resolvable:$true] %s356
          %359 = dma.hbm_to_vmem [thread:$0]  %s4, 16, %s357, [#allocation6]
        $region16: #{tpu_custom_call.1} parent=11 // pred_fallthru
          _
        // Predicated region
        $region17: #{tpu_custom_call.1} parent=11 // pred_check
          %p360 = pneg %p194
        $region18: #{tpu_custom_call.1} parent=11 // pred_check_branch
          %362 = sbr.rel (%p360) target = $region20
        $region19: #{tpu_custom_call.1} parent=11 // pred_region
          %s364 = ssub.s32 16, 16
          %365 = vsyncadd [#allocation9], %s364
          %s367 = sshll.u32 [#allocation8], 4
          %s368 = int_to_ptr.vmem [resolvable:$true] %s367
          %370 = dma.hbm_to_vmem [thread:$0]  %s5, 16, %s368, [#allocation9]
        $region20: #{tpu_custom_call.1} parent=11 // pred_fallthru
          _
        // Predicated region
        $region21: #{tpu_custom_call.1} parent=11 // pred_check
          %p371 = pneg %p215
        $region22: #{tpu_custom_call.1} parent=11 // pred_check_branch
          %373 = sbr.rel (%p371) target = $region24
        $region23: #{tpu_custom_call.1} parent=11 // pred_region
          %s375 = ssub.s32 256, 256
          %376 = vsyncadd [#allocation9], %s375
          %s377 = sshll.u32 [#allocation10], 4
          %s378 = int_to_ptr.vmem [resolvable:$true] %s377
          %383 = dma.hbm_to_vmem [thread:$0]  %s6, 256, %s378, [#allocation9], 64, 64, 4
        $region24: #{tpu_custom_call.1} parent=11 // pred_fallthru
          _
        // Predicated region
        $region25: #{tpu_custom_call.1} parent=11 // pred_check
          %p384 = pneg %p236
        $region26: #{tpu_custom_call.1} parent=11 // pred_check_branch
          %386 = sbr.rel (%p384) target = $region28
        $region27: #{tpu_custom_call.1} parent=11 // pred_region
          %s388 = ssub.s32 16, 16
          %389 = vsyncadd [#allocation12], %s388
          %s391 = sshll.u32 [#allocation11], 4
          %s392 = int_to_ptr.vmem [resolvable:$true] %s391
          %394 = dma.hbm_to_vmem [thread:$0]  %s7, 16, %s392, [#allocation12]
        $region28: #{tpu_custom_call.1} parent=11 // pred_fallthru
          _
        // Predicated region
        $region29: #{tpu_custom_call.1} parent=11 // pred_check
          %p395 = pneg %p257
        $region30: #{tpu_custom_call.1} parent=11 // pred_check_branch
          %397 = sbr.rel (%p395) target = $region32
        $region31: #{tpu_custom_call.1} parent=11 // pred_region
          _
        $region32: #{tpu_custom_call.1} parent=11 // pred_fallthru
          _
        // Predicated region
        $region33: #{tpu_custom_call.1} parent=11 // pred_check
          %p398 = pneg %p278
        $region34: #{tpu_custom_call.1} parent=11 // pred_check_branch
          %400 = sbr.rel (%p398) target = $region36
        $region35: #{tpu_custom_call.1} parent=11 // pred_region
          _
        $region36: #{tpu_custom_call.1} parent=11 // pred_fallthru
          _
      $region12: #{tpu_custom_call.1} parent=5 // pred_fallthru
        _
      %p401 = scmp.lt.s32.totalorder %s32, 2
      // Predicated region
      $region37: #{tpu_custom_call.1} parent=5 // pred_check
        %p402 = pneg %p401
      $region38: #{tpu_custom_call.1} parent=5 // pred_check_branch
        %404 = sbr.rel (%p402) target = $region40
      $region39: #{tpu_custom_call.1} parent=5 // pred_region
        // Predicated region
        $region41: #{tpu_custom_call.1} parent=39 // pred_check
          %p405 = pneg %p66
        $region42: #{tpu_custom_call.1} parent=39 // pred_check_branch
          %407 = sbr.rel (%p405) target = $region44
        $region43: #{tpu_custom_call.1} parent=39 // pred_region
          %p408 = scmp.lt.s32.totalorder %s39, 1
          %s409 = scalar_select %p408, %s39, 1
          %p410 = scmp.lt.s32.totalorder %s40, 0
          %s411 = scalar_select %p410, %s40, 0
          %s412 = sadd.s32 %s411, %s409
          %s413 = smul.addr %s412, 8
          %s414 = scalar_lea.vmem %s0, %s413
        $region44: #{tpu_custom_call.1} parent=39 // pred_fallthru
          _
        // Predicated region
        $region45: #{tpu_custom_call.1} parent=39 // pred_check
          %p415 = pneg %p94
        $region46: #{tpu_custom_call.1} parent=39 // pred_check_branch
          %417 = sbr.rel (%p415) target = $region48
        $region47: #{tpu_custom_call.1} parent=39 // pred_region
          %p418 = scmp.lt.s32.totalorder %s39, 1
          %s419 = scalar_select %p418, %s39, 1
          %p420 = scmp.lt.s32.totalorder %s40, 0
          %s421 = scalar_select %p420, %s40, 0
          %s422 = sadd.s32 %s421, %s419
          %s423 = smul.addr %s422, 8
          %s424 = scalar_lea.vmem %s1, %s423
        $region48: #{tpu_custom_call.1} parent=39 // pred_fallthru
          _
        // Predicated region
        $region49: #{tpu_custom_call.1} parent=39 // pred_check
          %p425 = pneg %p120
        $region50: #{tpu_custom_call.1} parent=39 // pred_check_branch
          %427 = sbr.rel (%p425) target = $region52
        $region51: #{tpu_custom_call.1} parent=39 // pred_region
          %s428 = sand.u32 %s110, 1
          %s429 = scalar_lea.sflag [#allocation3], %s428
          %s430 = sand.u32 %s110, 1
          %s431 = smul.addr %s430, 8
          %s432 = scalar_lea.vmem [#allocation2], %s431
          %s434 = ssub.s32 128, 128
          %435 = vsyncadd %s429, %s434
          %s436 = smul.addr %s39, 2
          %s437 = smul.addr %s436, 64
          %s438 = scalar_lea.hbm %s2, %s437
          %s439 = sshll.u32 %s432, 4
          %s440 = int_to_ptr.vmem [resolvable:$true] %s439
          %445 = dma.hbm_to_vmem [thread:$0]  %s438, 128, %s440, %s429, 64, 64, 4
        $region52: #{tpu_custom_call.1} parent=39 // pred_fallthru
          _
        // Predicated region
        $region53: #{tpu_custom_call.1} parent=39 // pred_check
          %p446 = pneg %p146
        $region54: #{tpu_custom_call.1} parent=39 // pred_check_branch
          %448 = sbr.rel (%p446) target = $region56
        $region55: #{tpu_custom_call.1} parent=39 // pred_region
          %s449 = sand.u32 %s32, 1
          %s450 = scalar_lea.sflag [#allocation6], %s449
          %s451 = sand.u32 %s136, 1
          %s452 = smul.addr %s451, 8
          %s453 = scalar_lea.vmem [#allocation5], %s452
          %s455 = ssub.s32 128, 128
          %456 = vsyncadd %s450, %s455
          %s457 = smul.addr %s39, 2
          %s458 = smul.addr %s457, 64
          %s459 = scalar_lea.hbm %s3, %s458
          %s460 = sshll.u32 %s453, 4
          %s461 = int_to_ptr.vmem [resolvable:$true] %s460
          %466 = dma.hbm_to_vmem [thread:$0]  %s459, 128, %s461, %s450, 64, 64, 4
        $region56: #{tpu_custom_call.1} parent=39 // pred_fallthru
          _
      $region40: #{tpu_custom_call.1} parent=5 // pred_fallthru
        _
      %p467 = scmp.le.s32.totalorder 1, %s32
      %p468 = scmp.lt.s32.totalorder %s32, 3
      %p469 = pnand %p467, %p468
      %p470 = pneg %p469
      // Predicated region
      $region57: #{tpu_custom_call.1} parent=5 // pred_check
        _
      $region58: #{tpu_custom_call.1} parent=5 // pred_check_branch
        %472 = sbr.rel (%p469) target = $region60
      $region59: #{tpu_custom_call.1} parent=5 // pred_region
        %s473 = ssub.s32 %s32, 1
        %s474 = sand.u32 %s113, 1
        %s475 = scalar_lea.sflag [#allocation3], %s474
        %s476 = sand.u32 %s113, 1
        %s477 = smul.addr %s476, 8
        %s478 = scalar_lea.vmem [#allocation2], %s477
        // Predicated region
        $region61: #{tpu_custom_call.1} parent=59 // pred_check
          %p479 = pneg %p126
        $region62: #{tpu_custom_call.1} parent=59 // pred_check_branch
          %481 = sbr.rel (%p479) target = $region64
        $region63: #{tpu_custom_call.1} parent=59 // pred_region
          %482 = dma.done %s475, 128
        $region64: #{tpu_custom_call.1} parent=59 // pred_fallthru
          _
        %s483 = sand.u32 %s37, 1
        %s484 = scalar_lea.sflag [#allocation6], %s483
        %s485 = sand.u32 %s139, 1
        %s486 = smul.addr %s485, 8
        %s487 = scalar_lea.vmem [#allocation5], %s486
        // Predicated region
        $region65: #{tpu_custom_call.1} parent=59 // pred_check
          %p488 = pneg %p152
        $region66: #{tpu_custom_call.1} parent=59 // pred_check_branch
          %490 = sbr.rel (%p488) target = $region68
        $region67: #{tpu_custom_call.1} parent=59 // pred_region
          %491 = dma.done %s484, 128
        $region68: #{tpu_custom_call.1} parent=59 // pred_fallthru
          _
        // Predicated region
        $region69: #{tpu_custom_call.1} parent=59 // pred_check
          %p492 = pneg %p173
        $region70: #{tpu_custom_call.1} parent=59 // pred_check_branch
          %494 = sbr.rel (%p492) target = $region72
        $region71: #{tpu_custom_call.1} parent=59 // pred_region
          %495 = dma.done [#allocation6], 16
        $region72: #{tpu_custom_call.1} parent=59 // pred_fallthru
          _
        // Predicated region
        $region73: #{tpu_custom_call.1} parent=59 // pred_check
          %p496 = pneg %p194
        $region74: #{tpu_custom_call.1} parent=59 // pred_check_branch
          %498 = sbr.rel (%p496) target = $region76
        $region75: #{tpu_custom_call.1} parent=59 // pred_region
          %499 = dma.done [#allocation9], 16
        $region76: #{tpu_custom_call.1} parent=59 // pred_fallthru
          _
        // Predicated region
        $region77: #{tpu_custom_call.1} parent=59 // pred_check
          %p500 = pneg %p215
        $region78: #{tpu_custom_call.1} parent=59 // pred_check_branch
          %502 = sbr.rel (%p500) target = $region80
        $region79: #{tpu_custom_call.1} parent=59 // pred_region
          %503 = dma.done [#allocation9], 256
        $region80: #{tpu_custom_call.1} parent=59 // pred_fallthru
          _
        // Predicated region
        $region81: #{tpu_custom_call.1} parent=59 // pred_check
          %p504 = pneg %p236
        $region82: #{tpu_custom_call.1} parent=59 // pred_check_branch
          %506 = sbr.rel (%p504) target = $region84
        $region83: #{tpu_custom_call.1} parent=59 // pred_region
          %507 = dma.done [#allocation12], 16
        $region84: #{tpu_custom_call.1} parent=59 // pred_fallthru
          _
        %p508 = scmp.lt.s32.totalorder %s41, 1
        %s509 = scalar_select %p508, %s41, 1
        %p510 = scmp.lt.s32.totalorder %s42, 0
        %s511 = scalar_select %p510, %s42, 0
        %s512 = sadd.s32 %s511, %s509
        %s513 = smul.addr %s512, 8
        %s514 = scalar_lea.vmem %s0, %s513
        %p515 = pneg %p72
        %p516 = pneg %p69
        %p517 = scmp.lt.s32.totalorder %s41, 1
        %s518 = scalar_select %p517, %s41, 1
        %p519 = scmp.lt.s32.totalorder %s42, 0
        %s520 = scalar_select %p519, %s42, 0
        %s521 = sadd.s32 %s520, %s518
        %s522 = smul.addr %s521, 8
        %s523 = scalar_lea.vmem %s1, %s522
        %p524 = pneg %p100
        %p525 = pneg %p97
        %s526 = sand.u32 %s113, 1
        %s527 = scalar_lea.sflag [#allocation3], %s526
        %s528 = sand.u32 %s113, 1
        %s529 = smul.addr %s528, 8
        %s530 = scalar_lea.vmem [#allocation2], %s529
        %p531 = pneg %p126
        %p532 = pneg %p123
        %s533 = sand.u32 %s37, 1
        %s534 = scalar_lea.sflag [#allocation6], %s533
        %s535 = sand.u32 %s139, 1
        %s536 = smul.addr %s535, 8
        %s537 = scalar_lea.vmem [#allocation5], %s536
        %p538 = pneg %p152
        %p539 = pneg %p149
        %p540 = pneg %p173
        %p541 = pneg %p170
        %p542 = pneg %p194
        %p543 = pneg %p191
        %p544 = pneg %p215
        %p545 = pneg %p212
        %p546 = pneg %p236
        %p547 = pneg %p233
        %p548 = pneg %p257
        %p549 = pneg %p254
        %p550 = pneg %p278
        %p551 = pneg %p275
        %p552 = pneg %p306
        %p553 = pneg %p303
        %s554 = sand.u32 %s293, 1
        %s555 = scalar_lea.sflag [#allocation4], %s554
        %s556 = sand.u32 %s293, 1
        %s557 = smul.addr %s556, 8
        %s558 = scalar_lea.vmem [#allocation13], %s557
        %p559 = pneg %p334
        %p560 = pneg %p331
        %s561 = sand.u32 %s321, 1
        %s562 = scalar_lea.sflag [#allocation15], %s561
        %s563 = sand.u32 %s321, 1
        %s564 = smul.addr %s563, 8
        %s565 = scalar_lea.vmem [#allocation14], %s564
        %p566 = scmp.lt.s32.totalorder %s41, 1
        %s567 = scalar_select %p566, %s41, 1
        %p568 = scmp.lt.s32.totalorder %s42, 0
        %s569 = scalar_select %p568, %s42, 0
        %s570 = sadd.s32 %s569, %s567
        %s571 = smul.addr %s570, 8
        %s572 = scalar_lea.vmem %s0, %s571
        %p573 = scmp.lt.s32.totalorder %s41, 1
        %s574 = scalar_select %p573, %s41, 1
        %p575 = scmp.lt.s32.totalorder %s42, 0
        %s576 = scalar_select %p575, %s42, 0
        %s577 = sadd.s32 %s576, %s574
        %s578 = smul.addr %s577, 8
        %s579 = scalar_lea.vmem %s1, %s578
        %v581 = vld [vmem:[%s572] sm:$0xff]
        %v582 = vld [vmem:[#allocation7] sm:$0x1]
        %v583 = vld [vmem:[#allocation8] sm:$0x1]
        %vm584 = vcmask 261120
        %v585 = vsel %vm584, %v581, 0.0
        %586 = vadd.xlane.f32.xlu0 %v585
        %v587 = vpop.xlane.xlu0 %586
        %v588 = vrcp.pop 32.0
        %v589 = vmul.f32 %v587, %v588
        %v590 = vsub.f32 %v581, %v589
        %v591 = vmul.f32 %v590, %v590
        %v592 = vsel %vm584, %v591, 0.0
        %593 = vadd.xlane.f32.xlu0 %v592
        %v594 = vpop.xlane.xlu0 %593
        %v595 = vmul.f32 %v594, %v588
        %v596 = vadd.f32 %v595, 1e-05
        %v597 = vrsqrt.pop %v596
        %v598 = vmul.f32 %v590, %v597
        %v600 = vlaneseq
        %v601 = vshrl.u32 %v600, 7
        %v602 = vsub.s32 0, %v601
        %v603 = vrot.slane %v582, %v602
        %v605 = vmul.f32 %v598, %v603
        %v607 = vlaneseq
        %v608 = vshrl.u32 %v607, 7
        %v609 = vsub.s32 0, %v608
        %v610 = vrot.slane %v583, %v609
        %v612 = vadd.f32 %v605, %v610
        %v613 = vpack.c.bf16 %v612, %v612
        %v614 = vld [vmem:[#allocation10] sm:$0xf]
        %v615 = vld [vmem:[#allocation10 + $0x4] sm:$0xf]
        %v616 = vld [vmem:[#allocation10 + $0x8] sm:$0xf]
        %v617 = vld [vmem:[#allocation10 + $0xc] sm:$0xf]
        %v618 = vld [vmem:[#allocation11] sm:$0x1]
        %v620 = vlaneseq
        %v621 = vshrl.u32 %v620, 7
        %v622 = vsub.s32 0, %v621
        %v623 = vrot.slane %v618, %v622
        %v629 = vunpack.c.l.b16 %v614
        %v630 = vunpack.c.l.b16 %v615
        %v631 = vunpack.c.l.b16 %v616
        %v632 = vunpack.c.l.b16 %v617
        %v633 = vpack.c.b16 %v630, %v629
        %v634 = vpack.c.b16 %v632, %v631
        %v638 = vsel %vm584, %v613, 0
        %640 = vmatprep.subr.bf16.mxu0 0
        %641 = vmatpush1.bf16.msra.mxu0 0
        %642 = vmatprep.subr.bf16.mxu0 0
        %643 = vmatpush1.bf16.msra.mxu0 0
        %644 = vmatprep.subr.bf16.mxu0 0
        %645 = vmatpush1.bf16.msra.mxu0 0
        %646 = vmatprep.subr.bf16.mxu0 0
        %647 = vmatpush1.bf16.msra.mxu0 0
        %648 = vmatprep.subr.bf16.mxu0 0
        %649 = vmatpush1.bf16.msra.mxu0 0
        %650 = vmatprep.subr.bf16.mxu0 0
        %651 = vmatpush1.bf16.msra.mxu0 0
        %652 = vmatprep.subr.bf16.mxu0 0
        %653 = vmatpush1.bf16.msra.mxu0 %v634
        %654 = vmatprep.subr.bf16.mxu0 0
        %655 = vmatpush1.bf16.msra.mxu0 %v633
        %656 = vmatprep.subr.bf16.mxu0 0
        %657 = vmatpush2.bf16.msra.mxu0 0
        %658 = vmatprep.subr.bf16.mxu0 0
        %659 = vmatpush2.bf16.msra.mxu0 0
        %660 = vmatprep.subr.bf16.mxu0 0
        %661 = vmatpush2.bf16.msra.mxu0 0
        %662 = vmatprep.subr.bf16.mxu0 0
        %663 = vmatpush2.bf16.msra.mxu0 0
        %664 = vmatprep.subr.bf16.mxu0 0
        %665 = vmatpush2.bf16.msra.mxu0 0
        %666 = vmatprep.subr.bf16.mxu0 0
        %667 = vmatpush2.bf16.msra.mxu0 0
        %668 = vmatprep.subr.bf16.mxu0 0
        %669 = vmatpush2.bf16.msra.mxu0 0
        %670 = vmatprep.subr.bf16.mxu0 0
        %671 = vmatpush2.bf16.msra.mxu0 0
        %672 = vmatprep.mubr.bf16.mxu0 0
        %673 = vmatmul.mubr.bf16.gmra.mxu0 %v638
        %v674 = vpop.f32.mrf.mxu0
        %v675 = vadd.f32 %v623, %v674
        %v676 = vpop.f32.mrf.mxu0
        %v677 = vpop.f32.mrf.mxu0
        %v678 = vpop.f32.mrf.mxu0
        %679 = vdwg.mxu0
        %v680 = vmul.f32 %v675, 0.25
        %682 = vrot.lane.b32.xlu0 %v680, 112
        %v683 = vpop.permute.xlu0 %682
        %v685 = vcombine.high %v680, 0.0
        %v687 = vunpack.c.l.s4 1983009808
        %v688 = vunpack.c.0.s8 %v687
        %v689 = vlaneseq
        %v690 = vshrl.u32 %v689, 7
        %v691 = vsub.s32 %v688, %v690
        %v692 = vrot.slane %v680, %v691
        %v694 = vunpack.c.l.s4 1983009808
        %v695 = vunpack.c.0.s8 %v694
        %v696 = vlaneseq
        %v697 = vshrl.u32 %v696, 7
        %v698 = vsub.s32 %v695, %v697
        %v699 = vrot.slane %v685, %v698
        %v700 = vcombine.high %v683, 0.0
        %v702 = vunpack.c.l.s4 1983009808
        %v703 = vunpack.c.0.s8 %v702
        %v704 = vlaneseq
        %v705 = vshrl.u32 %v704, 7
        %v706 = vsub.s32 %v703, %v705
        %v707 = vrot.slane %v683, %v706
        %v709 = vunpack.c.l.s4 1983009808
        %v710 = vunpack.c.0.s8 %v709
        %v711 = vlaneseq
        %v712 = vshrl.u32 %v711, 7
        %v713 = vsub.s32 %v710, %v712
        %v714 = vrot.slane %v700, %v713
        %v715 = vcombine.low %v692, %v707
        %v716 = vcombine.high %v692, %v707
        %v718 = vunpack.c.l.s4 1934713408
        %v719 = vunpack.c.0.s8 %v718
        %v720 = vlaneseq
        %v721 = vshrl.u32 %v720, 7
        %v722 = vsub.s32 %v719, %v721
        %v723 = vrot.slane %v715, %v722
        %v725 = vunpack.c.l.s4 1934713408
        %v726 = vunpack.c.0.s8 %v725
        %v727 = vlaneseq
        %v728 = vshrl.u32 %v727, 7
        %v729 = vsub.s32 %v726, %v728
        %v730 = vrot.slane %v716, %v729
        %v731 = vcombine.low %v699, %v714
        %v732 = vcombine.high %v699, %v714
        %v734 = vunpack.c.l.s4 1934713408
        %v735 = vunpack.c.0.s8 %v734
        %v736 = vlaneseq
        %v737 = vshrl.u32 %v736, 7
        %v738 = vsub.s32 %v735, %v737
        %v739 = vrot.slane %v731, %v738
        %v741 = vunpack.c.l.s4 1934713408
        %v742 = vunpack.c.0.s8 %v741
        %v743 = vlaneseq
        %v744 = vshrl.u32 %v743, 7
        %v745 = vsub.s32 %v742, %v744
        %v746 = vrot.slane %v732, %v745
        %v747 = vcombine.high %v723, 0.0
        %v748 = vcombine.high %v730, 0.0
        %v749 = vcombine.high %v739, 0.0
        %v750 = vcombine.high %v746, 0.0
        %v751 = vcombine.low %v723, %v730
        %v753 = vunpack.c.l.s4 1983009808
        %v754 = vunpack.c.0.s8 %v753
        %v755 = vlaneseq
        %v756 = vshrl.u32 %v755, 7
        %v757 = vsub.s32 %v754, %v756
        %v758 = vrot.slane %v751, %v757
        %v759 = vcombine.low %v747, %v748
        %v761 = vunpack.c.l.s4 1983009808
        %v762 = vunpack.c.0.s8 %v761
        %v763 = vlaneseq
        %v764 = vshrl.u32 %v763, 7
        %v765 = vsub.s32 %v762, %v764
        %v766 = vrot.slane %v759, %v765
        %v767 = vcombine.low %v739, %v746
        %v769 = vunpack.c.l.s4 1983009808
        %v770 = vunpack.c.0.s8 %v769
        %v771 = vlaneseq
        %v772 = vshrl.u32 %v771, 7
        %v773 = vsub.s32 %v770, %v772
        %v774 = vrot.slane %v767, %v773
        %v775 = vcombine.low %v749, %v750
        %v777 = vunpack.c.l.s4 1983009808
        %v778 = vunpack.c.0.s8 %v777
        %v779 = vlaneseq
        %v780 = vshrl.u32 %v779, 7
        %v781 = vsub.s32 %v778, %v780
        %v782 = vrot.slane %v775, %v781
        %v783 = vcombine.low %v758, %v766
        %v785 = vunpack.c.l.s4 1934713408
        %v786 = vunpack.c.0.s8 %v785
        %v787 = vlaneseq
        %v788 = vshrl.u32 %v787, 7
        %v789 = vsub.s32 %v786, %v788
        %v790 = vrot.slane %v783, %v789
        %v791 = vcombine.low %v774, %v782
        %v793 = vunpack.c.l.s4 1934713408
        %v794 = vunpack.c.0.s8 %v793
        %v795 = vlaneseq
        %v796 = vshrl.u32 %v795, 7
        %v797 = vsub.s32 %v794, %v796
        %v798 = vrot.slane %v791, %v797
        %v799 = vcombine.low %v790, %v798
        %v800 = vcombine.high %v790, %v798
        %v801 = vpack.c.bf16 %v799, %v799
        %v802 = vpack.c.bf16 %v800, %v800
        %v803 = vld [vmem:[%s478] sm:$0xf]
        %v804 = vld [vmem:[%s478 + $0x4] sm:$0xf]
        %v805 = vld [vmem:[%s487] sm:$0xf]
        %v806 = vld [vmem:[%s487 + $0x4] sm:$0xf]
        %vm807 = vcmask 130048
        %v809 = vsel %vm807, %v801, 0
        %v812 = vsel %vm807, %v803, 0
        %814 = vmatprep.subr.bf16.mxu0 0
        %815 = vmatpush1.bf16.xpose.msra.mxu0 0
        %816 = vmatprep.subr.bf16.mxu0 0
        %817 = vmatpush1.bf16.xpose.msra.mxu0 0
        %818 = vmatprep.subr.bf16.mxu0 0
        %819 = vmatpush1.bf16.xpose.msra.mxu0 0
        %820 = vmatprep.subr.bf16.mxu0 0
        %821 = vmatpush1.bf16.xpose.msra.mxu0 0
        %822 = vmatprep.subr.bf16.mxu0 0
        %823 = vmatpush1.bf16.xpose.msra.mxu0 0
        %824 = vmatprep.subr.bf16.mxu0 0
        %825 = vmatpush1.bf16.xpose.msra.mxu0 0
        %826 = vmatprep.subr.bf16.mxu0 0
        %827 = vmatpush1.bf16.xpose.msra.mxu0 0
        %828 = vmatprep.subr.bf16.mxu0 0
        %829 = vmatpush1.bf16.xpose.msra.mxu0 %v812
        %830 = vmatprep.subr.bf16.mxu0 0
        %831 = vmatpush2.bf16.xpose.msra.mxu0 0
        %832 = vmatprep.subr.bf16.mxu0 0
        %833 = vmatpush2.bf16.xpose.msra.mxu0 0
        %834 = vmatprep.subr.bf16.mxu0 0
        %835 = vmatpush2.bf16.xpose.msra.mxu0 0
        %836 = vmatprep.subr.bf16.mxu0 0
        %837 = vmatpush2.bf16.xpose.msra.mxu0 0
        %838 = vmatprep.subr.bf16.mxu0 0
        %839 = vmatpush2.bf16.xpose.msra.mxu0 0
        %840 = vmatprep.subr.bf16.mxu0 0
        %841 = vmatpush2.bf16.xpose.msra.mxu0 0
        %842 = vmatprep.subr.bf16.mxu0 0
        %843 = vmatpush2.bf16.xpose.msra.mxu0 0
        %844 = vmatprep.subr.bf16.mxu0 0
        %845 = vmatpush2.bf16.xpose.msra.mxu0 0
        %846 = vmatprep.mubr.bf16.mxu0 0
        %847 = vmatmul.mubr.bf16.gmra.mxu0 %v809
        %v848 = vpop.f32.mrf.mxu0
        %v849 = vadd.f32 0.0, %v848
        %v850 = vpop.f32.mrf.mxu0
        %v851 = vpop.f32.mrf.mxu0
        %v852 = vpop.f32.mrf.mxu0
        %853 = vdwg.mxu0
        %v855 = vsel %vm807, %v802, 0
        %v858 = vsel %vm807, %v804, 0
        %860 = vmatprep.subr.bf16.mxu0 0
        %861 = vmatpush1.bf16.xpose.msra.mxu0 0
        %862 = vmatprep.subr.bf16.mxu0 0
        %863 = vmatpush1.bf16.xpose.msra.mxu0 0
        %864 = vmatprep.subr.bf16.mxu0 0
        %865 = vmatpush1.bf16.xpose.msra.mxu0 0
        %866 = vmatprep.subr.bf16.mxu0 0
        %867 = vmatpush1.bf16.xpose.msra.mxu0 0
        %868 = vmatprep.subr.bf16.mxu0 0
        %869 = vmatpush1.bf16.xpose.msra.mxu0 0
        %870 = vmatprep.subr.bf16.mxu0 0
        %871 = vmatpush1.bf16.xpose.msra.mxu0 0
        %872 = vmatprep.subr.bf16.mxu0 0
        %873 = vmatpush1.bf16.xpose.msra.mxu0 0
        %874 = vmatprep.subr.bf16.mxu0 0
        %875 = vmatpush1.bf16.xpose.msra.mxu0 %v858
        %876 = vmatprep.subr.bf16.mxu0 0
        %877 = vmatpush2.bf16.xpose.msra.mxu0 0
        %878 = vmatprep.subr.bf16.mxu0 0
        %879 = vmatpush2.bf16.xpose.msra.mxu0 0
        %880 = vmatprep.subr.bf16.mxu0 0
        %881 = vmatpush2.bf16.xpose.msra.mxu0 0
        %882 = vmatprep.subr.bf16.mxu0 0
        %883 = vmatpush2.bf16.xpose.msra.mxu0 0
        %884 = vmatprep.subr.bf16.mxu0 0
        %885 = vmatpush2.bf16.xpose.msra.mxu0 0
        %886 = vmatprep.subr.bf16.mxu0 0
        %887 = vmatpush2.bf16.xpose.msra.mxu0 0
        %888 = vmatprep.subr.bf16.mxu0 0
        %889 = vmatpush2.bf16.xpose.msra.mxu0 0
        %890 = vmatprep.subr.bf16.mxu0 0
        %891 = vmatpush2.bf16.xpose.msra.mxu0 0
        %892 = vmatprep.mubr.bf16.mxu0 0
        %893 = vmatmul.mubr.bf16.gmra.mxu0 %v855
        %v894 = vpop.f32.mrf.mxu0
        %v895 = vadd.f32 0.0, %v894
        %v896 = vpop.f32.mrf.mxu0
        %v897 = vpop.f32.mrf.mxu0
        %v898 = vpop.f32.mrf.mxu0
        %899 = vdwg.mxu0
        %vm900 = vcmask 64512
        %v901 = vsel %vm900, %v849, -inf
        %902 = vmax.xlane.f32.xlu0 %v901
        %v903 = vpop.xlane.xlu0 %902
        %v904 = vsel %vm900, %v895, -inf
        %905 = vmax.xlane.f32.xlu0 %v904
        %v906 = vpop.xlane.xlu0 %905
        %v907 = vsub.f32 %v849, %v903
        %v908 = vsub.f32 %v895, %v906
        %v909 = vmul.f32 %v907, 1.442695
        %v910 = vpow.pop %v909
        %v911 = vmul.f32 %v908, 1.442695
        %v912 = vpow.pop %v911
        %v913 = vsel %vm900, %v910, 0.0
        %914 = vadd.xlane.f32.xlu0 %v913
        %v915 = vpop.xlane.xlu0 %914
        %v916 = vsel %vm900, %v912, 0.0
        %917 = vadd.xlane.f32.xlu0 %v916
        %v918 = vpop.xlane.xlu0 %917
        %v919 = vrcp.pop %v915
        %v920 = vrcp.pop %v918
        %v921 = vmul.f32 %v910, %v919
        %v922 = vmul.f32 %v912, %v920
        %v923 = vpack.c.bf16 %v921, %v921
        %v924 = vpack.c.bf16 %v922, %v922
        %vm925 = vcmask 60416
        %926 = vst.msk [vmem:[%s565] sm:$0xf] %vm925, %v923
        %927 = vst.msk [vmem:[%s565 + $0x4] sm:$0xf] %vm925, %v924
        %v929 = vsel %vm900, %v923, 0
        %vm931 = vcmask 1043456
        %v933 = vsel %vm931, %v805, 0
        %935 = vmatprep.subr.bf16.mxu0 0
        %936 = vmatpush1.bf16.msra.mxu0 0
        %937 = vmatprep.subr.bf16.mxu0 0
        %938 = vmatpush1.bf16.msra.mxu0 0
        %939 = vmatprep.subr.bf16.mxu0 0
        %940 = vmatpush1.bf16.msra.mxu0 0
        %941 = vmatprep.subr.bf16.mxu0 0
        %942 = vmatpush1.bf16.msra.mxu0 0
        %943 = vmatprep.subr.bf16.mxu0 0
        %944 = vmatpush1.bf16.msra.mxu0 0
        %945 = vmatprep.subr.bf16.mxu0 0
        %946 = vmatpush1.bf16.msra.mxu0 0
        %947 = vmatprep.subr.bf16.mxu0 0
        %948 = vmatpush1.bf16.msra.mxu0 0
        %949 = vmatprep.subr.bf16.mxu0 0
        %950 = vmatpush1.bf16.msra.mxu0 %v933
        %951 = vmatprep.subr.bf16.mxu0 0
        %952 = vmatpush2.bf16.msra.mxu0 0
        %953 = vmatprep.subr.bf16.mxu0 0
        %954 = vmatpush2.bf16.msra.mxu0 0
        %955 = vmatprep.subr.bf16.mxu0 0
        %956 = vmatpush2.bf16.msra.mxu0 0
        %957 = vmatprep.subr.bf16.mxu0 0
        %958 = vmatpush2.bf16.msra.mxu0 0
        %959 = vmatprep.subr.bf16.mxu0 0
        %960 = vmatpush2.bf16.msra.mxu0 0
        %961 = vmatprep.subr.bf16.mxu0 0
        %962 = vmatpush2.bf16.msra.mxu0 0
        %963 = vmatprep.subr.bf16.mxu0 0
        %964 = vmatpush2.bf16.msra.mxu0 0
        %965 = vmatprep.subr.bf16.mxu0 0
        %966 = vmatpush2.bf16.msra.mxu0 0
        %967 = vmatprep.mubr.bf16.mxu0 0
        %968 = vmatmul.mubr.bf16.gmra.mxu0 %v929
        %v969 = vpop.f32.mrf.mxu0
        %v970 = vadd.f32 0.0, %v969
        %v971 = vpop.f32.mrf.mxu0
        %v972 = vpop.f32.mrf.mxu0
        %v973 = vpop.f32.mrf.mxu0
        %974 = vdwg.mxu0
        %v976 = vsel %vm900, %v924, 0
        %v979 = vsel %vm931, %v806, 0
        %981 = vmatprep.subr.bf16.mxu0 0
        %982 = vmatpush1.bf16.msra.mxu0 0
        %983 = vmatprep.subr.bf16.mxu0 0
        %984 = vmatpush1.bf16.msra.mxu0 0
        %985 = vmatprep.subr.bf16.mxu0 0
        %986 = vmatpush1.bf16.msra.mxu0 0
        %987 = vmatprep.subr.bf16.mxu0 0
        %988 = vmatpush1.bf16.msra.mxu0 0
        %989 = vmatprep.subr.bf16.mxu0 0
        %990 = vmatpush1.bf16.msra.mxu0 0
        %991 = vmatprep.subr.bf16.mxu0 0
        %992 = vmatpush1.bf16.msra.mxu0 0
        %993 = vmatprep.subr.bf16.mxu0 0
        %994 = vmatpush1.bf16.msra.mxu0 0
        %995 = vmatprep.subr.bf16.mxu0 0
        %996 = vmatpush1.bf16.msra.mxu0 %v979
        %997 = vmatprep.subr.bf16.mxu0 0
        %998 = vmatpush2.bf16.msra.mxu0 0
        %999 = vmatprep.subr.bf16.mxu0 0
        %1000 = vmatpush2.bf16.msra.mxu0 0
        %1001 = vmatprep.subr.bf16.mxu0 0
        %1002 = vmatpush2.bf16.msra.mxu0 0
        %1003 = vmatprep.subr.bf16.mxu0 0
        %1004 = vmatpush2.bf16.msra.mxu0 0
        %1005 = vmatprep.subr.bf16.mxu0 0
        %1006 = vmatpush2.bf16.msra.mxu0 0
        %1007 = vmatprep.subr.bf16.mxu0 0
        %1008 = vmatpush2.bf16.msra.mxu0 0
        %1009 = vmatprep.subr.bf16.mxu0 0
        %1010 = vmatpush2.bf16.msra.mxu0 0
        %1011 = vmatprep.subr.bf16.mxu0 0
        %1012 = vmatpush2.bf16.msra.mxu0 0
        %1013 = vmatprep.mubr.bf16.mxu0 0
        %1014 = vmatmul.mubr.bf16.gmra.mxu0 %v976
        %v1015 = vpop.f32.mrf.mxu0
        %v1016 = vadd.f32 0.0, %v1015
        %v1017 = vpop.f32.mrf.mxu0
        %v1018 = vpop.f32.mrf.mxu0
        %v1019 = vpop.f32.mrf.mxu0
        %1020 = vdwg.mxu0
        %v1021 = vcombine.high %v970, 0.0
        %v1023 = vunpack.c.l.s4 1983009808
        %v1024 = vunpack.c.0.s8 %v1023
        %v1025 = vlaneseq
        %v1026 = vshrl.u32 %v1025, 7
        %v1027 = vsub.s32 %v1024, %v1026
        %v1028 = vrot.slane %v970, %v1027
        %v1030 = vunpack.c.l.s4 1983009808
        %v1031 = vunpack.c.0.s8 %v1030
        %v1032 = vlaneseq
        %v1033 = vshrl.u32 %v1032, 7
        %v1034 = vsub.s32 %v1031, %v1033
        %v1035 = vrot.slane %v1021, %v1034
        %v1036 = vcombine.high %v1016, 0.0
        %v1038 = vunpack.c.l.s4 1983009808
        %v1039 = vunpack.c.0.s8 %v1038
        %v1040 = vlaneseq
        %v1041 = vshrl.u32 %v1040, 7
        %v1042 = vsub.s32 %v1039, %v1041
        %v1043 = vrot.slane %v1016, %v1042
        %v1045 = vunpack.c.l.s4 1983009808
        %v1046 = vunpack.c.0.s8 %v1045
        %v1047 = vlaneseq
        %v1048 = vshrl.u32 %v1047, 7
        %v1049 = vsub.s32 %v1046, %v1048
        %v1050 = vrot.slane %v1036, %v1049
        %v1051 = vcombine.low %v1028, %v1043
        %v1052 = vcombine.high %v1028, %v1043
        %v1054 = vunpack.c.l.s4 1934713408
        %v1055 = vunpack.c.0.s8 %v1054
        %v1056 = vlaneseq
        %v1057 = vshrl.u32 %v1056, 7
        %v1058 = vsub.s32 %v1055, %v1057
        %v1059 = vrot.slane %v1051, %v1058
        %v1061 = vunpack.c.l.s4 1934713408
        %v1062 = vunpack.c.0.s8 %v1061
        %v1063 = vlaneseq
        %v1064 = vshrl.u32 %v1063, 7
        %v1065 = vsub.s32 %v1062, %v1064
        %v1066 = vrot.slane %v1052, %v1065
        %v1067 = vcombine.low %v1035, %v1050
        %v1068 = vcombine.high %v1035, %v1050
        %v1070 = vunpack.c.l.s4 1934713408
        %v1071 = vunpack.c.0.s8 %v1070
        %v1072 = vlaneseq
        %v1073 = vshrl.u32 %v1072, 7
        %v1074 = vsub.s32 %v1071, %v1073
        %v1075 = vrot.slane %v1067, %v1074
        %v1077 = vunpack.c.l.s4 1934713408
        %v1078 = vunpack.c.0.s8 %v1077
        %v1079 = vlaneseq
        %v1080 = vshrl.u32 %v1079, 7
        %v1081 = vsub.s32 %v1078, %v1080
        %v1082 = vrot.slane %v1068, %v1081
        %v1083 = vcombine.high %v1059, 0.0
        %v1084 = vcombine.high %v1066, 0.0
        %v1085 = vcombine.high %v1075, 0.0
        %v1086 = vcombine.high %v1082, 0.0
        %v1087 = vcombine.low %v1059, %v1066
        %v1089 = vunpack.c.l.s4 1983009808
        %v1090 = vunpack.c.0.s8 %v1089
        %v1091 = vlaneseq
        %v1092 = vshrl.u32 %v1091, 7
        %v1093 = vsub.s32 %v1090, %v1092
        %v1094 = vrot.slane %v1087, %v1093
        %v1095 = vcombine.low %v1083, %v1084
        %v1097 = vunpack.c.l.s4 1983009808
        %v1098 = vunpack.c.0.s8 %v1097
        %v1099 = vlaneseq
        %v1100 = vshrl.u32 %v1099, 7
        %v1101 = vsub.s32 %v1098, %v1100
        %v1102 = vrot.slane %v1095, %v1101
        %v1103 = vcombine.low %v1075, %v1082
        %v1105 = vunpack.c.l.s4 1983009808
        %v1106 = vunpack.c.0.s8 %v1105
        %v1107 = vlaneseq
        %v1108 = vshrl.u32 %v1107, 7
        %v1109 = vsub.s32 %v1106, %v1108
        %v1110 = vrot.slane %v1103, %v1109
        %v1111 = vcombine.low %v1085, %v1086
        %v1113 = vunpack.c.l.s4 1983009808
        %v1114 = vunpack.c.0.s8 %v1113
        %v1115 = vlaneseq
        %v1116 = vshrl.u32 %v1115, 7
        %v1117 = vsub.s32 %v1114, %v1116
        %v1118 = vrot.slane %v1111, %v1117
        %v1119 = vcombine.low %v1094, %v1102
        %v1121 = vunpack.c.l.s4 1934713408
        %v1122 = vunpack.c.0.s8 %v1121
        %v1123 = vlaneseq
        %v1124 = vshrl.u32 %v1123, 7
        %v1125 = vsub.s32 %v1122, %v1124
        %v1126 = vrot.slane %v1119, %v1125
        %v1127 = vcombine.low %v1110, %v1118
        %v1129 = vunpack.c.l.s4 1934713408
        %v1130 = vunpack.c.0.s8 %v1129
        %v1131 = vlaneseq
        %v1132 = vshrl.u32 %v1131, 7
        %v1133 = vsub.s32 %v1130, %v1132
        %v1134 = vrot.slane %v1127, %v1133
        %v1135 = vcombine.low %v1126, %v1134
        %v1136 = vcombine.high %v1126, %v1134
        %1138 = vrot.lane.b32.xlu0 %v1136, 16
        %v1139 = vpop.permute.xlu0 %1138
        %v1141 = vsel %vm807, %v1135, %v1139
        %v1142 = vpack.c.bf16 %v1141, %v1141
        %v1143 = vld [vmem:[%s8] sm:$0xf]
        %v1144 = vld [vmem:[%s8 + $0x4] sm:$0xf]
        %v1145 = vld [vmem:[%s8 + $0x8] sm:$0xf]
        %v1146 = vld [vmem:[%s8 + $0xc] sm:$0xf]
        %v1147 = vld [vmem:[%s9] sm:$0x1]
        %v1149 = vlaneseq
        %v1150 = vshrl.u32 %v1149, 7
        %v1151 = vsub.s32 0, %v1150
        %v1152 = vrot.slane %v1147, %v1151
        %v1158 = vunpack.c.l.b16 %v1143
        %v1159 = vunpack.c.l.b16 %v1144
        %v1160 = vunpack.c.l.b16 %v1145
        %v1161 = vunpack.c.l.b16 %v1146
        %v1162 = vpack.c.b16 %v1159, %v1158
        %v1163 = vpack.c.b16 %v1161, %v1160
        %v1167 = vsel %vm584, %v1142, 0
        %1169 = vmatprep.subr.bf16.mxu0 0
        %1170 = vmatpush1.bf16.msra.mxu0 0
        %1171 = vmatprep.subr.bf16.mxu0 0
        %1172 = vmatpush1.bf16.msra.mxu0 0
        %1173 = vmatprep.subr.bf16.mxu0 0
        %1174 = vmatpush1.bf16.msra.mxu0 0
        %1175 = vmatprep.subr.bf16.mxu0 0
        %1176 = vmatpush1.bf16.msra.mxu0 0
        %1177 = vmatprep.subr.bf16.mxu0 0
        %1178 = vmatpush1.bf16.msra.mxu0 0
        %1179 = vmatprep.subr.bf16.mxu0 0
        %1180 = vmatpush1.bf16.msra.mxu0 0
        %1181 = vmatprep.subr.bf16.mxu0 0
        %1182 = vmatpush1.bf16.msra.mxu0 %v1163
        %1183 = vmatprep.subr.bf16.mxu0 0
        %1184 = vmatpush1.bf16.msra.mxu0 %v1162
        %1185 = vmatprep.subr.bf16.mxu0 0
        %1186 = vmatpush2.bf16.msra.mxu0 0
        %1187 = vmatprep.subr.bf16.mxu0 0
        %1188 = vmatpush2.bf16.msra.mxu0 0
        %1189 = vmatprep.subr.bf16.mxu0 0
        %1190 = vmatpush2.bf16.msra.mxu0 0
        %1191 = vmatprep.subr.bf16.mxu0 0
        %1192 = vmatpush2.bf16.msra.mxu0 0
        %1193 = vmatprep.subr.bf16.mxu0 0
        %1194 = vmatpush2.bf16.msra.mxu0 0
        %1195 = vmatprep.subr.bf16.mxu0 0
        %1196 = vmatpush2.bf16.msra.mxu0 0
        %1197 = vmatprep.subr.bf16.mxu0 0
        %1198 = vmatpush2.bf16.msra.mxu0 0
        %1199 = vmatprep.subr.bf16.mxu0 0
        %1200 = vmatpush2.bf16.msra.mxu0 0
        %1201 = vmatprep.mubr.bf16.mxu0 0
        %1202 = vmatmul.mubr.bf16.gmra.mxu0 %v1167
        %v1203 = vpop.f32.mrf.mxu0
        %v1204 = vadd.f32 %v1152, %v1203
        %v1205 = vpop.f32.mrf.mxu0
        %v1206 = vpop.f32.mrf.mxu0
        %v1207 = vpop.f32.mrf.mxu0
        %1208 = vdwg.mxu0
        %v1209 = vadd.f32 %v1204, %v581
        %v1210 = vsel %vm584, %v1209, 0.0
        %1211 = vadd.xlane.f32.xlu0 %v1210
        %v1212 = vpop.xlane.xlu0 %1211
        %v1213 = vmul.f32 %v1212, %v588
        %v1214 = vsub.f32 %v1209, %v1213
        %v1215 = vmul.f32 %v1214, %v1214
        %v1216 = vsel %vm584, %v1215, 0.0
        %1217 = vadd.xlane.f32.xlu0 %v1216
        %v1218 = vpop.xlane.xlu0 %1217
        %v1219 = vmul.f32 %v1218, %v588
        %v1220 = vadd.f32 %v1219, 1e-05
        %v1221 = vrsqrt.pop %v1220
        %v1222 = vmul.f32 %v1214, %v1221
        %v1223 = vmul.f32 %v1222, %v603
        %v1224 = vadd.f32 %v1223, %v610
        %v1225 = vld [vmem:[%s579] sm:$0xff]
        %1227 = vset.pattern.permute.xlu0 0
        %1228 = vperm.xlu0 %1227, %v1225
        %v1229 = vpop.permute.xlu0 %1228
        %v1231 = vmul.f32 %v1224, %v1229
        %1232 = vst.msk [vmem:[%s558] sm:$0xff] %vm584, %v1231
        %s1233 = sand.u32 %s293, 1
        %s1234 = scalar_lea.sflag [#allocation4], %s1233
        %s1235 = sand.u32 %s293, 1
        %s1236 = smul.addr %s1235, 8
        %s1237 = scalar_lea.vmem [#allocation13], %s1236
        %s1238 = sand.u32 %s321, 1
        %s1239 = scalar_lea.sflag [#allocation15], %s1238
        %s1240 = sand.u32 %s321, 1
        %s1241 = smul.addr %s1240, 8
        %s1242 = scalar_lea.vmem [#allocation14], %s1241
        // Predicated region
        $region85: #{tpu_custom_call.1} parent=59 // pred_check
          %p1243 = pneg %p303
        $region86: #{tpu_custom_call.1} parent=59 // pred_check_branch
          %1245 = sbr.rel (%p1243) target = $region88
        $region87: #{tpu_custom_call.1} parent=59 // pred_region
          %s1247 = ssub.s32 128, 128
          %1248 = vsyncadd %s1234, %s1247
          %s1249 = sadd.s32 %s42, %s41
          %s1250 = smul.addr %s1249, 128
          %s1251 = scalar_lea.hbm %s10, %s1250
          %s1253 = sshll.u32 %s1237, 4
          %s1254 = int_to_ptr.vmem [resolvable:$true] %s1253
          %1256 = dma.vmem_to_hbm [thread:$0]  %s1254, 128, %s1251, %s1234
        $region88: #{tpu_custom_call.1} parent=59 // pred_fallthru
          _
        // Predicated region
        $region89: #{tpu_custom_call.1} parent=59 // pred_check
          %p1257 = pneg %p331
        $region90: #{tpu_custom_call.1} parent=59 // pred_check_branch
          %1259 = sbr.rel (%p1257) target = $region92
        $region91: #{tpu_custom_call.1} parent=59 // pred_region
          %s1261 = ssub.s32 128, 128
          %1262 = vsyncadd %s1239, %s1261
          %s1263 = sadd.s32 %s42, %s41
          %s1264 = smul.addr %s1263, 64
          %s1265 = scalar_lea.hbm %s11, %s1264
          %s1266 = sshll.u32 %s1242, 4
          %s1267 = int_to_ptr.vmem [resolvable:$true] %s1266
          %1272 = dma.vmem_to_hbm [thread:$0]  %s1267, 128, %s1265, %s1239, 64, 128, 4
        $region92: #{tpu_custom_call.1} parent=59 // pred_fallthru
          _
      $region60: #{tpu_custom_call.1} parent=5 // pred_fallthru
        _
      %p1273 = scmp.le.s32.totalorder 2, %s32
      // Predicated region
      $region93: #{tpu_custom_call.1} parent=5 // pred_check
        %p1274 = pneg %p1273
      $region94: #{tpu_custom_call.1} parent=5 // pred_check_branch
        %1276 = sbr.rel (%p1274) target = $region96
      $region95: #{tpu_custom_call.1} parent=5 // pred_region
        %s1277 = ssub.s32 %s32, 2
        // Predicated region
        $region97: #{tpu_custom_call.1} parent=95 // pred_check
          %p1278 = pneg %p309
        $region98: #{tpu_custom_call.1} parent=95 // pred_check_branch
          %1280 = sbr.rel (%p1278) target = $region100
        $region99: #{tpu_custom_call.1} parent=95 // pred_region
          %s1281 = sand.u32 %s294, 1
          %s1282 = scalar_lea.sflag [#allocation4], %s1281
          %s1283 = sand.u32 %s294, 1
          %s1284 = smul.addr %s1283, 8
          %s1285 = scalar_lea.vmem [#allocation13], %s1284
          %1286 = dma.done %s1282, 128
        $region100: #{tpu_custom_call.1} parent=95 // pred_fallthru
          _
        // Predicated region
        $region101: #{tpu_custom_call.1} parent=95 // pred_check
          %p1287 = pneg %p337
        $region102: #{tpu_custom_call.1} parent=95 // pred_check_branch
          %1289 = sbr.rel (%p1287) target = $region104
        $region103: #{tpu_custom_call.1} parent=95 // pred_region
          %s1290 = sand.u32 %s322, 1
          %s1291 = scalar_lea.sflag [#allocation15], %s1290
          %s1292 = sand.u32 %s322, 1
          %s1293 = smul.addr %s1292, 8
          %s1294 = scalar_lea.vmem [#allocation14], %s1293
          %1295 = dma.done %s1291, 128
        $region104: #{tpu_custom_call.1} parent=95 // pred_fallthru
          _
      $region96: #{tpu_custom_call.1} parent=5 // pred_fallthru
        _
    $region6: #{tpu_custom_call.1} parent=1 // loop_footer
      %s36 = sadd.s32 1, %s32
    $region7: #{tpu_custom_call.1} parent=1 // loop_footer_branch
      %31 = sbr.rel target = $region3
    $region8: #{tpu_custom_call.1} parent=1 // loop_exit
      _
    %1296 = vsyncpa [#allocation3], 1
    %s1297 = scalar_lea.sflag [#allocation3], 1
    %1298 = vsyncpa %s1297, 1
    %1299 = vsyncpa [#allocation6], 1
    %s1300 = scalar_lea.sflag [#allocation6], 1
    %1301 = vsyncpa %s1300, 1
    %1302 = vsyncpa [#allocation9], 1
    %1303 = vsyncpa [#allocation12], 1
    %1304 = vsyncpa [#allocation4], 1
    %s1305 = scalar_lea.sflag [#allocation4], 1
    %1306 = vsyncpa %s1305, 1
    %1307 = vsyncpa [#allocation15], 1
    %s1308 = scalar_lea.sflag [#allocation15], 1
    %1309 = vsyncpa %s1308, 1

</llo_original>
